<compile_context>
chip_gen: v7x
topology: tpu7x:2x2x1
jax: 0.10.0
libtpu: 0.0.40
codegen_flags: <defaults>
</compile_context>

<pallas_src>
import functools

import jax
import jax.numpy as jnp
from jax import lax
from jax.experimental import pallas as pl
from jax.experimental.pallas import tpu as pltpu


def _round_up(x, m):
    return (x + m - 1) // m * m


def lstm_recurrence_kernel(x_ref, wih_ref, whh_ref, b_ref,
                           out_ref, c_out_ref,
                           h_scr, c_scr, gates_scr,
                           *, t_total, need_mask, unroll):
    """One (batch-block, time-block) tile of the LSTM.

    x_ref     : (TT*BB, Hp)   mxu dtype  embedded inputs, time folded into sublanes
    wih_ref   : (Hp, 4*Hp)    mxu dtype  input weight, gate k at cols [k*Hp,(k+1)*Hp)
    whh_ref   : (Hp, 4*Hp)    mxu dtype  recurrent weight, same layout
    b_ref     : (1, 4*Hp)     f32        b_ih + b_hh
    out_ref   : (TT*BB, Hp)   out dtype  h_t for every step of this tile
    c_out_ref : (BB, Hp)      f32        final cell state (resident across time blocks)
    h_scr/c_scr : (BB, Hp)    f32        hidden/cell carry across time blocks
    gates_scr : (TT*BB, 4*Hp) f32        tile-level input projection
    """
    BB, Hp = c_out_ref.shape
    TT = out_ref.shape[0] // BB
    t_blk = pl.program_id(1)

    @pl.when(t_blk == 0)
    def _():
        h_scr[...] = jnp.zeros_like(h_scr)
        c_scr[...] = jnp.zeros_like(c_scr)

    # Tile-level fused input projection: one MXU-friendly (TT*BB, Hp) x (Hp, 4*Hp)
    # matmul, off the serial h-dependency.  bf16 operands, f32 accumulation.
    gates_scr[...] = (
        jnp.dot(x_ref[...], wih_ref[...], preferred_element_type=jnp.float32)
        + b_ref[...])

    mxu_dtype = whh_ref.dtype

    def sigmoid1(v):
        # Single EUP push (tanh); the 0.5 mul/adds ride the VPU (cheaper than exp+recip).
        return 0.5 * jnp.tanh(0.5 * v) + 0.5

    def step(t, carry):
        h, c = carry
        row = pl.multiple_of(t * BB, BB)
        # Only the recurrent matmul sits on the serial critical path.
        gates = gates_scr[pl.ds(row, BB), :] + jnp.dot(
            h.astype(mxu_dtype), whh_ref[...],
            preferred_element_type=jnp.float32)            # (BB, 4*Hp) f32

        # PyTorch gate order i, f, g, o — each slice is lane-tile aligned (Hp % 128 == 0).
        i = sigmoid1(gates[:, 0 * Hp:1 * Hp])
        f = sigmoid1(gates[:, 1 * Hp:2 * Hp])
        g = jnp.tanh(gates[:, 2 * Hp:3 * Hp])
        o = sigmoid1(gates[:, 3 * Hp:4 * Hp])

        c_new = f * c + i * g
        h_new = o * jnp.tanh(c_new)

        if need_mask:
            # Padded trailing timesteps (last time block only) must not advance the state.
            valid = ((t_blk * TT + t) < t_total).astype(jnp.float32)
            c_new = valid * c_new + (1.0 - valid) * c
            h_new = valid * h_new + (1.0 - valid) * h

        out_ref[pl.ds(row, BB), :] = h_new.astype(out_ref.dtype)
        return h_new, c_new

    h_last, c_last = lax.fori_loop(0, TT, step, (h_scr[...], c_scr[...]),
                                   unroll=unroll)

    h_scr[...] = h_last
    c_scr[...] = c_last
    c_out_ref[...] = c_last


def encoder_lstm_forward(tokens, emb_table, w_ih, w_hh, b_ih, b_hh,
                         *, mxu_dtype=jnp.bfloat16, time_block=64):
    """tokens: (B, T) int32; emb_table: (V, H); w_ih/w_hh: (4H, H); b_*: (4H,).

    Pass mxu_dtype=jnp.float32 for exact-f32 matmuls (bf16 accumulates small rounding
    error over long sequences vs. the f32 PyTorch reference).
    """
    B, T = tokens.shape
    V, H = emb_table.shape
    out_dtype = emb_table.dtype

    # --- padding / blocking --------------------------------------------------
    Hp = max(_round_up(H, 128), 128)           # lane-align hidden (4*Hp multiple of 512)
    Bp = max(_round_up(B, 8), 8)               # sublane-align batch
    if Bp >= 16:                               # 2 batch blocks -> both TCs on v7x
        Bp = _round_up(Bp, 16)
        n_bblk = 2
    else:
        n_bblk = 1
    BB = Bp // n_bblk

    TT = min(T, time_block)                    # time block: bounds VMEM independent of T
    Tp = _round_up(T, TT)
    n_tblk = Tp // TT
    need_mask = Tp != T
    tile_rows = TT * BB

    # --- embedding + layout plumbing (plain XLA) -----------------------------
    # Embedding gather, time-major.  padding_idx=0 semantics come from row 0 of
    # emb_table being zero (as nn.Embedding keeps it).
    x_tm = emb_table[tokens.T]                                       # (T, B, H)
    # TODO(synk): nn.Dropout treated as identity (eval semantics); training-mode RNG
    # mask of the reference module is not reproduced.
    x_tm = jnp.pad(x_tm, ((0, Tp - T), (0, Bp - B), (0, Hp - H)))
    # Fold time into the sublane axis, grouped by batch block:
    # (Tp, Bp, Hp) -> (n_bblk, Tp, BB, Hp) -> (n_bblk*Tp*BB, Hp)
    x2d = (x_tm.reshape(Tp, n_bblk, BB, Hp)
               .transpose(1, 0, 2, 3)
               .reshape(n_bblk * Tp * BB, Hp)
               .astype(mxu_dtype))

    # Gate weights: (4H, H) -> (Hp, 4*Hp) transposed for x @ W^T, each gate in a
    # lane-aligned slab of width Hp (PyTorch gate order i, f, g, o).
    def pad_gate_weight(w):
        w4 = w.reshape(4, H, H)                       # (gate, out, in)
        wt = jnp.transpose(w4, (2, 0, 1))             # (in, gate, out)
        wt = jnp.pad(wt, ((0, Hp - H), (0, 0), (0, Hp - H)))
        return wt.reshape(Hp, 4 * Hp).astype(mxu_dtype)

    wih_t = pad_gate_weight(w_ih)
    whh_t = pad_gate_weight(w_hh)
    bias = jnp.pad((b_ih + b_hh).reshape(4, H), ((0, 0), (0, Hp - H)))
    bias = bias.reshape(1, 4 * Hp).astype(jnp.float32)

    # --- pallas call ---------------------------------------------------------
    unroll = True if TT <= 8 else 4
    kernel = functools.partial(lstm_recurrence_kernel,
                               t_total=T, need_mask=need_mask, unroll=unroll)

    itm_x = jnp.dtype(mxu_dtype).itemsize
    itm_o = jnp.dtype(out_dtype).itemsize
    vmem_bytes = (2 * tile_rows * Hp * itm_x           # x tile, double-buffered
                  + 2 * tile_rows * Hp * itm_o         # out tile, double-buffered
                  + 2 * 2 * Hp * 4 * Hp * itm_x        # W_ih + W_hh
                  + 2 * 4 * Hp * 4                     # bias
                  + tile_rows * 4 * Hp * 4             # gates scratch
                  + 2 * BB * Hp * 4                    # h/c carry scratch
                  + 2 * BB * Hp * 4)                   # c_out block
    vmem_limit = int(min(max(int(1.5 * vmem_bytes), 16 << 20), 100 << 20))

    xo_map = lambda b_, t_: (b_ * n_tblk + t_, 0)      # (batch_block, time_block) -> row block
    const_map = lambda b_, t_: (0, 0)

    out2d, c_last = pl.pallas_call(
        kernel,
        out_shape=(jax.ShapeDtypeStruct((n_bblk * Tp * BB, Hp), out_dtype),
                   jax.ShapeDtypeStruct((Bp, Hp), jnp.float32)),
        grid_spec=pltpu.PrefetchScalarGridSpec(
            num_scalar_prefetch=0,
            grid=(n_bblk, n_tblk),
            in_specs=[
                pl.BlockSpec((tile_rows, Hp), xo_map),       # embedded x tile
                pl.BlockSpec((Hp, 4 * Hp), const_map),       # W_ih
                pl.BlockSpec((Hp, 4 * Hp), const_map),       # W_hh
                pl.BlockSpec((1, 4 * Hp), const_map),        # bias
            ],
            out_specs=[
                pl.BlockSpec((tile_rows, Hp), xo_map),       # h_t for every step
                pl.BlockSpec((BB, Hp), lambda b_, t_: (b_, 0)),  # final cell state
            ],
            scratch_shapes=[
                pltpu.VMEM((BB, Hp), jnp.float32),               # h carry
                pltpu.VMEM((BB, Hp), jnp.float32),               # c carry
                pltpu.VMEM((tile_rows, 4 * Hp), jnp.float32),    # tile input projection
            ],
        ),
        compiler_params=pltpu.CompilerParams(
            dimension_semantics=("parallel", "arbitrary"),
            vmem_limit_bytes=vmem_limit),
    )(x2d, wih_t, whh_t, bias)

    # --- un-pad / batch_first (the single transpose required by the module) ---
    output = (out2d.reshape(n_bblk, Tp, BB, Hp)
                   .transpose(0, 2, 1, 3)
                   .reshape(Bp, Tp, Hp)[:B, :T, :H]).astype(out_dtype)   # (B, T, H)
    hidden = output[:, T - 1, :][None, :, :]                             # (1, B, H)
    cell = c_last[:B, :H][None, :, :].astype(out_dtype)                  # (1, B, H)
    return output, hidden, cell


if __name__ == "__main__":
    # Small deterministic setup consistent with the module.
    src_vocab_size = 16
    hidden_size = 32
    batch = 2
    seq = 8

    key = jax.random.PRNGKey(0)
    k_emb, k_wih, k_whh, k_bih, k_bhh, k_tok = jax.random.split(key, 6)

    # Embedding table; zero out padding_idx=0 row (as nn.Embedding does).
    emb_table = jax.random.normal(k_emb, (src_vocab_size, hidden_size),
                                  dtype=jnp.float32)
    emb_table = emb_table.at[0].set(0.0)

    # LSTM params: PyTorch-style uniform(-1/sqrt(H), 1/sqrt(H)).
    bound = 1.0 / jnp.sqrt(jnp.float32(hidden_size))
    w_ih = jax.random.uniform(k_wih, (4 * hidden_size, hidden_size),
                              minval=-bound, maxval=bound, dtype=jnp.float32)
    w_hh = jax.random.uniform(k_whh, (4 * hidden_size, hidden_size),
                              minval=-bound, maxval=bound, dtype=jnp.float32)
    b_ih = jax.random.uniform(k_bih, (4 * hidden_size,),
                              minval=-bound, maxval=bound, dtype=jnp.float32)
    b_hh = jax.random.uniform(k_bhh, (4 * hidden_size,),
                              minval=-bound, maxval=bound, dtype=jnp.float32)

    # Token ids (include some padding tokens = 0).
    tokens = jax.random.randint(k_tok, (batch, seq), 0, src_vocab_size,
                                dtype=jnp.int32)

    output, hidden, cell = encoder_lstm_forward(
        tokens, emb_table, w_ih, w_hh, b_ih, b_hh)
    jax.block_until_ready((output, hidden, cell))

    assert output.shape == (batch, seq, hidden_size)
    assert hidden.shape == (1, batch, hidden_size)
    assert cell.shape == (1, batch, hidden_size)
    print("KERNEL_OK")
</pallas_src>

<mosaic_0001>
module attributes {stable_mosaic.version = 11 : i64} {
  func.func @lstm_recurrence_kernel(%arg0: i32, %arg1: i32, %arg2: memref<64x128xbf16, #tpu.memory_space<vmem>>, %arg3: memref<128x512xbf16, #tpu.memory_space<vmem>>, %arg4: memref<128x512xbf16, #tpu.memory_space<vmem>>, %arg5: memref<1x512xf32, #tpu.memory_space<vmem>>, %arg6: memref<64x128xf32, #tpu.memory_space<vmem>>, %arg7: memref<8x128xf32, #tpu.memory_space<vmem>>, %arg8: memref<8x128xf32, #tpu.memory_space<vmem>>, %arg9: memref<8x128xf32, #tpu.memory_space<vmem>>, %arg10: memref<64x512xf32, #tpu.memory_space<vmem>>) attributes {dimension_semantics = [#tpu.dimension_semantics<parallel>, #tpu.dimension_semantics<arbitrary>], iteration_bounds = array<i64: 1, 1>, scalar_prefetch = 0 : i64, scratch_operands = 3 : i64, tpu.core_type = #tpu.core_type<tc>, window_params = [{transform_indices = @transform_0, window_bounds = array<i64: 64, 128>}, {pipeline_mode = #tpu.pipeline_mode<synchronous>, transform_indices = @transform_1, window_bounds = array<i64: 128, 512>}, {pipeline_mode = #tpu.pipeline_mode<synchronous>, transform_indices = @transform_2, window_bounds = array<i64: 128, 512>}, {pipeline_mode = #tpu.pipeline_mode<synchronous>, transform_indices = @transform_3, window_bounds = array<i64: 1, 512>}, {transform_indices = @transform_4, window_bounds = array<i64: 64, 128>}, {transform_indices = @transform_5, window_bounds = array<i64: 8, 128>}]} {
    %c0_i32 = arith.constant 0 : i32
    %0 = arith.cmpi eq, %arg1, %c0_i32 : i32
    %1 = arith.extui %0 : i1 to i32
    %c0_i32_0 = arith.constant 0 : i32
    %2 = arith.cmpi ne, %1, %c0_i32_0 : i32
    scf.if %2 {
      %cst_139 = arith.constant 0.000000e+00 : f32
      %343 = vector.broadcast %cst_139 : f32 to vector<8x128xf32>
      %c0_140 = arith.constant 0 : index
      %c0_141 = arith.constant 0 : index
      %344 = vector.load %arg8[%c0_140, %c0_141] : memref<8x128xf32, #tpu.memory_space<vmem>>, vector<8x128xf32>
      tpu.vector_store %arg8[%c0_140, %c0_141], %343 {strides = array<i32>} : memref<8x128xf32, #tpu.memory_space<vmem>>, vector<8x128xf32>,
      %cst_142 = arith.constant 0.000000e+00 : f32
      %345 = vector.broadcast %cst_142 : f32 to vector<8x128xf32>
      %c0_143 = arith.constant 0 : index
      %c0_144 = arith.constant 0 : index
      %346 = vector.load %arg9[%c0_143, %c0_144] : memref<8x128xf32, #tpu.memory_space<vmem>>, vector<8x128xf32>
      tpu.vector_store %arg9[%c0_143, %c0_144], %345 {strides = array<i32>} : memref<8x128xf32, #tpu.memory_space<vmem>>, vector<8x128xf32>,
    } else {
    }
    %c0 = arith.constant 0 : index
    %c0_1 = arith.constant 0 : index
    %3 = vector.load %arg2[%c0, %c0_1] : memref<64x128xbf16, #tpu.memory_space<vmem>>, vector<64x128xbf16>
    %c0_2 = arith.constant 0 : index
    %c0_3 = arith.constant 0 : index
    %4 = vector.load %arg3[%c0_2, %c0_3] : memref<128x512xbf16, #tpu.memory_space<vmem>>, vector<128x512xbf16>
    %cst = arith.constant dense<0.000000e+00> : vector<64x512xf32>
    %5 = tpu.matmul %3, %4, %cst {dimension_numbers = #tpu.dot_dimension_numbers<[1], [0], [0], [1], [0, 0, 1, 1], [], []>} : vector<64x128xbf16>, vector<128x512xbf16>, vector<64x512xf32> -> vector<64x512xf32>
    %c0_4 = arith.constant 0 : index
    %c0_5 = arith.constant 0 : index
    %6 = vector.load %arg5[%c0_4, %c0_5] : memref<1x512xf32, #tpu.memory_space<vmem>>, vector<1x512xf32>
    %7 = vector.broadcast %6 : vector<1x512xf32> to vector<64x512xf32>
    %8 = arith.addf %5, %7 : vector<64x512xf32>
    %c0_6 = arith.constant 0 : index
    %c0_7 = arith.constant 0 : index
    %9 = vector.load %arg10[%c0_6, %c0_7] : memref<64x512xf32, #tpu.memory_space<vmem>>, vector<64x512xf32>
    tpu.vector_store %arg10[%c0_6, %c0_7], %8 {strides = array<i32>} : memref<64x512xf32, #tpu.memory_space<vmem>>, vector<64x512xf32>,
    %c0_8 = arith.constant 0 : index
    %c0_9 = arith.constant 0 : index
    %10 = vector.load %arg8[%c0_8, %c0_9] : memref<8x128xf32, #tpu.memory_space<vmem>>, vector<8x128xf32>
    %c0_10 = arith.constant 0 : index
    %c0_11 = arith.constant 0 : index
    %11 = vector.load %arg9[%c0_10, %c0_11] : memref<8x128xf32, #tpu.memory_space<vmem>>, vector<8x128xf32>
    %c0_i32_12 = arith.constant 0 : i32
    %c8_i32 = arith.constant 8 : i32
    %12 = arith.muli %c0_i32_12, %c8_i32 : i32
    %13 = tpu.assume_multiple %12, 8 : i32
    %14 = arith.index_cast %13 : i32 to index
    %c0_13 = arith.constant 0 : index
    %15 = vector.load %arg10[%14, %c0_13] : memref<64x512xf32, #tpu.memory_space<vmem>>, vector<8x512xf32>
    %16 = arith.truncf %10 : vector<8x128xf32> to vector<8x128xbf16>
    %c0_14 = arith.constant 0 : index
    %c0_15 = arith.constant 0 : index
    %17 = vector.load %arg4[%c0_14, %c0_15] : memref<128x512xbf16, #tpu.memory_space<vmem>>, vector<128x512xbf16>
    %cst_16 = arith.constant dense<0.000000e+00> : vector<8x512xf32>
    %18 = tpu.matmul %16, %17, %cst_16 {dimension_numbers = #tpu.dot_dimension_numbers<[1], [0], [0], [1], [0, 0, 1, 1], [], []>} : vector<8x128xbf16>, vector<128x512xbf16>, vector<8x512xf32> -> vector<8x512xf32>
    %19 = arith.addf %15, %18 : vector<8x512xf32>
    %20 = vector.extract_strided_slice %19 {offsets = [0, 0], sizes = [8, 128], strides = [1, 1]} : vector<8x512xf32> to vector<8x128xf32>
    %cst_17 = arith.constant 5.000000e-01 : f32
    %21 = vector.broadcast %cst_17 : f32 to vector<8x128xf32>
    %22 = arith.mulf %21, %20 : vector<8x128xf32>
    %23 = math.tanh %22 : vector<8x128xf32>
    %cst_18 = arith.constant 5.000000e-01 : f32
    %24 = vector.broadcast %cst_18 : f32 to vector<8x128xf32>
    %25 = arith.mulf %24, %23 : vector<8x128xf32>
    %cst_19 = arith.constant 5.000000e-01 : f32
    %26 = vector.broadcast %cst_19 : f32 to vector<8x128xf32>
    %27 = arith.addf %25, %26 : vector<8x128xf32>
    %28 = vector.extract_strided_slice %19 {offsets = [0, 128], sizes = [8, 128], strides = [1, 1]} : vector<8x512xf32> to vector<8x128xf32>
    %cst_20 = arith.constant 5.000000e-01 : f32
    %29 = vector.broadcast %cst_20 : f32 to vector<8x128xf32>
    %30 = arith.mulf %29, %28 : vector<8x128xf32>
    %31 = math.tanh %30 : vector<8x128xf32>
    %cst_21 = arith.constant 5.000000e-01 : f32
    %32 = vector.broadcast %cst_21 : f32 to vector<8x128xf32>
    %33 = arith.mulf %32, %31 : vector<8x128xf32>
    %cst_22 = arith.constant 5.000000e-01 : f32
    %34 = vector.broadcast %cst_22 : f32 to vector<8x128xf32>
    %35 = arith.addf %33, %34 : vector<8x128xf32>
    %36 = vector.extract_strided_slice %19 {offsets = [0, 256], sizes = [8, 128], strides = [1, 1]} : vector<8x512xf32> to vector<8x128xf32>
    %37 = math.tanh %36 : vector<8x128xf32>
    %38 = vector.extract_strided_slice %19 {offsets = [0, 384], sizes = [8, 128], strides = [1, 1]} : vector<8x512xf32> to vector<8x128xf32>
    %cst_23 = arith.constant 5.000000e-01 : f32
    %39 = vector.broadcast %cst_23 : f32 to vector<8x128xf32>
    %40 = arith.mulf %39, %38 : vector<8x128xf32>
    %41 = math.tanh %40 : vector<8x128xf32>
    %cst_24 = arith.constant 5.000000e-01 : f32
    %42 = vector.broadcast %cst_24 : f32 to vector<8x128xf32>
    %43 = arith.mulf %42, %41 : vector<8x128xf32>
    %cst_25 = arith.constant 5.000000e-01 : f32
    %44 = vector.broadcast %cst_25 : f32 to vector<8x128xf32>
    %45 = arith.addf %43, %44 : vector<8x128xf32>
    %46 = arith.mulf %35, %11 : vector<8x128xf32>
    %47 = arith.mulf %27, %37 : vector<8x128xf32>
    %48 = arith.addf %46, %47 : vector<8x128xf32>
    %49 = math.tanh %48 : vector<8x128xf32>
    %50 = arith.mulf %45, %49 : vector<8x128xf32>
    %51 = arith.index_cast %13 : i32 to index
    %c0_26 = arith.constant 0 : index
    %52 = vector.load %arg6[%51, %c0_26] : memref<64x128xf32, #tpu.memory_space<vmem>>, vector<8x128xf32>
    tpu.vector_store %arg6[%51, %c0_26], %50 {strides = array<i32>} : memref<64x128xf32, #tpu.memory_space<vmem>>, vector<8x128xf32>,
    %c1_i32 = arith.constant 1 : i32
    %c8_i32_27 = arith.constant 8 : i32
    %53 = arith.muli %c1_i32, %c8_i32_27 : i32
    %54 = tpu.assume_multiple %53, 8 : i32
    %55 = arith.index_cast %54 : i32 to index
    %c0_28 = arith.constant 0 : index
    %56 = vector.load %arg10[%55, %c0_28] : memref<64x512xf32, #tpu.memory_space<vmem>>, vector<8x512xf32>
    %57 = arith.truncf %50 : vector<8x128xf32> to vector<8x128xbf16>
    %c0_29 = arith.constant 0 : index
    %c0_30 = arith.constant 0 : index
    %58 = vector.load %arg4[%c0_29, %c0_30] : memref<128x512xbf16, #tpu.memory_space<vmem>>, vector<128x512xbf16>
    %cst_31 = arith.constant dense<0.000000e+00> : vector<8x512xf32>
    %59 = tpu.matmul %57, %58, %cst_31 {dimension_numbers = #tpu.dot_dimension_numbers<[1], [0], [0], [1], [0, 0, 1, 1], [], []>} : vector<8x128xbf16>, vector<128x512xbf16>, vector<8x512xf32> -> vector<8x512xf32>
    %60 = arith.addf %56, %59 : vector<8x512xf32>
    %61 = vector.extract_strided_slice %60 {offsets = [0, 0], sizes = [8, 128], strides = [1, 1]} : vector<8x512xf32> to vector<8x128xf32>
    %cst_32 = arith.constant 5.000000e-01 : f32
    %62 = vector.broadcast %cst_32 : f32 to vector<8x128xf32>
    %63 = arith.mulf %62, %61 : vector<8x128xf32>
    %64 = math.tanh %63 : vector<8x128xf32>
    %cst_33 = arith.constant 5.000000e-01 : f32
    %65 = vector.broadcast %cst_33 : f32 to vector<8x128xf32>
    %66 = arith.mulf %65, %64 : vector<8x128xf32>
    %cst_34 = arith.constant 5.000000e-01 : f32
    %67 = vector.broadcast %cst_34 : f32 to vector<8x128xf32>
    %68 = arith.addf %66, %67 : vector<8x128xf32>
    %69 = vector.extract_strided_slice %60 {offsets = [0, 128], sizes = [8, 128], strides = [1, 1]} : vector<8x512xf32> to vector<8x128xf32>
    %cst_35 = arith.constant 5.000000e-01 : f32
    %70 = vector.broadcast %cst_35 : f32 to vector<8x128xf32>
    %71 = arith.mulf %70, %69 : vector<8x128xf32>
    %72 = math.tanh %71 : vector<8x128xf32>
    %cst_36 = arith.constant 5.000000e-01 : f32
    %73 = vector.broadcast %cst_36 : f32 to vector<8x128xf32>
    %74 = arith.mulf %73, %72 : vector<8x128xf32>
    %cst_37 = arith.constant 5.000000e-01 : f32
    %75 = vector.broadcast %cst_37 : f32 to vector<8x128xf32>
    %76 = arith.addf %74, %75 : vector<8x128xf32>
    %77 = vector.extract_strided_slice %60 {offsets = [0, 256], sizes = [8, 128], strides = [1, 1]} : vector<8x512xf32> to vector<8x128xf32>
    %78 = math.tanh %77 : vector<8x128xf32>
    %79 = vector.extract_strided_slice %60 {offsets = [0, 384], sizes = [8, 128], strides = [1, 1]} : vector<8x512xf32> to vector<8x128xf32>
    %cst_38 = arith.constant 5.000000e-01 : f32
    %80 = vector.broadcast %cst_38 : f32 to vector<8x128xf32>
    %81 = arith.mulf %80, %79 : vector<8x128xf32>
    %82 = math.tanh %81 : vector<8x128xf32>
    %cst_39 = arith.constant 5.000000e-01 : f32
    %83 = vector.broadcast %cst_39 : f32 to vector<8x128xf32>
    %84 = arith.mulf %83, %82 : vector<8x128xf32>
    %cst_40 = arith.constant 5.000000e-01 : f32
    %85 = vector.broadcast %cst_40 : f32 to vector<8x128xf32>
    %86 = arith.addf %84, %85 : vector<8x128xf32>
    %87 = arith.mulf %76, %48 : vector<8x128xf32>
    %88 = arith.mulf %68, %78 : vector<8x128xf32>
    %89 = arith.addf %87, %88 : vector<8x128xf32>
    %90 = math.tanh %89 : vector<8x128xf32>
    %91 = arith.mulf %86, %90 : vector<8x128xf32>
    %92 = arith.index_cast %54 : i32 to index
    %c0_41 = arith.constant 0 : index
    %93 = vector.load %arg6[%92, %c0_41] : memref<64x128xf32, #tpu.memory_space<vmem>>, vector<8x128xf32>
    tpu.vector_store %arg6[%92, %c0_41], %91 {strides = array<i32>} : memref<64x128xf32, #tpu.memory_space<vmem>>, vector<8x128xf32>,
    %c2_i32 = arith.constant 2 : i32
    %c8_i32_42 = arith.constant 8 : i32
    %94 = arith.muli %c2_i32, %c8_i32_42 : i32
    %95 = tpu.assume_multiple %94, 8 : i32
    %96 = arith.index_cast %95 : i32 to index
    %c0_43 = arith.constant 0 : index
    %97 = vector.load %arg10[%96, %c0_43] : memref<64x512xf32, #tpu.memory_space<vmem>>, vector<8x512xf32>
    %98 = arith.truncf %91 : vector<8x128xf32> to vector<8x128xbf16>
    %c0_44 = arith.constant 0 : index
    %c0_45 = arith.constant 0 : index
    %99 = vector.load %arg4[%c0_44, %c0_45] : memref<128x512xbf16, #tpu.memory_space<vmem>>, vector<128x512xbf16>
    %cst_46 = arith.constant dense<0.000000e+00> : vector<8x512xf32>
    %100 = tpu.matmul %98, %99, %cst_46 {dimension_numbers = #tpu.dot_dimension_numbers<[1], [0], [0], [1], [0, 0, 1, 1], [], []>} : vector<8x128xbf16>, vector<128x512xbf16>, vector<8x512xf32> -> vector<8x512xf32>
    %101 = arith.addf %97, %100 : vector<8x512xf32>
    %102 = vector.extract_strided_slice %101 {offsets = [0, 0], sizes = [8, 128], strides = [1, 1]} : vector<8x512xf32> to vector<8x128xf32>
    %cst_47 = arith.constant 5.000000e-01 : f32
    %103 = vector.broadcast %cst_47 : f32 to vector<8x128xf32>
    %104 = arith.mulf %103, %102 : vector<8x128xf32>
    %105 = math.tanh %104 : vector<8x128xf32>
    %cst_48 = arith.constant 5.000000e-01 : f32
    %106 = vector.broadcast %cst_48 : f32 to vector<8x128xf32>
    %107 = arith.mulf %106, %105 : vector<8x128xf32>
    %cst_49 = arith.constant 5.000000e-01 : f32
    %108 = vector.broadcast %cst_49 : f32 to vector<8x128xf32>
    %109 = arith.addf %107, %108 : vector<8x128xf32>
    %110 = vector.extract_strided_slice %101 {offsets = [0, 128], sizes = [8, 128], strides = [1, 1]} : vector<8x512xf32> to vector<8x128xf32>
    %cst_50 = arith.constant 5.000000e-01 : f32
    %111 = vector.broadcast %cst_50 : f32 to vector<8x128xf32>
    %112 = arith.mulf %111, %110 : vector<8x128xf32>
    %113 = math.tanh %112 : vector<8x128xf32>
    %cst_51 = arith.constant 5.000000e-01 : f32
    %114 = vector.broadcast %cst_51 : f32 to vector<8x128xf32>
    %115 = arith.mulf %114, %113 : vector<8x128xf32>
    %cst_52 = arith.constant 5.000000e-01 : f32
    %116 = vector.broadcast %cst_52 : f32 to vector<8x128xf32>
    %117 = arith.addf %115, %116 : vector<8x128xf32>
    %118 = vector.extract_strided_slice %101 {offsets = [0, 256], sizes = [8, 128], strides = [1, 1]} : vector<8x512xf32> to vector<8x128xf32>
    %119 = math.tanh %118 : vector<8x128xf32>
    %120 = vector.extract_strided_slice %101 {offsets = [0, 384], sizes = [8, 128], strides = [1, 1]} : vector<8x512xf32> to vector<8x128xf32>
    %cst_53 = arith.constant 5.000000e-01 : f32
    %121 = vector.broadcast %cst_53 : f32 to vector<8x128xf32>
    %122 = arith.mulf %121, %120 : vector<8x128xf32>
    %123 = math.tanh %122 : vector<8x128xf32>
    %cst_54 = arith.constant 5.000000e-01 : f32
    %124 = vector.broadcast %cst_54 : f32 to vector<8x128xf32>
    %125 = arith.mulf %124, %123 : vector<8x128xf32>
    %cst_55 = arith.constant 5.000000e-01 : f32
    %126 = vector.broadcast %cst_55 : f32 to vector<8x128xf32>
    %127 = arith.addf %125, %126 : vector<8x128xf32>
    %128 = arith.mulf %117, %89 : vector<8x128xf32>
    %129 = arith.mulf %109, %119 : vector<8x128xf32>
    %130 = arith.addf %128, %129 : vector<8x128xf32>
    %131 = math.tanh %130 : vector<8x128xf32>
    %132 = arith.mulf %127, %131 : vector<8x128xf32>
    %133 = arith.index_cast %95 : i32 to index
    %c0_56 = arith.constant 0 : index
    %134 = vector.load %arg6[%133, %c0_56] : memref<64x128xf32, #tpu.memory_space<vmem>>, vector<8x128xf32>
    tpu.vector_store %arg6[%133, %c0_56], %132 {strides = array<i32>} : memref<64x128xf32, #tpu.memory_space<vmem>>, vector<8x128xf32>,
    %c3_i32 = arith.constant 3 : i32
    %c8_i32_57 = arith.constant 8 : i32
    %135 = arith.muli %c3_i32, %c8_i32_57 : i32
    %136 = tpu.assume_multiple %135, 8 : i32
    %137 = arith.index_cast %136 : i32 to index
    %c0_58 = arith.constant 0 : index
    %138 = vector.load %arg10[%137, %c0_58] : memref<64x512xf32, #tpu.memory_space<vmem>>, vector<8x512xf32>
    %139 = arith.truncf %132 : vector<8x128xf32> to vector<8x128xbf16>
    %c0_59 = arith.constant 0 : index
    %c0_60 = arith.constant 0 : index
    %140 = vector.load %arg4[%c0_59, %c0_60] : memref<128x512xbf16, #tpu.memory_space<vmem>>, vector<128x512xbf16>
    %cst_61 = arith.constant dense<0.000000e+00> : vector<8x512xf32>
    %141 = tpu.matmul %139, %140, %cst_61 {dimension_numbers = #tpu.dot_dimension_numbers<[1], [0], [0], [1], [0, 0, 1, 1], [], []>} : vector<8x128xbf16>, vector<128x512xbf16>, vector<8x512xf32> -> vector<8x512xf32>
    %142 = arith.addf %138, %141 : vector<8x512xf32>
    %143 = vector.extract_strided_slice %142 {offsets = [0, 0], sizes = [8, 128], strides = [1, 1]} : vector<8x512xf32> to vector<8x128xf32>
    %cst_62 = arith.constant 5.000000e-01 : f32
    %144 = vector.broadcast %cst_62 : f32 to vector<8x128xf32>
    %145 = arith.mulf %144, %143 : vector<8x128xf32>
    %146 = math.tanh %145 : vector<8x128xf32>
    %cst_63 = arith.constant 5.000000e-01 : f32
    %147 = vector.broadcast %cst_63 : f32 to vector<8x128xf32>
    %148 = arith.mulf %147, %146 : vector<8x128xf32>
    %cst_64 = arith.constant 5.000000e-01 : f32
    %149 = vector.broadcast %cst_64 : f32 to vector<8x128xf32>
    %150 = arith.addf %148, %149 : vector<8x128xf32>
    %151 = vector.extract_strided_slice %142 {offsets = [0, 128], sizes = [8, 128], strides = [1, 1]} : vector<8x512xf32> to vector<8x128xf32>
    %cst_65 = arith.constant 5.000000e-01 : f32
    %152 = vector.broadcast %cst_65 : f32 to vector<8x128xf32>
    %153 = arith.mulf %152, %151 : vector<8x128xf32>
    %154 = math.tanh %153 : vector<8x128xf32>
    %cst_66 = arith.constant 5.000000e-01 : f32
    %155 = vector.broadcast %cst_66 : f32 to vector<8x128xf32>
    %156 = arith.mulf %155, %154 : vector<8x128xf32>
    %cst_67 = arith.constant 5.000000e-01 : f32
    %157 = vector.broadcast %cst_67 : f32 to vector<8x128xf32>
    %158 = arith.addf %156, %157 : vector<8x128xf32>
    %159 = vector.extract_strided_slice %142 {offsets = [0, 256], sizes = [8, 128], strides = [1, 1]} : vector<8x512xf32> to vector<8x128xf32>
    %160 = math.tanh %159 : vector<8x128xf32>
    %161 = vector.extract_strided_slice %142 {offsets = [0, 384], sizes = [8, 128], strides = [1, 1]} : vector<8x512xf32> to vector<8x128xf32>
    %cst_68 = arith.constant 5.000000e-01 : f32
    %162 = vector.broadcast %cst_68 : f32 to vector<8x128xf32>
    %163 = arith.mulf %162, %161 : vector<8x128xf32>
    %164 = math.tanh %163 : vector<8x128xf32>
    %cst_69 = arith.constant 5.000000e-01 : f32
    %165 = vector.broadcast %cst_69 : f32 to vector<8x128xf32>
    %166 = arith.mulf %165, %164 : vector<8x128xf32>
    %cst_70 = arith.constant 5.000000e-01 : f32
    %167 = vector.broadcast %cst_70 : f32 to vector<8x128xf32>
    %168 = arith.addf %166, %167 : vector<8x128xf32>
    %169 = arith.mulf %158, %130 : vector<8x128xf32>
    %170 = arith.mulf %150, %160 : vector<8x128xf32>
    %171 = arith.addf %169, %170 : vector<8x128xf32>
    %172 = math.tanh %171 : vector<8x128xf32>
    %173 = arith.mulf %168, %172 : vector<8x128xf32>
    %174 = arith.index_cast %136 : i32 to index
    %c0_71 = arith.constant 0 : index
    %175 = vector.load %arg6[%174, %c0_71] : memref<64x128xf32, #tpu.memory_space<vmem>>, vector<8x128xf32>
    tpu.vector_store %arg6[%174, %c0_71], %173 {strides = array<i32>} : memref<64x128xf32, #tpu.memory_space<vmem>>, vector<8x128xf32>,
    %c4_i32 = arith.constant 4 : i32
    %c8_i32_72 = arith.constant 8 : i32
    %176 = arith.muli %c4_i32, %c8_i32_72 : i32
    %177 = tpu.assume_multiple %176, 8 : i32
    %178 = arith.index_cast %177 : i32 to index
    %c0_73 = arith.constant 0 : index
    %179 = vector.load %arg10[%178, %c0_73] : memref<64x512xf32, #tpu.memory_space<vmem>>, vector<8x512xf32>
    %180 = arith.truncf %173 : vector<8x128xf32> to vector<8x128xbf16>
    %c0_74 = arith.constant 0 : index
    %c0_75 = arith.constant 0 : index
    %181 = vector.load %arg4[%c0_74, %c0_75] : memref<128x512xbf16, #tpu.memory_space<vmem>>, vector<128x512xbf16>
    %cst_76 = arith.constant dense<0.000000e+00> : vector<8x512xf32>
    %182 = tpu.matmul %180, %181, %cst_76 {dimension_numbers = #tpu.dot_dimension_numbers<[1], [0], [0], [1], [0, 0, 1, 1], [], []>} : vector<8x128xbf16>, vector<128x512xbf16>, vector<8x512xf32> -> vector<8x512xf32>
    %183 = arith.addf %179, %182 : vector<8x512xf32>
    %184 = vector.extract_strided_slice %183 {offsets = [0, 0], sizes = [8, 128], strides = [1, 1]} : vector<8x512xf32> to vector<8x128xf32>
    %cst_77 = arith.constant 5.000000e-01 : f32
    %185 = vector.broadcast %cst_77 : f32 to vector<8x128xf32>
    %186 = arith.mulf %185, %184 : vector<8x128xf32>
    %187 = math.tanh %186 : vector<8x128xf32>
    %cst_78 = arith.constant 5.000000e-01 : f32
    %188 = vector.broadcast %cst_78 : f32 to vector<8x128xf32>
    %189 = arith.mulf %188, %187 : vector<8x128xf32>
    %cst_79 = arith.constant 5.000000e-01 : f32
    %190 = vector.broadcast %cst_79 : f32 to vector<8x128xf32>
    %191 = arith.addf %189, %190 : vector<8x128xf32>
    %192 = vector.extract_strided_slice %183 {offsets = [0, 128], sizes = [8, 128], strides = [1, 1]} : vector<8x512xf32> to vector<8x128xf32>
    %cst_80 = arith.constant 5.000000e-01 : f32
    %193 = vector.broadcast %cst_80 : f32 to vector<8x128xf32>
    %194 = arith.mulf %193, %192 : vector<8x128xf32>
    %195 = math.tanh %194 : vector<8x128xf32>
    %cst_81 = arith.constant 5.000000e-01 : f32
    %196 = vector.broadcast %cst_81 : f32 to vector<8x128xf32>
    %197 = arith.mulf %196, %195 : vector<8x128xf32>
    %cst_82 = arith.constant 5.000000e-01 : f32
    %198 = vector.broadcast %cst_82 : f32 to vector<8x128xf32>
    %199 = arith.addf %197, %198 : vector<8x128xf32>
    %200 = vector.extract_strided_slice %183 {offsets = [0, 256], sizes = [8, 128], strides = [1, 1]} : vector<8x512xf32> to vector<8x128xf32>
    %201 = math.tanh %200 : vector<8x128xf32>
    %202 = vector.extract_strided_slice %183 {offsets = [0, 384], sizes = [8, 128], strides = [1, 1]} : vector<8x512xf32> to vector<8x128xf32>
    %cst_83 = arith.constant 5.000000e-01 : f32
    %203 = vector.broadcast %cst_83 : f32 to vector<8x128xf32>
    %204 = arith.mulf %203, %202 : vector<8x128xf32>
    %205 = math.tanh %204 : vector<8x128xf32>
    %cst_84 = arith.constant 5.000000e-01 : f32
    %206 = vector.broadcast %cst_84 : f32 to vector<8x128xf32>
    %207 = arith.mulf %206, %205 : vector<8x128xf32>
    %cst_85 = arith.constant 5.000000e-01 : f32
    %208 = vector.broadcast %cst_85 : f32 to vector<8x128xf32>
    %209 = arith.addf %207, %208 : vector<8x128xf32>
    %210 = arith.mulf %199, %171 : vector<8x128xf32>
    %211 = arith.mulf %191, %201 : vector<8x128xf32>
    %212 = arith.addf %210, %211 : vector<8x128xf32>
    %213 = math.tanh %212 : vector<8x128xf32>
    %214 = arith.mulf %209, %213 : vector<8x128xf32>
    %215 = arith.index_cast %177 : i32 to index
    %c0_86 = arith.constant 0 : index
    %216 = vector.load %arg6[%215, %c0_86] : memref<64x128xf32, #tpu.memory_space<vmem>>, vector<8x128xf32>
    tpu.vector_store %arg6[%215, %c0_86], %214 {strides = array<i32>} : memref<64x128xf32, #tpu.memory_space<vmem>>, vector<8x128xf32>,
    %c5_i32 = arith.constant 5 : i32
    %c8_i32_87 = arith.constant 8 : i32
    %217 = arith.muli %c5_i32, %c8_i32_87 : i32
    %218 = tpu.assume_multiple %217, 8 : i32
    %219 = arith.index_cast %218 : i32 to index
    %c0_88 = arith.constant 0 : index
    %220 = vector.load %arg10[%219, %c0_88] : memref<64x512xf32, #tpu.memory_space<vmem>>, vector<8x512xf32>
    %221 = arith.truncf %214 : vector<8x128xf32> to vector<8x128xbf16>
    %c0_89 = arith.constant 0 : index
    %c0_90 = arith.constant 0 : index
    %222 = vector.load %arg4[%c0_89, %c0_90] : memref<128x512xbf16, #tpu.memory_space<vmem>>, vector<128x512xbf16>
    %cst_91 = arith.constant dense<0.000000e+00> : vector<8x512xf32>
    %223 = tpu.matmul %221, %222, %cst_91 {dimension_numbers = #tpu.dot_dimension_numbers<[1], [0], [0], [1], [0, 0, 1, 1], [], []>} : vector<8x128xbf16>, vector<128x512xbf16>, vector<8x512xf32> -> vector<8x512xf32>
    %224 = arith.addf %220, %223 : vector<8x512xf32>
    %225 = vector.extract_strided_slice %224 {offsets = [0, 0], sizes = [8, 128], strides = [1, 1]} : vector<8x512xf32> to vector<8x128xf32>
    %cst_92 = arith.constant 5.000000e-01 : f32
    %226 = vector.broadcast %cst_92 : f32 to vector<8x128xf32>
    %227 = arith.mulf %226, %225 : vector<8x128xf32>
    %228 = math.tanh %227 : vector<8x128xf32>
    %cst_93 = arith.constant 5.000000e-01 : f32
    %229 = vector.broadcast %cst_93 : f32 to vector<8x128xf32>
    %230 = arith.mulf %229, %228 : vector<8x128xf32>
    %cst_94 = arith.constant 5.000000e-01 : f32
    %231 = vector.broadcast %cst_94 : f32 to vector<8x128xf32>
    %232 = arith.addf %230, %231 : vector<8x128xf32>
    %233 = vector.extract_strided_slice %224 {offsets = [0, 128], sizes = [8, 128], strides = [1, 1]} : vector<8x512xf32> to vector<8x128xf32>
    %cst_95 = arith.constant 5.000000e-01 : f32
    %234 = vector.broadcast %cst_95 : f32 to vector<8x128xf32>
    %235 = arith.mulf %234, %233 : vector<8x128xf32>
    %236 = math.tanh %235 : vector<8x128xf32>
    %cst_96 = arith.constant 5.000000e-01 : f32
    %237 = vector.broadcast %cst_96 : f32 to vector<8x128xf32>
    %238 = arith.mulf %237, %236 : vector<8x128xf32>
    %cst_97 = arith.constant 5.000000e-01 : f32
    %239 = vector.broadcast %cst_97 : f32 to vector<8x128xf32>
    %240 = arith.addf %238, %239 : vector<8x128xf32>
    %241 = vector.extract_strided_slice %224 {offsets = [0, 256], sizes = [8, 128], strides = [1, 1]} : vector<8x512xf32> to vector<8x128xf32>
    %242 = math.tanh %241 : vector<8x128xf32>
    %243 = vector.extract_strided_slice %224 {offsets = [0, 384], sizes = [8, 128], strides = [1, 1]} : vector<8x512xf32> to vector<8x128xf32>
    %cst_98 = arith.constant 5.000000e-01 : f32
    %244 = vector.broadcast %cst_98 : f32 to vector<8x128xf32>
    %245 = arith.mulf %244, %243 : vector<8x128xf32>
    %246 = math.tanh %245 : vector<8x128xf32>
    %cst_99 = arith.constant 5.000000e-01 : f32
    %247 = vector.broadcast %cst_99 : f32 to vector<8x128xf32>
    %248 = arith.mulf %247, %246 : vector<8x128xf32>
    %cst_100 = arith.constant 5.000000e-01 : f32
    %249 = vector.broadcast %cst_100 : f32 to vector<8x128xf32>
    %250 = arith.addf %248, %249 : vector<8x128xf32>
    %251 = arith.mulf %240, %212 : vector<8x128xf32>
    %252 = arith.mulf %232, %242 : vector<8x128xf32>
    %253 = arith.addf %251, %252 : vector<8x128xf32>
    %254 = math.tanh %253 : vector<8x128xf32>
    %255 = arith.mulf %250, %254 : vector<8x128xf32>
    %256 = arith.index_cast %218 : i32 to index
    %c0_101 = arith.constant 0 : index
    %257 = vector.load %arg6[%256, %c0_101] : memref<64x128xf32, #tpu.memory_space<vmem>>, vector<8x128xf32>
    tpu.vector_store %arg6[%256, %c0_101], %255 {strides = array<i32>} : memref<64x128xf32, #tpu.memory_space<vmem>>, vector<8x128xf32>,
    %c6_i32 = arith.constant 6 : i32
    %c8_i32_102 = arith.constant 8 : i32
    %258 = arith.muli %c6_i32, %c8_i32_102 : i32
    %259 = tpu.assume_multiple %258, 8 : i32
    %260 = arith.index_cast %259 : i32 to index
    %c0_103 = arith.constant 0 : index
    %261 = vector.load %arg10[%260, %c0_103] : memref<64x512xf32, #tpu.memory_space<vmem>>, vector<8x512xf32>
    %262 = arith.truncf %255 : vector<8x128xf32> to vector<8x128xbf16>
    %c0_104 = arith.constant 0 : index
    %c0_105 = arith.constant 0 : index
    %263 = vector.load %arg4[%c0_104, %c0_105] : memref<128x512xbf16, #tpu.memory_space<vmem>>, vector<128x512xbf16>
    %cst_106 = arith.constant dense<0.000000e+00> : vector<8x512xf32>
    %264 = tpu.matmul %262, %263, %cst_106 {dimension_numbers = #tpu.dot_dimension_numbers<[1], [0], [0], [1], [0, 0, 1, 1], [], []>} : vector<8x128xbf16>, vector<128x512xbf16>, vector<8x512xf32> -> vector<8x512xf32>
    %265 = arith.addf %261, %264 : vector<8x512xf32>
    %266 = vector.extract_strided_slice %265 {offsets = [0, 0], sizes = [8, 128], strides = [1, 1]} : vector<8x512xf32> to vector<8x128xf32>
    %cst_107 = arith.constant 5.000000e-01 : f32
    %267 = vector.broadcast %cst_107 : f32 to vector<8x128xf32>
    %268 = arith.mulf %267, %266 : vector<8x128xf32>
    %269 = math.tanh %268 : vector<8x128xf32>
    %cst_108 = arith.constant 5.000000e-01 : f32
    %270 = vector.broadcast %cst_108 : f32 to vector<8x128xf32>
    %271 = arith.mulf %270, %269 : vector<8x128xf32>
    %cst_109 = arith.constant 5.000000e-01 : f32
    %272 = vector.broadcast %cst_109 : f32 to vector<8x128xf32>
    %273 = arith.addf %271, %272 : vector<8x128xf32>
    %274 = vector.extract_strided_slice %265 {offsets = [0, 128], sizes = [8, 128], strides = [1, 1]} : vector<8x512xf32> to vector<8x128xf32>
    %cst_110 = arith.constant 5.000000e-01 : f32
    %275 = vector.broadcast %cst_110 : f32 to vector<8x128xf32>
    %276 = arith.mulf %275, %274 : vector<8x128xf32>
    %277 = math.tanh %276 : vector<8x128xf32>
    %cst_111 = arith.constant 5.000000e-01 : f32
    %278 = vector.broadcast %cst_111 : f32 to vector<8x128xf32>
    %279 = arith.mulf %278, %277 : vector<8x128xf32>
    %cst_112 = arith.constant 5.000000e-01 : f32
    %280 = vector.broadcast %cst_112 : f32 to vector<8x128xf32>
    %281 = arith.addf %279, %280 : vector<8x128xf32>
    %282 = vector.extract_strided_slice %265 {offsets = [0, 256], sizes = [8, 128], strides = [1, 1]} : vector<8x512xf32> to vector<8x128xf32>
    %283 = math.tanh %282 : vector<8x128xf32>
    %284 = vector.extract_strided_slice %265 {offsets = [0, 384], sizes = [8, 128], strides = [1, 1]} : vector<8x512xf32> to vector<8x128xf32>
    %cst_113 = arith.constant 5.000000e-01 : f32
    %285 = vector.broadcast %cst_113 : f32 to vector<8x128xf32>
    %286 = arith.mulf %285, %284 : vector<8x128xf32>
    %287 = math.tanh %286 : vector<8x128xf32>
    %cst_114 = arith.constant 5.000000e-01 : f32
    %288 = vector.broadcast %cst_114 : f32 to vector<8x128xf32>
    %289 = arith.mulf %288, %287 : vector<8x128xf32>
    %cst_115 = arith.constant 5.000000e-01 : f32
    %290 = vector.broadcast %cst_115 : f32 to vector<8x128xf32>
    %291 = arith.addf %289, %290 : vector<8x128xf32>
    %292 = arith.mulf %281, %253 : vector<8x128xf32>
    %293 = arith.mulf %273, %283 : vector<8x128xf32>
    %294 = arith.addf %292, %293 : vector<8x128xf32>
    %295 = math.tanh %294 : vector<8x128xf32>
    %296 = arith.mulf %291, %295 : vector<8x128xf32>
    %297 = arith.index_cast %259 : i32 to index
    %c0_116 = arith.constant 0 : index
    %298 = vector.load %arg6[%297, %c0_116] : memref<64x128xf32, #tpu.memory_space<vmem>>, vector<8x128xf32>
    tpu.vector_store %arg6[%297, %c0_116], %296 {strides = array<i32>} : memref<64x128xf32, #tpu.memory_space<vmem>>, vector<8x128xf32>,
    %c7_i32 = arith.constant 7 : i32
    %c8_i32_117 = arith.constant 8 : i32
    %299 = arith.muli %c7_i32, %c8_i32_117 : i32
    %300 = tpu.assume_multiple %299, 8 : i32
    %301 = arith.index_cast %300 : i32 to index
    %c0_118 = arith.constant 0 : index
    %302 = vector.load %arg10[%301, %c0_118] : memref<64x512xf32, #tpu.memory_space<vmem>>, vector<8x512xf32>
    %303 = arith.truncf %296 : vector<8x128xf32> to vector<8x128xbf16>
    %c0_119 = arith.constant 0 : index
    %c0_120 = arith.constant 0 : index
    %304 = vector.load %arg4[%c0_119, %c0_120] : memref<128x512xbf16, #tpu.memory_space<vmem>>, vector<128x512xbf16>
    %cst_121 = arith.constant dense<0.000000e+00> : vector<8x512xf32>
    %305 = tpu.matmul %303, %304, %cst_121 {dimension_numbers = #tpu.dot_dimension_numbers<[1], [0], [0], [1], [0, 0, 1, 1], [], []>} : vector<8x128xbf16>, vector<128x512xbf16>, vector<8x512xf32> -> vector<8x512xf32>
    %306 = arith.addf %302, %305 : vector<8x512xf32>
    %307 = vector.extract_strided_slice %306 {offsets = [0, 0], sizes = [8, 128], strides = [1, 1]} : vector<8x512xf32> to vector<8x128xf32>
    %cst_122 = arith.constant 5.000000e-01 : f32
    %308 = vector.broadcast %cst_122 : f32 to vector<8x128xf32>
    %309 = arith.mulf %308, %307 : vector<8x128xf32>
    %310 = math.tanh %309 : vector<8x128xf32>
    %cst_123 = arith.constant 5.000000e-01 : f32
    %311 = vector.broadcast %cst_123 : f32 to vector<8x128xf32>
    %312 = arith.mulf %311, %310 : vector<8x128xf32>
    %cst_124 = arith.constant 5.000000e-01 : f32
    %313 = vector.broadcast %cst_124 : f32 to vector<8x128xf32>
    %314 = arith.addf %312, %313 : vector<8x128xf32>
    %315 = vector.extract_strided_slice %306 {offsets = [0, 128], sizes = [8, 128], strides = [1, 1]} : vector<8x512xf32> to vector<8x128xf32>
    %cst_125 = arith.constant 5.000000e-01 : f32
    %316 = vector.broadcast %cst_125 : f32 to vector<8x128xf32>
    %317 = arith.mulf %316, %315 : vector<8x128xf32>
    %318 = math.tanh %317 : vector<8x128xf32>
    %cst_126 = arith.constant 5.000000e-01 : f32
    %319 = vector.broadcast %cst_126 : f32 to vector<8x128xf32>
    %320 = arith.mulf %319, %318 : vector<8x128xf32>
    %cst_127 = arith.constant 5.000000e-01 : f32
    %321 = vector.broadcast %cst_127 : f32 to vector<8x128xf32>
    %322 = arith.addf %320, %321 : vector<8x128xf32>
    %323 = vector.extract_strided_slice %306 {offsets = [0, 256], sizes = [8, 128], strides = [1, 1]} : vector<8x512xf32> to vector<8x128xf32>
    %324 = math.tanh %323 : vector<8x128xf32>
    %325 = vector.extract_strided_slice %306 {offsets = [0, 384], sizes = [8, 128], strides = [1, 1]} : vector<8x512xf32> to vector<8x128xf32>
    %cst_128 = arith.constant 5.000000e-01 : f32
    %326 = vector.broadcast %cst_128 : f32 to vector<8x128xf32>
    %327 = arith.mulf %326, %325 : vector<8x128xf32>
    %328 = math.tanh %327 : vector<8x128xf32>
    %cst_129 = arith.constant 5.000000e-01 : f32
    %329 = vector.broadcast %cst_129 : f32 to vector<8x128xf32>
    %330 = arith.mulf %329, %328 : vector<8x128xf32>
    %cst_130 = arith.constant 5.000000e-01 : f32
    %331 = vector.broadcast %cst_130 : f32 to vector<8x128xf32>
    %332 = arith.addf %330, %331 : vector<8x128xf32>
    %333 = arith.mulf %322, %294 : vector<8x128xf32>
    %334 = arith.mulf %314, %324 : vector<8x128xf32>
    %335 = arith.addf %333, %334 : vector<8x128xf32>
    %336 = math.tanh %335 : vector<8x128xf32>
    %337 = arith.mulf %332, %336 : vector<8x128xf32>
    %338 = arith.index_cast %300 : i32 to index
    %c0_131 = arith.constant 0 : index
    %339 = vector.load %arg6[%338, %c0_131] : memref<64x128xf32, #tpu.memory_space<vmem>>, vector<8x128xf32>
    tpu.vector_store %arg6[%338, %c0_131], %337 {strides = array<i32>} : memref<64x128xf32, #tpu.memory_space<vmem>>, vector<8x128xf32>,
    %c8_i32_132 = arith.constant 8 : i32
    %c0_133 = arith.constant 0 : index
    %c0_134 = arith.constant 0 : index
    %340 = vector.load %arg8[%c0_133, %c0_134] : memref<8x128xf32, #tpu.memory_space<vmem>>, vector<8x128xf32>
    tpu.vector_store %arg8[%c0_133, %c0_134], %337 {strides = array<i32>} : memref<8x128xf32, #tpu.memory_space<vmem>>, vector<8x128xf32>,
    %c0_135 = arith.constant 0 : index
    %c0_136 = arith.constant 0 : index
    %341 = vector.load %arg9[%c0_135, %c0_136] : memref<8x128xf32, #tpu.memory_space<vmem>>, vector<8x128xf32>
    tpu.vector_store %arg9[%c0_135, %c0_136], %335 {strides = array<i32>} : memref<8x128xf32, #tpu.memory_space<vmem>>, vector<8x128xf32>,
    %c0_137 = arith.constant 0 : index
    %c0_138 = arith.constant 0 : index
    %342 = vector.load %arg7[%c0_137, %c0_138] : memref<8x128xf32, #tpu.memory_space<vmem>>, vector<8x128xf32>
    tpu.vector_store %arg7[%c0_137, %c0_138], %335 {strides = array<i32>} : memref<8x128xf32, #tpu.memory_space<vmem>>, vector<8x128xf32>,
    return
  }
  func.func @transform_0(%arg0: i32, %arg1: i32) -> (i32, i32) {
    %c1_i32 = arith.constant 1 : i32
    %0 = arith.muli %arg0, %c1_i32 : i32
    %1 = arith.addi %0, %arg1 : i32
    %c0_i32 = arith.constant 0 : i32
    %c0_i32_0 = arith.constant 0 : i32
    return %1, %c0_i32 : i32, i32
  }
  func.func @transform_1(%arg0: i32, %arg1: i32) -> (i32, i32) {
    %c0_i32 = arith.constant 0 : i32
    %c0_i32_0 = arith.constant 0 : i32
    %c0_i32_1 = arith.constant 0 : i32
    return %c0_i32, %c0_i32_0 : i32, i32
  }
  func.func @transform_2(%arg0: i32, %arg1: i32) -> (i32, i32) {
    %c0_i32 = arith.constant 0 : i32
    %c0_i32_0 = arith.constant 0 : i32
    %c0_i32_1 = arith.constant 0 : i32
    return %c0_i32, %c0_i32_0 : i32, i32
  }
  func.func @transform_3(%arg0: i32, %arg1: i32) -> (i32, i32) {
    %c0_i32 = arith.constant 0 : i32
    %c0_i32_0 = arith.constant 0 : i32
    %c0_i32_1 = arith.constant 0 : i32
    return %c0_i32, %c0_i32_0 : i32, i32
  }
  func.func @transform_4(%arg0: i32, %arg1: i32) -> (i32, i32) {
    %c1_i32 = arith.constant 1 : i32
    %0 = arith.muli %arg0, %c1_i32 : i32
    %1 = arith.addi %0, %arg1 : i32
    %c0_i32 = arith.constant 0 : i32
    %c0_i32_0 = arith.constant 0 : i32
    return %1, %c0_i32 : i32, i32
  }
  func.func @transform_5(%arg0: i32, %arg1: i32) -> (i32, i32) {
    %c0_i32 = arith.constant 0 : i32
    %c0_i32_0 = arith.constant 0 : i32
    return %arg0, %c0_i32 : i32, i32
  }
}

</mosaic_0001>

<llo_original>
// kernel: tpu_custom_call.1
$region0: #{tpu_custom_call.1}
  #allocation0 [shape = 'u32[]', space=smem, size = 0x4, offset = 0x4, fixed_abs, tag = 'smem constant byte address 0x4 - core index']
  #allocation1 [shape = 'u32[144,128]{1,0:T(1,128)}', space=vmem, size = 0x12000, scoped, tag = 'internal scratch']
  #allocation2 [shape = 'f32[8,128]{1,0:T(8,128)}', space=vmem, size = 0x1000, scoped, tag = 'scratch operand']
  #allocation3 [shape = 'f32[8,128]{1,0:T(8,128)}', space=vmem, size = 0x1000, scoped, tag = 'scratch operand']
  #allocation4 [shape = 'f32[64,512]{1,0:T(8,128)}', space=vmem, size = 0x20000, scoped, tag = 'scratch operand']
  %s0 = inlined_call_operand.hbm [shape: bf16[64,128], index: 0, kind: input, shape index: {}]
  %s1 = inlined_call_operand.hbm [shape: bf16[128,512], index: 1, kind: input, shape index: {}]
  %s2 = inlined_call_operand.hbm [shape: bf16[128,512], index: 2, kind: input, shape index: {}]
  %s3 = inlined_call_operand.vmem [shape: f32[1,512], index: 3, kind: input, shape index: {}]
  %s4 = inlined_call_operand.hbm [shape: f32[64,128], index: 4, kind: output, shape index: {0}]
  %s5 = inlined_call_operand.hbm [shape: f32[8,128], index: 5, kind: output, shape index: {1}]
  %6 = xla_tuple %s4, %s5
  %s7 = sld [smem:[#allocation0]]
  $region50: #{tpu_custom_call.1} parent=0
    _
  %s9 = ssub.s32 1, %s7
  %s10 = scalar_select 0, %s9, %s7
  $region1: #{tpu_custom_call.1} parent=0
    #allocation5 [shape = 'u8[16384]{0}', space=vmem, size = 0x4000, scoped, tag = 'input window, operand 0, single buffered']
    #allocation6 [shape = 's32[1]{0}', space=sflag, size = 0x4, scoped, tag = 'scoped memory for tpu_custom_call.1']
    #allocation7 [shape = 's32[1]{0}', space=sflag, size = 0x4, scoped, tag = 'scoped memory for tpu_custom_call.1']
    #allocation8 [shape = 'u8[131072]{0}', space=vmem, size = 0x20000, scoped, tag = 'input window, operand 1, single buffered']
    #allocation9 [shape = 's32[1]{0}', space=sflag, size = 0x4, scoped, tag = 'scoped memory for tpu_custom_call.1']
    #allocation10 [shape = 'u8[131072]{0}', space=vmem, size = 0x20000, scoped, tag = 'input window, operand 2, single buffered']
    #allocation11 [shape = 'u8[32768]{0}', space=vmem, size = 0x8000, scoped, tag = 'output window, operand 0, single buffered']
    #allocation12 [shape = 'u8[4096]{0}', space=vmem, size = 0x1000, scoped, tag = 'output window, operand 1, single buffered']
    #allocation13 [shape = 's32[1]{0}', space=sflag, size = 0x4, scoped, tag = 'scoped memory for tpu_custom_call.1']
    %11 = vsyncpa [#allocation6], 0
    %12 = vsyncpa [#allocation9], 0
    %13 = vsyncpa [#allocation7], 0
    %14 = vsyncpa [#allocation13], 0
    // Predicated region
    $region2: #{tpu_custom_call.1} parent=1 // pred_check
      _
    $region3: #{tpu_custom_call.1} parent=1 // pred_check_branch
      %16 = sbr.rel (0) target = $region5
    $region4: #{tpu_custom_call.1} parent=1 // pred_region
      %s17 = sadd.s32 0, 0
      %s18 = smul.u32 8, %s17
      %s20 = ssub.s32 512, 512
      %21 = vsyncadd [#allocation6], %s20
      %s22 = smul.addr %s18, 64
      %s23 = scalar_lea.hbm %s0, %s22
      %s24 = sshll.u32 [#allocation5], 4
      %s25 = int_to_ptr.vmem [resolvable:$true] %s24
      %30 = dma.hbm_to_vmem [thread:$0]  %s23, 512, %s25, [#allocation6], 64, 64, 4
    $region5: #{tpu_custom_call.1} parent=1 // pred_fallthru
      _
    // Predicated region
    $region6: #{tpu_custom_call.1} parent=1 // pred_check
      _
    $region7: #{tpu_custom_call.1} parent=1 // pred_check_branch
      %32 = sbr.rel (0) target = $region9
    $region8: #{tpu_custom_call.1} parent=1 // pred_region
      %s34 = ssub.s32 4096, 4096
      %35 = vsyncadd [#allocation9], %s34
      %s36 = sshll.u32 [#allocation8], 4
      %s37 = int_to_ptr.vmem [resolvable:$true] %s36
      %42 = dma.hbm_to_vmem [thread:$0]  %s1, 4096, %s37, [#allocation9], 256, 256, 16
    $region9: #{tpu_custom_call.1} parent=1 // pred_fallthru
      _
    // Predicated region
    $region10: #{tpu_custom_call.1} parent=1 // pred_check
      _
    $region11: #{tpu_custom_call.1} parent=1 // pred_check_branch
      %44 = sbr.rel (0) target = $region13
    $region12: #{tpu_custom_call.1} parent=1 // pred_region
      %s46 = ssub.s32 4096, 4096
      %47 = vsyncadd [#allocation9], %s46
      %s48 = sshll.u32 [#allocation10], 4
      %s49 = int_to_ptr.vmem [resolvable:$true] %s48
      %54 = dma.hbm_to_vmem [thread:$0]  %s2, 4096, %s49, [#allocation9], 256, 256, 16
    $region13: #{tpu_custom_call.1} parent=1 // pred_fallthru
      _
    // Predicated region
    $region14: #{tpu_custom_call.1} parent=1 // pred_check
      _
    $region15: #{tpu_custom_call.1} parent=1 // pred_check_branch
      %56 = sbr.rel (0) target = $region17
    $region16: #{tpu_custom_call.1} parent=1 // pred_region
      _
    $region17: #{tpu_custom_call.1} parent=1 // pred_fallthru
      _
    // Predicated region
    $region18: #{tpu_custom_call.1} parent=1 // pred_check
      _
    $region19: #{tpu_custom_call.1} parent=1 // pred_check_branch
      %58 = sbr.rel (0) target = $region21
    $region20: #{tpu_custom_call.1} parent=1 // pred_region
      %59 = dma.done [#allocation6], 512
    $region21: #{tpu_custom_call.1} parent=1 // pred_fallthru
      _
    // Predicated region
    $region22: #{tpu_custom_call.1} parent=1 // pred_check
      _
    $region23: #{tpu_custom_call.1} parent=1 // pred_check_branch
      %61 = sbr.rel (0) target = $region25
    $region24: #{tpu_custom_call.1} parent=1 // pred_region
      %62 = dma.done [#allocation9], 4096
    $region25: #{tpu_custom_call.1} parent=1 // pred_fallthru
      _
    // Predicated region
    $region26: #{tpu_custom_call.1} parent=1 // pred_check
      _
    $region27: #{tpu_custom_call.1} parent=1 // pred_check_branch
      %64 = sbr.rel (0) target = $region29
    $region28: #{tpu_custom_call.1} parent=1 // pred_region
      %65 = dma.done [#allocation9], 4096
    $region29: #{tpu_custom_call.1} parent=1 // pred_fallthru
      _
    %s66 = sadd.s32 0, 0
    %s67 = smul.u32 8, %s66
    %s68 = sadd.s32 0, 0
    %s69 = smul.u32 8, %s68
    %p71 = scmp.eq.s32.totalorder 0, 0
    // Predicated region
    $region30: #{tpu_custom_call.1} parent=1 // pred_check
      %p72 = pneg %p71
    $region31: #{tpu_custom_call.1} parent=1 // pred_check_branch
      %74 = sbr.rel (%p72) target = $region33
    $region32: #{tpu_custom_call.1} parent=1 // pred_region
      %75 = vst [vmem:[#allocation2] sm:$0xff] 0.0
      %76 = vst [vmem:[#allocation3] sm:$0xff] 0.0
    $region33: #{tpu_custom_call.1} parent=1 // pred_fallthru
      _
    %v77 = vld [vmem:[#allocation5] sm:$0xf]
    %v78 = vld [vmem:[#allocation5 + $0x4] sm:$0xf]
    %v79 = vld [vmem:[#allocation5 + $0x8] sm:$0xf]
    %v80 = vld [vmem:[#allocation5 + $0xc] sm:$0xf]
    %v81 = vld [vmem:[#allocation5 + $0x10] sm:$0xf]
    %v82 = vld [vmem:[#allocation5 + $0x14] sm:$0xf]
    %v83 = vld [vmem:[#allocation5 + $0x18] sm:$0xf]
    %v84 = vld [vmem:[#allocation5 + $0x1c] sm:$0xf]
    %v85 = vld [vmem:[#allocation8] sm:$0xff]
    %v86 = vld [vmem:[#allocation8 + $0x8] sm:$0xff]
    %v87 = vld [vmem:[#allocation8 + $0x10] sm:$0xff]
    %v88 = vld [vmem:[#allocation8 + $0x18] sm:$0xff]
    %v89 = vld [vmem:[#allocation8 + $0x20] sm:$0xff]
    %v90 = vld [vmem:[#allocation8 + $0x28] sm:$0xff]
    %v91 = vld [vmem:[#allocation8 + $0x30] sm:$0xff]
    %v92 = vld [vmem:[#allocation8 + $0x38] sm:$0xff]
    %v93 = vld [vmem:[#allocation8 + $0x40] sm:$0xff]
    %v94 = vld [vmem:[#allocation8 + $0x48] sm:$0xff]
    %v95 = vld [vmem:[#allocation8 + $0x50] sm:$0xff]
    %v96 = vld [vmem:[#allocation8 + $0x58] sm:$0xff]
    %v97 = vld [vmem:[#allocation8 + $0x60] sm:$0xff]
    %v98 = vld [vmem:[#allocation8 + $0x68] sm:$0xff]
    %v99 = vld [vmem:[#allocation8 + $0x70] sm:$0xff]
    %v100 = vld [vmem:[#allocation8 + $0x78] sm:$0xff]
    %v101 = vld [vmem:[#allocation8 + $0x80] sm:$0xff]
    %v102 = vld [vmem:[#allocation8 + $0x88] sm:$0xff]
    %v103 = vld [vmem:[#allocation8 + $0x90] sm:$0xff]
    %v104 = vld [vmem:[#allocation8 + $0x98] sm:$0xff]
    %v105 = vld [vmem:[#allocation8 + $0xa0] sm:$0xff]
    %v106 = vld [vmem:[#allocation8 + $0xa8] sm:$0xff]
    %v107 = vld [vmem:[#allocation8 + $0xb0] sm:$0xff]
    %v108 = vld [vmem:[#allocation8 + $0xb8] sm:$0xff]
    %v109 = vld [vmem:[#allocation8 + $0xc0] sm:$0xff]
    %v110 = vld [vmem:[#allocation8 + $0xc8] sm:$0xff]
    %v111 = vld [vmem:[#allocation8 + $0xd0] sm:$0xff]
    %v112 = vld [vmem:[#allocation8 + $0xd8] sm:$0xff]
    %v113 = vld [vmem:[#allocation8 + $0xe0] sm:$0xff]
    %v114 = vld [vmem:[#allocation8 + $0xe8] sm:$0xff]
    %v115 = vld [vmem:[#allocation8 + $0xf0] sm:$0xff]
    %v116 = vld [vmem:[#allocation8 + $0xf8] sm:$0xff]
    %v117 = vld [vmem:[%s3] sm:$0xf]
    %v119 = vlaneseq
    %v120 = vshrl.u32 %v119, 7
    %v121 = vsub.s32 0, %v120
    %v122 = vrot.slane %v117, %v121
    %v123 = vlaneseq
    %v124 = vshrl.u32 %v123, 7
    %v125 = vsub.s32 1, %v124
    %v126 = vrot.slane %v117, %v125
    %v127 = vlaneseq
    %v128 = vshrl.u32 %v127, 7
    %v129 = vsub.s32 2, %v128
    %v130 = vrot.slane %v117, %v129
    %v131 = vlaneseq
    %v132 = vshrl.u32 %v131, 7
    %v133 = vsub.s32 3, %v132
    %v134 = vrot.slane %v117, %v133
    %v147 = vunpack.c.l.b16 %v77
    %v148 = vunpack.c.l.b16 %v78
    %v149 = vunpack.c.l.b16 %v79
    %v150 = vunpack.c.l.b16 %v80
    %v151 = vunpack.c.l.b16 %v81
    %v152 = vunpack.c.l.b16 %v82
    %v153 = vunpack.c.l.b16 %v83
    %v154 = vunpack.c.l.b16 %v84
    %v155 = vpack.c.b16 %v148, %v147
    %v156 = vpack.c.b16 %v150, %v149
    %v157 = vpack.c.b16 %v152, %v151
    %v158 = vpack.c.b16 %v154, %v153
    %v195 = vunpack.c.l.b16 %v85
    %v196 = vunpack.c.h.b16 %v85
    %v197 = vunpack.c.l.b16 %v86
    %v198 = vunpack.c.h.b16 %v86
    %v199 = vunpack.c.l.b16 %v87
    %v200 = vunpack.c.h.b16 %v87
    %v201 = vunpack.c.l.b16 %v88
    %v202 = vunpack.c.h.b16 %v88
    %v203 = vunpack.c.l.b16 %v89
    %v204 = vunpack.c.h.b16 %v89
    %v205 = vunpack.c.l.b16 %v90
    %v206 = vunpack.c.h.b16 %v90
    %v207 = vunpack.c.l.b16 %v91
    %v208 = vunpack.c.h.b16 %v91
    %v209 = vunpack.c.l.b16 %v92
    %v210 = vunpack.c.h.b16 %v92
    %v211 = vunpack.c.l.b16 %v93
    %v212 = vunpack.c.h.b16 %v93
    %v213 = vunpack.c.l.b16 %v94
    %v214 = vunpack.c.h.b16 %v94
    %v215 = vunpack.c.l.b16 %v95
    %v216 = vunpack.c.h.b16 %v95
    %v217 = vunpack.c.l.b16 %v96
    %v218 = vunpack.c.h.b16 %v96
    %v219 = vunpack.c.l.b16 %v97
    %v220 = vunpack.c.h.b16 %v97
    %v221 = vunpack.c.l.b16 %v98
    %v222 = vunpack.c.h.b16 %v98
    %v223 = vunpack.c.l.b16 %v99
    %v224 = vunpack.c.h.b16 %v99
    %v225 = vunpack.c.l.b16 %v100
    %v226 = vunpack.c.h.b16 %v100
    %v227 = vunpack.c.l.b16 %v101
    %v228 = vunpack.c.h.b16 %v101
    %v229 = vunpack.c.l.b16 %v102
    %v230 = vunpack.c.h.b16 %v102
    %v231 = vunpack.c.l.b16 %v103
    %v232 = vunpack.c.h.b16 %v103
    %v233 = vunpack.c.l.b16 %v104
    %v234 = vunpack.c.h.b16 %v104
    %v235 = vunpack.c.l.b16 %v105
    %v236 = vunpack.c.h.b16 %v105
    %v237 = vunpack.c.l.b16 %v106
    %v238 = vunpack.c.h.b16 %v106
    %v239 = vunpack.c.l.b16 %v107
    %v240 = vunpack.c.h.b16 %v107
    %v241 = vunpack.c.l.b16 %v108
    %v242 = vunpack.c.h.b16 %v108
    %v243 = vunpack.c.l.b16 %v109
    %v244 = vunpack.c.h.b16 %v109
    %v245 = vunpack.c.l.b16 %v110
    %v246 = vunpack.c.h.b16 %v110
    %v247 = vunpack.c.l.b16 %v111
    %v248 = vunpack.c.h.b16 %v111
    %v249 = vunpack.c.l.b16 %v112
    %v250 = vunpack.c.h.b16 %v112
    %v251 = vunpack.c.l.b16 %v113
    %v252 = vunpack.c.h.b16 %v113
    %v253 = vunpack.c.l.b16 %v114
    %v254 = vunpack.c.h.b16 %v114
    %v255 = vunpack.c.l.b16 %v115
    %v256 = vunpack.c.h.b16 %v115
    %v257 = vunpack.c.l.b16 %v116
    %v258 = vunpack.c.h.b16 %v116
    %v259 = vpack.c.b16 %v199, %v195
    %v260 = vpack.c.b16 %v200, %v196
    %v261 = vpack.c.b16 %v201, %v197
    %v262 = vpack.c.b16 %v202, %v198
    %v263 = vpack.c.b16 %v207, %v203
    %v264 = vpack.c.b16 %v208, %v204
    %v265 = vpack.c.b16 %v209, %v205
    %v266 = vpack.c.b16 %v210, %v206
    %v267 = vpack.c.b16 %v215, %v211
    %v268 = vpack.c.b16 %v216, %v212
    %v269 = vpack.c.b16 %v217, %v213
    %v270 = vpack.c.b16 %v218, %v214
    %v271 = vpack.c.b16 %v223, %v219
    %v272 = vpack.c.b16 %v224, %v220
    %v273 = vpack.c.b16 %v225, %v221
    %v274 = vpack.c.b16 %v226, %v222
    %v275 = vpack.c.b16 %v231, %v227
    %v276 = vpack.c.b16 %v232, %v228
    %v277 = vpack.c.b16 %v233, %v229
    %v278 = vpack.c.b16 %v234, %v230
    %v279 = vpack.c.b16 %v239, %v235
    %v280 = vpack.c.b16 %v240, %v236
    %v281 = vpack.c.b16 %v241, %v237
    %v282 = vpack.c.b16 %v242, %v238
    %v283 = vpack.c.b16 %v247, %v243
    %v284 = vpack.c.b16 %v248, %v244
    %v285 = vpack.c.b16 %v249, %v245
    %v286 = vpack.c.b16 %v250, %v246
    %v287 = vpack.c.b16 %v255, %v251
    %v288 = vpack.c.b16 %v256, %v252
    %v289 = vpack.c.b16 %v257, %v253
    %v290 = vpack.c.b16 %v258, %v254
    %323 = vmatprep.subr.bf16.mxu0 %v260
    %324 = vmatpush1.bf16.msra.mxu0 %v259
    %325 = vmatprep.subr.bf16.mxu0 %v264
    %326 = vmatpush1.bf16.msra.mxu0 %v263
    %327 = vmatprep.subr.bf16.mxu0 %v268
    %328 = vmatpush1.bf16.msra.mxu0 %v267
    %329 = vmatprep.subr.bf16.mxu0 %v272
    %330 = vmatpush1.bf16.msra.mxu0 %v271
    %331 = vmatprep.subr.bf16.mxu0 %v276
    %332 = vmatpush1.bf16.msra.mxu0 %v275
    %333 = vmatprep.subr.bf16.mxu0 %v280
    %334 = vmatpush1.bf16.msra.mxu0 %v279
    %335 = vmatprep.subr.bf16.mxu0 %v284
    %336 = vmatpush1.bf16.msra.mxu0 %v283
    %337 = vmatprep.subr.bf16.mxu0 %v288
    %338 = vmatpush1.bf16.msra.mxu0 %v287
    %339 = vmatprep.subr.bf16.mxu0 0
    %340 = vmatpush1.bf16.msra.mxu0 0
    %341 = vmatprep.subr.bf16.mxu0 0
    %342 = vmatpush1.bf16.msra.mxu0 0
    %343 = vmatprep.subr.bf16.mxu0 0
    %344 = vmatpush1.bf16.msra.mxu0 0
    %345 = vmatprep.subr.bf16.mxu0 0
    %346 = vmatpush1.bf16.msra.mxu0 0
    %347 = vmatprep.subr.bf16.mxu0 0
    %348 = vmatpush1.bf16.msra.mxu0 0
    %349 = vmatprep.subr.bf16.mxu0 0
    %350 = vmatpush1.bf16.msra.mxu0 0
    %351 = vmatprep.subr.bf16.mxu0 0
    %352 = vmatpush1.bf16.msra.mxu0 0
    %353 = vmatprep.subr.bf16.mxu0 0
    %354 = vmatpush1.bf16.msra.mxu0 0
    %355 = vmatprep.mubr.bf16.mxu0 0
    %356 = vmatmul.mubr.bf16.gmra.mrb[0].mxu0 %v155
    %v357 = vpop.f32.mrb[0].mxu0
    %v358 = vadd.f32 %v122, %v357
    %v359 = vpop.f32.mrb[0].mxu0
    %v360 = vadd.f32 %v126, %v359
    %v361 = vpop.f32.mrb[0].mxu0
    %v362 = vadd.f32 %v122, %v361
    %v363 = vpop.f32.mrb[0].mxu0
    %v364 = vadd.f32 %v126, %v363
    %365 = vmatprep.mubr.bf16.mxu0 0
    %366 = vmatmul.mubr.bf16.gmra.mrb[0].mxu0 %v156
    %v367 = vpop.f32.mrb[0].mxu0
    %v368 = vadd.f32 %v122, %v367
    %v369 = vpop.f32.mrb[0].mxu0
    %v370 = vadd.f32 %v126, %v369
    %v371 = vpop.f32.mrb[0].mxu0
    %v372 = vadd.f32 %v122, %v371
    %v373 = vpop.f32.mrb[0].mxu0
    %v374 = vadd.f32 %v126, %v373
    %375 = vmatprep.mubr.bf16.mxu0 0
    %376 = vmatmul.mubr.bf16.gmra.mrb[0].mxu0 %v157
    %v377 = vpop.f32.mrb[0].mxu0
    %v378 = vadd.f32 %v122, %v377
    %v379 = vpop.f32.mrb[0].mxu0
    %v380 = vadd.f32 %v126, %v379
    %v381 = vpop.f32.mrb[0].mxu0
    %v382 = vadd.f32 %v122, %v381
    %v383 = vpop.f32.mrb[0].mxu0
    %v384 = vadd.f32 %v126, %v383
    %385 = vmatprep.mubr.bf16.mxu0 0
    %386 = vmatmul.mubr.bf16.gmra.mrb[0].mxu0 %v158
    %v387 = vpop.f32.mrb[0].mxu0
    %v388 = vadd.f32 %v122, %v387
    %v389 = vpop.f32.mrb[0].mxu0
    %v390 = vadd.f32 %v126, %v389
    %v391 = vpop.f32.mrb[0].mxu0
    %v392 = vadd.f32 %v122, %v391
    %v393 = vpop.f32.mrb[0].mxu0
    %v394 = vadd.f32 %v126, %v393
    %395 = vdwg.mxu0
    %396 = vmatprep.subr.bf16.mxu0 %v262
    %397 = vmatpush1.bf16.msra.mxu0 %v261
    %398 = vmatprep.subr.bf16.mxu0 %v266
    %399 = vmatpush1.bf16.msra.mxu0 %v265
    %400 = vmatprep.subr.bf16.mxu0 %v270
    %401 = vmatpush1.bf16.msra.mxu0 %v269
    %402 = vmatprep.subr.bf16.mxu0 %v274
    %403 = vmatpush1.bf16.msra.mxu0 %v273
    %404 = vmatprep.subr.bf16.mxu0 %v278
    %405 = vmatpush1.bf16.msra.mxu0 %v277
    %406 = vmatprep.subr.bf16.mxu0 %v282
    %407 = vmatpush1.bf16.msra.mxu0 %v281
    %408 = vmatprep.subr.bf16.mxu0 %v286
    %409 = vmatpush1.bf16.msra.mxu0 %v285
    %410 = vmatprep.subr.bf16.mxu0 %v290
    %411 = vmatpush1.bf16.msra.mxu0 %v289
    %412 = vmatprep.subr.bf16.mxu0 0
    %413 = vmatpush1.bf16.msra.mxu0 0
    %414 = vmatprep.subr.bf16.mxu0 0
    %415 = vmatpush1.bf16.msra.mxu0 0
    %416 = vmatprep.subr.bf16.mxu0 0
    %417 = vmatpush1.bf16.msra.mxu0 0
    %418 = vmatprep.subr.bf16.mxu0 0
    %419 = vmatpush1.bf16.msra.mxu0 0
    %420 = vmatprep.subr.bf16.mxu0 0
    %421 = vmatpush1.bf16.msra.mxu0 0
    %422 = vmatprep.subr.bf16.mxu0 0
    %423 = vmatpush1.bf16.msra.mxu0 0
    %424 = vmatprep.subr.bf16.mxu0 0
    %425 = vmatpush1.bf16.msra.mxu0 0
    %426 = vmatprep.subr.bf16.mxu0 0
    %427 = vmatpush1.bf16.msra.mxu0 0
    %428 = vmatprep.mubr.bf16.mxu0 0
    %429 = vmatmul.mubr.bf16.gmra.mrb[0].mxu0 %v155
    %v430 = vpop.f32.mrb[0].mxu0
    %v431 = vadd.f32 %v130, %v430
    %v432 = vpop.f32.mrb[0].mxu0
    %v433 = vadd.f32 %v134, %v432
    %v434 = vpop.f32.mrb[0].mxu0
    %v435 = vadd.f32 %v130, %v434
    %v436 = vpop.f32.mrb[0].mxu0
    %v437 = vadd.f32 %v134, %v436
    %438 = vmatprep.mubr.bf16.mxu0 0
    %439 = vmatmul.mubr.bf16.gmra.mrb[0].mxu0 %v156
    %v440 = vpop.f32.mrb[0].mxu0
    %v441 = vadd.f32 %v130, %v440
    %v442 = vpop.f32.mrb[0].mxu0
    %v443 = vadd.f32 %v134, %v442
    %v444 = vpop.f32.mrb[0].mxu0
    %v445 = vadd.f32 %v130, %v444
    %v446 = vpop.f32.mrb[0].mxu0
    %v447 = vadd.f32 %v134, %v446
    %448 = vmatprep.mubr.bf16.mxu0 0
    %449 = vmatmul.mubr.bf16.gmra.mrb[0].mxu0 %v157
    %v450 = vpop.f32.mrb[0].mxu0
    %v451 = vadd.f32 %v130, %v450
    %v452 = vpop.f32.mrb[0].mxu0
    %v453 = vadd.f32 %v134, %v452
    %v454 = vpop.f32.mrb[0].mxu0
    %v455 = vadd.f32 %v130, %v454
    %v456 = vpop.f32.mrb[0].mxu0
    %v457 = vadd.f32 %v134, %v456
    %458 = vmatprep.mubr.bf16.mxu0 0
    %459 = vmatmul.mubr.bf16.gmra.mrb[0].mxu0 %v158
    %v460 = vpop.f32.mrb[0].mxu0
    %v461 = vadd.f32 %v130, %v460
    %v462 = vpop.f32.mrb[0].mxu0
    %v463 = vadd.f32 %v134, %v462
    %v464 = vpop.f32.mrb[0].mxu0
    %v465 = vadd.f32 %v130, %v464
    %v466 = vpop.f32.mrb[0].mxu0
    %v467 = vadd.f32 %v134, %v466
    %468 = vdwg.mxu0
    %469 = vst [vmem:[#allocation4] sm:$0xff] %v358
    %470 = vst [vmem:[#allocation4 + $0x8] sm:$0xff] %v360
    %471 = vst [vmem:[#allocation4 + $0x10] sm:$0xff] %v431
    %472 = vst [vmem:[#allocation4 + $0x18] sm:$0xff] %v433
    %473 = vst [vmem:[#allocation4 + $0x20] sm:$0xff] %v362
    %474 = vst [vmem:[#allocation4 + $0x28] sm:$0xff] %v364
    %475 = vst [vmem:[#allocation4 + $0x30] sm:$0xff] %v435
    %476 = vst [vmem:[#allocation4 + $0x38] sm:$0xff] %v437
    %477 = vst [vmem:[#allocation4 + $0x40] sm:$0xff] %v368
    %478 = vst [vmem:[#allocation4 + $0x48] sm:$0xff] %v370
    %479 = vst [vmem:[#allocation4 + $0x50] sm:$0xff] %v441
    %480 = vst [vmem:[#allocation4 + $0x58] sm:$0xff] %v443
    %481 = vst [vmem:[#allocation4 + $0x60] sm:$0xff] %v372
    %482 = vst [vmem:[#allocation4 + $0x68] sm:$0xff] %v374
    %483 = vst [vmem:[#allocation4 + $0x70] sm:$0xff] %v445
    %484 = vst [vmem:[#allocation4 + $0x78] sm:$0xff] %v447
    %485 = vst [vmem:[#allocation4 + $0x80] sm:$0xff] %v378
    %486 = vst [vmem:[#allocation4 + $0x88] sm:$0xff] %v380
    %487 = vst [vmem:[#allocation4 + $0x90] sm:$0xff] %v451
    %488 = vst [vmem:[#allocation4 + $0x98] sm:$0xff] %v453
    %489 = vst [vmem:[#allocation4 + $0xa0] sm:$0xff] %v382
    %490 = vst [vmem:[#allocation4 + $0xa8] sm:$0xff] %v384
    %491 = vst [vmem:[#allocation4 + $0xb0] sm:$0xff] %v455
    %492 = vst [vmem:[#allocation4 + $0xb8] sm:$0xff] %v457
    %493 = vst [vmem:[#allocation4 + $0xc0] sm:$0xff] %v388
    %494 = vst [vmem:[#allocation4 + $0xc8] sm:$0xff] %v390
    %495 = vst [vmem:[#allocation4 + $0xd0] sm:$0xff] %v461
    %496 = vst [vmem:[#allocation4 + $0xd8] sm:$0xff] %v463
    %497 = vst [vmem:[#allocation4 + $0xe0] sm:$0xff] %v392
    %498 = vst [vmem:[#allocation4 + $0xe8] sm:$0xff] %v394
    %499 = vst [vmem:[#allocation4 + $0xf0] sm:$0xff] %v465
    %500 = vst [vmem:[#allocation4 + $0xf8] sm:$0xff] %v467
    %v501 = vld [vmem:[#allocation2] sm:$0xff]
    %v502 = vld [vmem:[#allocation3] sm:$0xff]
    %s503 = smul.u32 0, 4
    %s504 = smul.addr %s503, 8
    %s505 = scalar_lea.vmem [#allocation4], %s504
    %v506 = vld [vmem:[%s505] sm:$0xff]
    %v507 = vld [vmem:[%s505 + $0x8] sm:$0xff]
    %v508 = vld [vmem:[%s505 + $0x10] sm:$0xff]
    %v509 = vld [vmem:[%s505 + $0x18] sm:$0xff]
    %v510 = vpack.c.bf16 %v501, %v501
    %v511 = vld [vmem:[#allocation10] sm:$0xff]
    %v512 = vld [vmem:[#allocation10 + $0x8] sm:$0xff]
    %v513 = vld [vmem:[#allocation10 + $0x10] sm:$0xff]
    %v514 = vld [vmem:[#allocation10 + $0x18] sm:$0xff]
    %v515 = vld [vmem:[#allocation10 + $0x20] sm:$0xff]
    %v516 = vld [vmem:[#allocation10 + $0x28] sm:$0xff]
    %v517 = vld [vmem:[#allocation10 + $0x30] sm:$0xff]
    %v518 = vld [vmem:[#allocation10 + $0x38] sm:$0xff]
    %v519 = vld [vmem:[#allocation10 + $0x40] sm:$0xff]
    %v520 = vld [vmem:[#allocation10 + $0x48] sm:$0xff]
    %v521 = vld [vmem:[#allocation10 + $0x50] sm:$0xff]
    %v522 = vld [vmem:[#allocation10 + $0x58] sm:$0xff]
    %v523 = vld [vmem:[#allocation10 + $0x60] sm:$0xff]
    %v524 = vld [vmem:[#allocation10 + $0x68] sm:$0xff]
    %v525 = vld [vmem:[#allocation10 + $0x70] sm:$0xff]
    %v526 = vld [vmem:[#allocation10 + $0x78] sm:$0xff]
    %v527 = vld [vmem:[#allocation10 + $0x80] sm:$0xff]
    %v528 = vld [vmem:[#allocation10 + $0x88] sm:$0xff]
    %v529 = vld [vmem:[#allocation10 + $0x90] sm:$0xff]
    %v530 = vld [vmem:[#allocation10 + $0x98] sm:$0xff]
    %v531 = vld [vmem:[#allocation10 + $0xa0] sm:$0xff]
    %v532 = vld [vmem:[#allocation10 + $0xa8] sm:$0xff]
    %v533 = vld [vmem:[#allocation10 + $0xb0] sm:$0xff]
    %v534 = vld [vmem:[#allocation10 + $0xb8] sm:$0xff]
    %v535 = vld [vmem:[#allocation10 + $0xc0] sm:$0xff]
    %v536 = vld [vmem:[#allocation10 + $0xc8] sm:$0xff]
    %v537 = vld [vmem:[#allocation10 + $0xd0] sm:$0xff]
    %v538 = vld [vmem:[#allocation10 + $0xd8] sm:$0xff]
    %v539 = vld [vmem:[#allocation10 + $0xe0] sm:$0xff]
    %v540 = vld [vmem:[#allocation10 + $0xe8] sm:$0xff]
    %v541 = vld [vmem:[#allocation10 + $0xf0] sm:$0xff]
    %v542 = vld [vmem:[#allocation10 + $0xf8] sm:$0xff]
    %v575 = vunpack.c.l.b16 %v511
    %v576 = vunpack.c.h.b16 %v511
    %v577 = vunpack.c.l.b16 %v512
    %v578 = vunpack.c.h.b16 %v512
    %v579 = vunpack.c.l.b16 %v513
    %v580 = vunpack.c.h.b16 %v513
    %v581 = vunpack.c.l.b16 %v514
    %v582 = vunpack.c.h.b16 %v514
    %v583 = vunpack.c.l.b16 %v515
    %v584 = vunpack.c.h.b16 %v515
    %v585 = vunpack.c.l.b16 %v516
    %v586 = vunpack.c.h.b16 %v516
    %v587 = vunpack.c.l.b16 %v517
    %v588 = vunpack.c.h.b16 %v517
    %v589 = vunpack.c.l.b16 %v518
    %v590 = vunpack.c.h.b16 %v518
    %v591 = vunpack.c.l.b16 %v519
    %v592 = vunpack.c.h.b16 %v519
    %v593 = vunpack.c.l.b16 %v520
    %v594 = vunpack.c.h.b16 %v520
    %v595 = vunpack.c.l.b16 %v521
    %v596 = vunpack.c.h.b16 %v521
    %v597 = vunpack.c.l.b16 %v522
    %v598 = vunpack.c.h.b16 %v522
    %v599 = vunpack.c.l.b16 %v523
    %v600 = vunpack.c.h.b16 %v523
    %v601 = vunpack.c.l.b16 %v524
    %v602 = vunpack.c.h.b16 %v524
    %v603 = vunpack.c.l.b16 %v525
    %v604 = vunpack.c.h.b16 %v525
    %v605 = vunpack.c.l.b16 %v526
    %v606 = vunpack.c.h.b16 %v526
    %v607 = vunpack.c.l.b16 %v527
    %v608 = vunpack.c.h.b16 %v527
    %v609 = vunpack.c.l.b16 %v528
    %v610 = vunpack.c.h.b16 %v528
    %v611 = vunpack.c.l.b16 %v529
    %v612 = vunpack.c.h.b16 %v529
    %v613 = vunpack.c.l.b16 %v530
    %v614 = vunpack.c.h.b16 %v530
    %v615 = vunpack.c.l.b16 %v531
    %v616 = vunpack.c.h.b16 %v531
    %v617 = vunpack.c.l.b16 %v532
    %v618 = vunpack.c.h.b16 %v532
    %v619 = vunpack.c.l.b16 %v533
    %v620 = vunpack.c.h.b16 %v533
    %v621 = vunpack.c.l.b16 %v534
    %v622 = vunpack.c.h.b16 %v534
    %v623 = vunpack.c.l.b16 %v535
    %v624 = vunpack.c.h.b16 %v535
    %v625 = vunpack.c.l.b16 %v536
    %v626 = vunpack.c.h.b16 %v536
    %v627 = vunpack.c.l.b16 %v537
    %v628 = vunpack.c.h.b16 %v537
    %v629 = vunpack.c.l.b16 %v538
    %v630 = vunpack.c.h.b16 %v538
    %v631 = vunpack.c.l.b16 %v539
    %v632 = vunpack.c.h.b16 %v539
    %v633 = vunpack.c.l.b16 %v540
    %v634 = vunpack.c.h.b16 %v540
    %v635 = vunpack.c.l.b16 %v541
    %v636 = vunpack.c.h.b16 %v541
    %v637 = vunpack.c.l.b16 %v542
    %v638 = vunpack.c.h.b16 %v542
    %v639 = vpack.c.b16 %v579, %v575
    %v640 = vpack.c.b16 %v580, %v576
    %v641 = vpack.c.b16 %v581, %v577
    %v642 = vpack.c.b16 %v582, %v578
    %v643 = vpack.c.b16 %v587, %v583
    %v644 = vpack.c.b16 %v588, %v584
    %v645 = vpack.c.b16 %v589, %v585
    %v646 = vpack.c.b16 %v590, %v586
    %v647 = vpack.c.b16 %v595, %v591
    %v648 = vpack.c.b16 %v596, %v592
    %v649 = vpack.c.b16 %v597, %v593
    %v650 = vpack.c.b16 %v598, %v594
    %v651 = vpack.c.b16 %v603, %v599
    %v652 = vpack.c.b16 %v604, %v600
    %v653 = vpack.c.b16 %v605, %v601
    %v654 = vpack.c.b16 %v606, %v602
    %v655 = vpack.c.b16 %v611, %v607
    %v656 = vpack.c.b16 %v612, %v608
    %v657 = vpack.c.b16 %v613, %v609
    %v658 = vpack.c.b16 %v614, %v610
    %v659 = vpack.c.b16 %v619, %v615
    %v660 = vpack.c.b16 %v620, %v616
    %v661 = vpack.c.b16 %v621, %v617
    %v662 = vpack.c.b16 %v622, %v618
    %v663 = vpack.c.b16 %v627, %v623
    %v664 = vpack.c.b16 %v628, %v624
    %v665 = vpack.c.b16 %v629, %v625
    %v666 = vpack.c.b16 %v630, %v626
    %v667 = vpack.c.b16 %v635, %v631
    %v668 = vpack.c.b16 %v636, %v632
    %v669 = vpack.c.b16 %v637, %v633
    %v670 = vpack.c.b16 %v638, %v634
    %703 = vmatprep.subr.bf16.mxu0 %v640
    %704 = vmatpush1.bf16.msra.mxu0 %v639
    %705 = vmatprep.subr.bf16.mxu0 %v644
    %706 = vmatpush1.bf16.msra.mxu0 %v643
    %707 = vmatprep.subr.bf16.mxu0 %v648
    %708 = vmatpush1.bf16.msra.mxu0 %v647
    %709 = vmatprep.subr.bf16.mxu0 %v652
    %710 = vmatpush1.bf16.msra.mxu0 %v651
    %711 = vmatprep.subr.bf16.mxu0 %v656
    %712 = vmatpush1.bf16.msra.mxu0 %v655
    %713 = vmatprep.subr.bf16.mxu0 %v660
    %714 = vmatpush1.bf16.msra.mxu0 %v659
    %715 = vmatprep.subr.bf16.mxu0 %v664
    %716 = vmatpush1.bf16.msra.mxu0 %v663
    %717 = vmatprep.subr.bf16.mxu0 %v668
    %718 = vmatpush1.bf16.msra.mxu0 %v667
    %719 = vmatprep.subr.bf16.mxu0 0
    %720 = vmatpush1.bf16.msra.mxu0 0
    %721 = vmatprep.subr.bf16.mxu0 0
    %722 = vmatpush1.bf16.msra.mxu0 0
    %723 = vmatprep.subr.bf16.mxu0 0
    %724 = vmatpush1.bf16.msra.mxu0 0
    %725 = vmatprep.subr.bf16.mxu0 0
    %726 = vmatpush1.bf16.msra.mxu0 0
    %727 = vmatprep.subr.bf16.mxu0 0
    %728 = vmatpush1.bf16.msra.mxu0 0
    %729 = vmatprep.subr.bf16.mxu0 0
    %730 = vmatpush1.bf16.msra.mxu0 0
    %731 = vmatprep.subr.bf16.mxu0 0
    %732 = vmatpush1.bf16.msra.mxu0 0
    %733 = vmatprep.subr.bf16.mxu0 0
    %734 = vmatpush1.bf16.msra.mxu0 0
    %735 = vmatprep.mubr.bf16.mxu0 0
    %736 = vmatmul.mubr.bf16.gmra.mrb[0].mxu0 %v510
    %v737 = vpop.f32.mrb[0].mxu0
    %v738 = vadd.f32 0.0, %v737
    %v739 = vpop.f32.mrb[0].mxu0
    %v740 = vadd.f32 0.0, %v739
    %v741 = vpop.f32.mrb[0].mxu0
    %v742 = vpop.f32.mrb[0].mxu0
    %743 = vdwg.mxu0
    %744 = vmatprep.subr.bf16.mxu0 %v642
    %745 = vmatpush1.bf16.msra.mxu0 %v641
    %746 = vmatprep.subr.bf16.mxu0 %v646
    %747 = vmatpush1.bf16.msra.mxu0 %v645
    %748 = vmatprep.subr.bf16.mxu0 %v650
    %749 = vmatpush1.bf16.msra.mxu0 %v649
    %750 = vmatprep.subr.bf16.mxu0 %v654
    %751 = vmatpush1.bf16.msra.mxu0 %v653
    %752 = vmatprep.subr.bf16.mxu0 %v658
    %753 = vmatpush1.bf16.msra.mxu0 %v657
    %754 = vmatprep.subr.bf16.mxu0 %v662
    %755 = vmatpush1.bf16.msra.mxu0 %v661
    %756 = vmatprep.subr.bf16.mxu0 %v666
    %757 = vmatpush1.bf16.msra.mxu0 %v665
    %758 = vmatprep.subr.bf16.mxu0 %v670
    %759 = vmatpush1.bf16.msra.mxu0 %v669
    %760 = vmatprep.subr.bf16.mxu0 0
    %761 = vmatpush1.bf16.msra.mxu0 0
    %762 = vmatprep.subr.bf16.mxu0 0
    %763 = vmatpush1.bf16.msra.mxu0 0
    %764 = vmatprep.subr.bf16.mxu0 0
    %765 = vmatpush1.bf16.msra.mxu0 0
    %766 = vmatprep.subr.bf16.mxu0 0
    %767 = vmatpush1.bf16.msra.mxu0 0
    %768 = vmatprep.subr.bf16.mxu0 0
    %769 = vmatpush1.bf16.msra.mxu0 0
    %770 = vmatprep.subr.bf16.mxu0 0
    %771 = vmatpush1.bf16.msra.mxu0 0
    %772 = vmatprep.subr.bf16.mxu0 0
    %773 = vmatpush1.bf16.msra.mxu0 0
    %774 = vmatprep.subr.bf16.mxu0 0
    %775 = vmatpush1.bf16.msra.mxu0 0
    %776 = vmatprep.mubr.bf16.mxu0 0
    %777 = vmatmul.mubr.bf16.gmra.mrb[0].mxu0 %v510
    %v778 = vpop.f32.mrb[0].mxu0
    %v779 = vadd.f32 0.0, %v778
    %v780 = vpop.f32.mrb[0].mxu0
    %v781 = vadd.f32 0.0, %v780
    %v782 = vpop.f32.mrb[0].mxu0
    %v783 = vpop.f32.mrb[0].mxu0
    %784 = vdwg.mxu0
    %v785 = vadd.f32 %v506, %v738
    %v786 = vadd.f32 %v507, %v740
    %v787 = vadd.f32 %v508, %v779
    %v788 = vadd.f32 %v509, %v781
    %v789 = vmul.f32 %v785, 0.5
    %v790 = vtanh.pop %v789
    %v791 = vmul.f32 %v790, 0.5
    %v792 = vadd.f32 %v791, 0.5
    %v793 = vmul.f32 %v786, 0.5
    %v794 = vtanh.pop %v793
    %v795 = vmul.f32 %v794, 0.5
    %v796 = vadd.f32 %v795, 0.5
    %v797 = vtanh.pop %v787
    %v798 = vmul.f32 %v788, 0.5
    %v799 = vtanh.pop %v798
    %v800 = vmul.f32 %v799, 0.5
    %v801 = vadd.f32 %v800, 0.5
    %v802 = vmul.f32 %v796, %v502
    %v803 = vmul.f32 %v792, %v797
    %v804 = vadd.f32 %v802, %v803
    %v805 = vtanh.pop %v804
    %v806 = vmul.f32 %v801, %v805
    %807 = vst [vmem:[#allocation11] sm:$0xff] %v806
    %s808 = smul.u32 1, 4
    %s809 = smul.addr %s808, 8
    %s810 = scalar_lea.vmem [#allocation4], %s809
    %v811 = vld [vmem:[%s810] sm:$0xff]
    %v812 = vld [vmem:[%s810 + $0x8] sm:$0xff]
    %v813 = vld [vmem:[%s810 + $0x10] sm:$0xff]
    %v814 = vld [vmem:[%s810 + $0x18] sm:$0xff]
    %v815 = vpack.c.bf16 %v806, %v806
    %v816 = vld [vmem:[#allocation10] sm:$0xff]
    %v817 = vld [vmem:[#allocation10 + $0x8] sm:$0xff]
    %v818 = vld [vmem:[#allocation10 + $0x10] sm:$0xff]
    %v819 = vld [vmem:[#allocation10 + $0x18] sm:$0xff]
    %v820 = vld [vmem:[#allocation10 + $0x20] sm:$0xff]
    %v821 = vld [vmem:[#allocation10 + $0x28] sm:$0xff]
    %v822 = vld [vmem:[#allocation10 + $0x30] sm:$0xff]
    %v823 = vld [vmem:[#allocation10 + $0x38] sm:$0xff]
    %v824 = vld [vmem:[#allocation10 + $0x40] sm:$0xff]
    %v825 = vld [vmem:[#allocation10 + $0x48] sm:$0xff]
    %v826 = vld [vmem:[#allocation10 + $0x50] sm:$0xff]
    %v827 = vld [vmem:[#allocation10 + $0x58] sm:$0xff]
    %v828 = vld [vmem:[#allocation10 + $0x60] sm:$0xff]
    %v829 = vld [vmem:[#allocation10 + $0x68] sm:$0xff]
    %v830 = vld [vmem:[#allocation10 + $0x70] sm:$0xff]
    %v831 = vld [vmem:[#allocation10 + $0x78] sm:$0xff]
    %v832 = vld [vmem:[#allocation10 + $0x80] sm:$0xff]
    %v833 = vld [vmem:[#allocation10 + $0x88] sm:$0xff]
    %v834 = vld [vmem:[#allocation10 + $0x90] sm:$0xff]
    %v835 = vld [vmem:[#allocation10 + $0x98] sm:$0xff]
    %v836 = vld [vmem:[#allocation10 + $0xa0] sm:$0xff]
    %v837 = vld [vmem:[#allocation10 + $0xa8] sm:$0xff]
    %v838 = vld [vmem:[#allocation10 + $0xb0] sm:$0xff]
    %v839 = vld [vmem:[#allocation10 + $0xb8] sm:$0xff]
    %v840 = vld [vmem:[#allocation10 + $0xc0] sm:$0xff]
    %v841 = vld [vmem:[#allocation10 + $0xc8] sm:$0xff]
    %v842 = vld [vmem:[#allocation10 + $0xd0] sm:$0xff]
    %v843 = vld [vmem:[#allocation10 + $0xd8] sm:$0xff]
    %v844 = vld [vmem:[#allocation10 + $0xe0] sm:$0xff]
    %v845 = vld [vmem:[#allocation10 + $0xe8] sm:$0xff]
    %v846 = vld [vmem:[#allocation10 + $0xf0] sm:$0xff]
    %v847 = vld [vmem:[#allocation10 + $0xf8] sm:$0xff]
    %v880 = vunpack.c.l.b16 %v816
    %v881 = vunpack.c.h.b16 %v816
    %v882 = vunpack.c.l.b16 %v817
    %v883 = vunpack.c.h.b16 %v817
    %v884 = vunpack.c.l.b16 %v818
    %v885 = vunpack.c.h.b16 %v818
    %v886 = vunpack.c.l.b16 %v819
    %v887 = vunpack.c.h.b16 %v819
    %v888 = vunpack.c.l.b16 %v820
    %v889 = vunpack.c.h.b16 %v820
    %v890 = vunpack.c.l.b16 %v821
    %v891 = vunpack.c.h.b16 %v821
    %v892 = vunpack.c.l.b16 %v822
    %v893 = vunpack.c.h.b16 %v822
    %v894 = vunpack.c.l.b16 %v823
    %v895 = vunpack.c.h.b16 %v823
    %v896 = vunpack.c.l.b16 %v824
    %v897 = vunpack.c.h.b16 %v824
    %v898 = vunpack.c.l.b16 %v825
    %v899 = vunpack.c.h.b16 %v825
    %v900 = vunpack.c.l.b16 %v826
    %v901 = vunpack.c.h.b16 %v826
    %v902 = vunpack.c.l.b16 %v827
    %v903 = vunpack.c.h.b16 %v827
    %v904 = vunpack.c.l.b16 %v828
    %v905 = vunpack.c.h.b16 %v828
    %v906 = vunpack.c.l.b16 %v829
    %v907 = vunpack.c.h.b16 %v829
    %v908 = vunpack.c.l.b16 %v830
    %v909 = vunpack.c.h.b16 %v830
    %v910 = vunpack.c.l.b16 %v831
    %v911 = vunpack.c.h.b16 %v831
    %v912 = vunpack.c.l.b16 %v832
    %v913 = vunpack.c.h.b16 %v832
    %v914 = vunpack.c.l.b16 %v833
    %v915 = vunpack.c.h.b16 %v833
    %v916 = vunpack.c.l.b16 %v834
    %v917 = vunpack.c.h.b16 %v834
    %v918 = vunpack.c.l.b16 %v835
    %v919 = vunpack.c.h.b16 %v835
    %v920 = vunpack.c.l.b16 %v836
    %v921 = vunpack.c.h.b16 %v836
    %v922 = vunpack.c.l.b16 %v837
    %v923 = vunpack.c.h.b16 %v837
    %v924 = vunpack.c.l.b16 %v838
    %v925 = vunpack.c.h.b16 %v838
    %v926 = vunpack.c.l.b16 %v839
    %v927 = vunpack.c.h.b16 %v839
    %v928 = vunpack.c.l.b16 %v840
    %v929 = vunpack.c.h.b16 %v840
    %v930 = vunpack.c.l.b16 %v841
    %v931 = vunpack.c.h.b16 %v841
    %v932 = vunpack.c.l.b16 %v842
    %v933 = vunpack.c.h.b16 %v842
    %v934 = vunpack.c.l.b16 %v843
    %v935 = vunpack.c.h.b16 %v843
    %v936 = vunpack.c.l.b16 %v844
    %v937 = vunpack.c.h.b16 %v844
    %v938 = vunpack.c.l.b16 %v845
    %v939 = vunpack.c.h.b16 %v845
    %v940 = vunpack.c.l.b16 %v846
    %v941 = vunpack.c.h.b16 %v846
    %v942 = vunpack.c.l.b16 %v847
    %v943 = vunpack.c.h.b16 %v847
    %v944 = vpack.c.b16 %v884, %v880
    %v945 = vpack.c.b16 %v885, %v881
    %v946 = vpack.c.b16 %v886, %v882
    %v947 = vpack.c.b16 %v887, %v883
    %v948 = vpack.c.b16 %v892, %v888
    %v949 = vpack.c.b16 %v893, %v889
    %v950 = vpack.c.b16 %v894, %v890
    %v951 = vpack.c.b16 %v895, %v891
    %v952 = vpack.c.b16 %v900, %v896
    %v953 = vpack.c.b16 %v901, %v897
    %v954 = vpack.c.b16 %v902, %v898
    %v955 = vpack.c.b16 %v903, %v899
    %v956 = vpack.c.b16 %v908, %v904
    %v957 = vpack.c.b16 %v909, %v905
    %v958 = vpack.c.b16 %v910, %v906
    %v959 = vpack.c.b16 %v911, %v907
    %v960 = vpack.c.b16 %v916, %v912
    %v961 = vpack.c.b16 %v917, %v913
    %v962 = vpack.c.b16 %v918, %v914
    %v963 = vpack.c.b16 %v919, %v915
    %v964 = vpack.c.b16 %v924, %v920
    %v965 = vpack.c.b16 %v925, %v921
    %v966 = vpack.c.b16 %v926, %v922
    %v967 = vpack.c.b16 %v927, %v923
    %v968 = vpack.c.b16 %v932, %v928
    %v969 = vpack.c.b16 %v933, %v929
    %v970 = vpack.c.b16 %v934, %v930
    %v971 = vpack.c.b16 %v935, %v931
    %v972 = vpack.c.b16 %v940, %v936
    %v973 = vpack.c.b16 %v941, %v937
    %v974 = vpack.c.b16 %v942, %v938
    %v975 = vpack.c.b16 %v943, %v939
    %1008 = vmatprep.subr.bf16.mxu0 %v945
    %1009 = vmatpush1.bf16.msra.mxu0 %v944
    %1010 = vmatprep.subr.bf16.mxu0 %v949
    %1011 = vmatpush1.bf16.msra.mxu0 %v948
    %1012 = vmatprep.subr.bf16.mxu0 %v953
    %1013 = vmatpush1.bf16.msra.mxu0 %v952
    %1014 = vmatprep.subr.bf16.mxu0 %v957
    %1015 = vmatpush1.bf16.msra.mxu0 %v956
    %1016 = vmatprep.subr.bf16.mxu0 %v961
    %1017 = vmatpush1.bf16.msra.mxu0 %v960
    %1018 = vmatprep.subr.bf16.mxu0 %v965
    %1019 = vmatpush1.bf16.msra.mxu0 %v964
    %1020 = vmatprep.subr.bf16.mxu0 %v969
    %1021 = vmatpush1.bf16.msra.mxu0 %v968
    %1022 = vmatprep.subr.bf16.mxu0 %v973
    %1023 = vmatpush1.bf16.msra.mxu0 %v972
    %1024 = vmatprep.subr.bf16.mxu0 0
    %1025 = vmatpush1.bf16.msra.mxu0 0
    %1026 = vmatprep.subr.bf16.mxu0 0
    %1027 = vmatpush1.bf16.msra.mxu0 0
    %1028 = vmatprep.subr.bf16.mxu0 0
    %1029 = vmatpush1.bf16.msra.mxu0 0
    %1030 = vmatprep.subr.bf16.mxu0 0
    %1031 = vmatpush1.bf16.msra.mxu0 0
    %1032 = vmatprep.subr.bf16.mxu0 0
    %1033 = vmatpush1.bf16.msra.mxu0 0
    %1034 = vmatprep.subr.bf16.mxu0 0
    %1035 = vmatpush1.bf16.msra.mxu0 0
    %1036 = vmatprep.subr.bf16.mxu0 0
    %1037 = vmatpush1.bf16.msra.mxu0 0
    %1038 = vmatprep.subr.bf16.mxu0 0
    %1039 = vmatpush1.bf16.msra.mxu0 0
    %1040 = vmatprep.mubr.bf16.mxu0 0
    %1041 = vmatmul.mubr.bf16.gmra.mrb[0].mxu0 %v815
    %v1042 = vpop.f32.mrb[0].mxu0
    %v1043 = vadd.f32 0.0, %v1042
    %v1044 = vpop.f32.mrb[0].mxu0
    %v1045 = vadd.f32 0.0, %v1044
    %v1046 = vpop.f32.mrb[0].mxu0
    %v1047 = vpop.f32.mrb[0].mxu0
    %1048 = vdwg.mxu0
    %1049 = vmatprep.subr.bf16.mxu0 %v947
    %1050 = vmatpush1.bf16.msra.mxu0 %v946
    %1051 = vmatprep.subr.bf16.mxu0 %v951
    %1052 = vmatpush1.bf16.msra.mxu0 %v950
    %1053 = vmatprep.subr.bf16.mxu0 %v955
    %1054 = vmatpush1.bf16.msra.mxu0 %v954
    %1055 = vmatprep.subr.bf16.mxu0 %v959
    %1056 = vmatpush1.bf16.msra.mxu0 %v958
    %1057 = vmatprep.subr.bf16.mxu0 %v963
    %1058 = vmatpush1.bf16.msra.mxu0 %v962
    %1059 = vmatprep.subr.bf16.mxu0 %v967
    %1060 = vmatpush1.bf16.msra.mxu0 %v966
    %1061 = vmatprep.subr.bf16.mxu0 %v971
    %1062 = vmatpush1.bf16.msra.mxu0 %v970
    %1063 = vmatprep.subr.bf16.mxu0 %v975
    %1064 = vmatpush1.bf16.msra.mxu0 %v974
    %1065 = vmatprep.subr.bf16.mxu0 0
    %1066 = vmatpush1.bf16.msra.mxu0 0
    %1067 = vmatprep.subr.bf16.mxu0 0
    %1068 = vmatpush1.bf16.msra.mxu0 0
    %1069 = vmatprep.subr.bf16.mxu0 0
    %1070 = vmatpush1.bf16.msra.mxu0 0
    %1071 = vmatprep.subr.bf16.mxu0 0
    %1072 = vmatpush1.bf16.msra.mxu0 0
    %1073 = vmatprep.subr.bf16.mxu0 0
    %1074 = vmatpush1.bf16.msra.mxu0 0
    %1075 = vmatprep.subr.bf16.mxu0 0
    %1076 = vmatpush1.bf16.msra.mxu0 0
    %1077 = vmatprep.subr.bf16.mxu0 0
    %1078 = vmatpush1.bf16.msra.mxu0 0
    %1079 = vmatprep.subr.bf16.mxu0 0
    %1080 = vmatpush1.bf16.msra.mxu0 0
    %1081 = vmatprep.mubr.bf16.mxu0 0
    %1082 = vmatmul.mubr.bf16.gmra.mrb[0].mxu0 %v815
    %v1083 = vpop.f32.mrb[0].mxu0
    %v1084 = vadd.f32 0.0, %v1083
    %v1085 = vpop.f32.mrb[0].mxu0
    %v1086 = vadd.f32 0.0, %v1085
    %v1087 = vpop.f32.mrb[0].mxu0
    %v1088 = vpop.f32.mrb[0].mxu0
    %1089 = vdwg.mxu0
    %v1090 = vadd.f32 %v811, %v1043
    %v1091 = vadd.f32 %v812, %v1045
    %v1092 = vadd.f32 %v813, %v1084
    %v1093 = vadd.f32 %v814, %v1086
    %v1094 = vmul.f32 %v1090, 0.5
    %v1095 = vtanh.pop %v1094
    %v1096 = vmul.f32 %v1095, 0.5
    %v1097 = vadd.f32 %v1096, 0.5
    %v1098 = vmul.f32 %v1091, 0.5
    %v1099 = vtanh.pop %v1098
    %v1100 = vmul.f32 %v1099, 0.5
    %v1101 = vadd.f32 %v1100, 0.5
    %v1102 = vtanh.pop %v1092
    %v1103 = vmul.f32 %v1093, 0.5
    %v1104 = vtanh.pop %v1103
    %v1105 = vmul.f32 %v1104, 0.5
    %v1106 = vadd.f32 %v1105, 0.5
    %v1107 = vmul.f32 %v1101, %v804
    %v1108 = vmul.f32 %v1097, %v1102
    %v1109 = vadd.f32 %v1107, %v1108
    %v1110 = vtanh.pop %v1109
    %v1111 = vmul.f32 %v1106, %v1110
    %s1112 = scalar_lea.vmem [#allocation11], 8
    %1113 = vst [vmem:[%s1112] sm:$0xff] %v1111
    %s1114 = smul.u32 2, 4
    %s1115 = smul.addr %s1114, 8
    %s1116 = scalar_lea.vmem [#allocation4], %s1115
    %v1117 = vld [vmem:[%s1116] sm:$0xff]
    %v1118 = vld [vmem:[%s1116 + $0x8] sm:$0xff]
    %v1119 = vld [vmem:[%s1116 + $0x10] sm:$0xff]
    %v1120 = vld [vmem:[%s1116 + $0x18] sm:$0xff]
    %v1121 = vpack.c.bf16 %v1111, %v1111
    %v1122 = vld [vmem:[#allocation10] sm:$0xff]
    %v1123 = vld [vmem:[#allocation10 + $0x8] sm:$0xff]
    %v1124 = vld [vmem:[#allocation10 + $0x10] sm:$0xff]
    %v1125 = vld [vmem:[#allocation10 + $0x18] sm:$0xff]
    %v1126 = vld [vmem:[#allocation10 + $0x20] sm:$0xff]
    %v1127 = vld [vmem:[#allocation10 + $0x28] sm:$0xff]
    %v1128 = vld [vmem:[#allocation10 + $0x30] sm:$0xff]
    %v1129 = vld [vmem:[#allocation10 + $0x38] sm:$0xff]
    %v1130 = vld [vmem:[#allocation10 + $0x40] sm:$0xff]
    %v1131 = vld [vmem:[#allocation10 + $0x48] sm:$0xff]
    %v1132 = vld [vmem:[#allocation10 + $0x50] sm:$0xff]
    %v1133 = vld [vmem:[#allocation10 + $0x58] sm:$0xff]
    %v1134 = vld [vmem:[#allocation10 + $0x60] sm:$0xff]
    %v1135 = vld [vmem:[#allocation10 + $0x68] sm:$0xff]
    %v1136 = vld [vmem:[#allocation10 + $0x70] sm:$0xff]
    %v1137 = vld [vmem:[#allocation10 + $0x78] sm:$0xff]
    %v1138 = vld [vmem:[#allocation10 + $0x80] sm:$0xff]
    %v1139 = vld [vmem:[#allocation10 + $0x88] sm:$0xff]
    %v1140 = vld [vmem:[#allocation10 + $0x90] sm:$0xff]
    %v1141 = vld [vmem:[#allocation10 + $0x98] sm:$0xff]
    %v1142 = vld [vmem:[#allocation10 + $0xa0] sm:$0xff]
    %v1143 = vld [vmem:[#allocation10 + $0xa8] sm:$0xff]
    %v1144 = vld [vmem:[#allocation10 + $0xb0] sm:$0xff]
    %v1145 = vld [vmem:[#allocation10 + $0xb8] sm:$0xff]
    %v1146 = vld [vmem:[#allocation10 + $0xc0] sm:$0xff]
    %v1147 = vld [vmem:[#allocation10 + $0xc8] sm:$0xff]
    %v1148 = vld [vmem:[#allocation10 + $0xd0] sm:$0xff]
    %v1149 = vld [vmem:[#allocation10 + $0xd8] sm:$0xff]
    %v1150 = vld [vmem:[#allocation10 + $0xe0] sm:$0xff]
    %v1151 = vld [vmem:[#allocation10 + $0xe8] sm:$0xff]
    %v1152 = vld [vmem:[#allocation10 + $0xf0] sm:$0xff]
    %v1153 = vld [vmem:[#allocation10 + $0xf8] sm:$0xff]
    %v1186 = vunpack.c.l.b16 %v1122
    %v1187 = vunpack.c.h.b16 %v1122
    %v1188 = vunpack.c.l.b16 %v1123
    %v1189 = vunpack.c.h.b16 %v1123
    %v1190 = vunpack.c.l.b16 %v1124
    %v1191 = vunpack.c.h.b16 %v1124
    %v1192 = vunpack.c.l.b16 %v1125
    %v1193 = vunpack.c.h.b16 %v1125
    %v1194 = vunpack.c.l.b16 %v1126
    %v1195 = vunpack.c.h.b16 %v1126
    %v1196 = vunpack.c.l.b16 %v1127
    %v1197 = vunpack.c.h.b16 %v1127
    %v1198 = vunpack.c.l.b16 %v1128
    %v1199 = vunpack.c.h.b16 %v1128
    %v1200 = vunpack.c.l.b16 %v1129
    %v1201 = vunpack.c.h.b16 %v1129
    %v1202 = vunpack.c.l.b16 %v1130
    %v1203 = vunpack.c.h.b16 %v1130
    %v1204 = vunpack.c.l.b16 %v1131
    %v1205 = vunpack.c.h.b16 %v1131
    %v1206 = vunpack.c.l.b16 %v1132
    %v1207 = vunpack.c.h.b16 %v1132
    %v1208 = vunpack.c.l.b16 %v1133
    %v1209 = vunpack.c.h.b16 %v1133
    %v1210 = vunpack.c.l.b16 %v1134
    %v1211 = vunpack.c.h.b16 %v1134
    %v1212 = vunpack.c.l.b16 %v1135
    %v1213 = vunpack.c.h.b16 %v1135
    %v1214 = vunpack.c.l.b16 %v1136
    %v1215 = vunpack.c.h.b16 %v1136
    %v1216 = vunpack.c.l.b16 %v1137
    %v1217 = vunpack.c.h.b16 %v1137
    %v1218 = vunpack.c.l.b16 %v1138
    %v1219 = vunpack.c.h.b16 %v1138
    %v1220 = vunpack.c.l.b16 %v1139
    %v1221 = vunpack.c.h.b16 %v1139
    %v1222 = vunpack.c.l.b16 %v1140
    %v1223 = vunpack.c.h.b16 %v1140
    %v1224 = vunpack.c.l.b16 %v1141
    %v1225 = vunpack.c.h.b16 %v1141
    %v1226 = vunpack.c.l.b16 %v1142
    %v1227 = vunpack.c.h.b16 %v1142
    %v1228 = vunpack.c.l.b16 %v1143
    %v1229 = vunpack.c.h.b16 %v1143
    %v1230 = vunpack.c.l.b16 %v1144
    %v1231 = vunpack.c.h.b16 %v1144
    %v1232 = vunpack.c.l.b16 %v1145
    %v1233 = vunpack.c.h.b16 %v1145
    %v1234 = vunpack.c.l.b16 %v1146
    %v1235 = vunpack.c.h.b16 %v1146
    %v1236 = vunpack.c.l.b16 %v1147
    %v1237 = vunpack.c.h.b16 %v1147
    %v1238 = vunpack.c.l.b16 %v1148
    %v1239 = vunpack.c.h.b16 %v1148
    %v1240 = vunpack.c.l.b16 %v1149
    %v1241 = vunpack.c.h.b16 %v1149
    %v1242 = vunpack.c.l.b16 %v1150
    %v1243 = vunpack.c.h.b16 %v1150
    %v1244 = vunpack.c.l.b16 %v1151
    %v1245 = vunpack.c.h.b16 %v1151
    %v1246 = vunpack.c.l.b16 %v1152
    %v1247 = vunpack.c.h.b16 %v1152
    %v1248 = vunpack.c.l.b16 %v1153
    %v1249 = vunpack.c.h.b16 %v1153
    %v1250 = vpack.c.b16 %v1190, %v1186
    %v1251 = vpack.c.b16 %v1191, %v1187
    %v1252 = vpack.c.b16 %v1192, %v1188
    %v1253 = vpack.c.b16 %v1193, %v1189
    %v1254 = vpack.c.b16 %v1198, %v1194
    %v1255 = vpack.c.b16 %v1199, %v1195
    %v1256 = vpack.c.b16 %v1200, %v1196
    %v1257 = vpack.c.b16 %v1201, %v1197
    %v1258 = vpack.c.b16 %v1206, %v1202
    %v1259 = vpack.c.b16 %v1207, %v1203
    %v1260 = vpack.c.b16 %v1208, %v1204
    %v1261 = vpack.c.b16 %v1209, %v1205
    %v1262 = vpack.c.b16 %v1214, %v1210
    %v1263 = vpack.c.b16 %v1215, %v1211
    %v1264 = vpack.c.b16 %v1216, %v1212
    %v1265 = vpack.c.b16 %v1217, %v1213
    %v1266 = vpack.c.b16 %v1222, %v1218
    %v1267 = vpack.c.b16 %v1223, %v1219
    %v1268 = vpack.c.b16 %v1224, %v1220
    %v1269 = vpack.c.b16 %v1225, %v1221
    %v1270 = vpack.c.b16 %v1230, %v1226
    %v1271 = vpack.c.b16 %v1231, %v1227
    %v1272 = vpack.c.b16 %v1232, %v1228
    %v1273 = vpack.c.b16 %v1233, %v1229
    %v1274 = vpack.c.b16 %v1238, %v1234
    %v1275 = vpack.c.b16 %v1239, %v1235
    %v1276 = vpack.c.b16 %v1240, %v1236
    %v1277 = vpack.c.b16 %v1241, %v1237
    %v1278 = vpack.c.b16 %v1246, %v1242
    %v1279 = vpack.c.b16 %v1247, %v1243
    %v1280 = vpack.c.b16 %v1248, %v1244
    %v1281 = vpack.c.b16 %v1249, %v1245
    %1314 = vmatprep.subr.bf16.mxu0 %v1251
    %1315 = vmatpush1.bf16.msra.mxu0 %v1250
    %1316 = vmatprep.subr.bf16.mxu0 %v1255
    %1317 = vmatpush1.bf16.msra.mxu0 %v1254
    %1318 = vmatprep.subr.bf16.mxu0 %v1259
    %1319 = vmatpush1.bf16.msra.mxu0 %v1258
    %1320 = vmatprep.subr.bf16.mxu0 %v1263
    %1321 = vmatpush1.bf16.msra.mxu0 %v1262
    %1322 = vmatprep.subr.bf16.mxu0 %v1267
    %1323 = vmatpush1.bf16.msra.mxu0 %v1266
    %1324 = vmatprep.subr.bf16.mxu0 %v1271
    %1325 = vmatpush1.bf16.msra.mxu0 %v1270
    %1326 = vmatprep.subr.bf16.mxu0 %v1275
    %1327 = vmatpush1.bf16.msra.mxu0 %v1274
    %1328 = vmatprep.subr.bf16.mxu0 %v1279
    %1329 = vmatpush1.bf16.msra.mxu0 %v1278
    %1330 = vmatprep.subr.bf16.mxu0 0
    %1331 = vmatpush1.bf16.msra.mxu0 0
    %1332 = vmatprep.subr.bf16.mxu0 0
    %1333 = vmatpush1.bf16.msra.mxu0 0
    %1334 = vmatprep.subr.bf16.mxu0 0
    %1335 = vmatpush1.bf16.msra.mxu0 0
    %1336 = vmatprep.subr.bf16.mxu0 0
    %1337 = vmatpush1.bf16.msra.mxu0 0
    %1338 = vmatprep.subr.bf16.mxu0 0
    %1339 = vmatpush1.bf16.msra.mxu0 0
    %1340 = vmatprep.subr.bf16.mxu0 0
    %1341 = vmatpush1.bf16.msra.mxu0 0
    %1342 = vmatprep.subr.bf16.mxu0 0
    %1343 = vmatpush1.bf16.msra.mxu0 0
    %1344 = vmatprep.subr.bf16.mxu0 0
    %1345 = vmatpush1.bf16.msra.mxu0 0
    %1346 = vmatprep.mubr.bf16.mxu0 0
    %1347 = vmatmul.mubr.bf16.gmra.mrb[0].mxu0 %v1121
    %v1348 = vpop.f32.mrb[0].mxu0
    %v1349 = vadd.f32 0.0, %v1348
    %v1350 = vpop.f32.mrb[0].mxu0
    %v1351 = vadd.f32 0.0, %v1350
    %v1352 = vpop.f32.mrb[0].mxu0
    %v1353 = vpop.f32.mrb[0].mxu0
    %1354 = vdwg.mxu0
    %1355 = vmatprep.subr.bf16.mxu0 %v1253
    %1356 = vmatpush1.bf16.msra.mxu0 %v1252
    %1357 = vmatprep.subr.bf16.mxu0 %v1257
    %1358 = vmatpush1.bf16.msra.mxu0 %v1256
    %1359 = vmatprep.subr.bf16.mxu0 %v1261
    %1360 = vmatpush1.bf16.msra.mxu0 %v1260
    %1361 = vmatprep.subr.bf16.mxu0 %v1265
    %1362 = vmatpush1.bf16.msra.mxu0 %v1264
    %1363 = vmatprep.subr.bf16.mxu0 %v1269
    %1364 = vmatpush1.bf16.msra.mxu0 %v1268
    %1365 = vmatprep.subr.bf16.mxu0 %v1273
    %1366 = vmatpush1.bf16.msra.mxu0 %v1272
    %1367 = vmatprep.subr.bf16.mxu0 %v1277
    %1368 = vmatpush1.bf16.msra.mxu0 %v1276
    %1369 = vmatprep.subr.bf16.mxu0 %v1281
    %1370 = vmatpush1.bf16.msra.mxu0 %v1280
    %1371 = vmatprep.subr.bf16.mxu0 0
    %1372 = vmatpush1.bf16.msra.mxu0 0
    %1373 = vmatprep.subr.bf16.mxu0 0
    %1374 = vmatpush1.bf16.msra.mxu0 0
    %1375 = vmatprep.subr.bf16.mxu0 0
    %1376 = vmatpush1.bf16.msra.mxu0 0
    %1377 = vmatprep.subr.bf16.mxu0 0
    %1378 = vmatpush1.bf16.msra.mxu0 0
    %1379 = vmatprep.subr.bf16.mxu0 0
    %1380 = vmatpush1.bf16.msra.mxu0 0
    %1381 = vmatprep.subr.bf16.mxu0 0
    %1382 = vmatpush1.bf16.msra.mxu0 0
    %1383 = vmatprep.subr.bf16.mxu0 0
    %1384 = vmatpush1.bf16.msra.mxu0 0
    %1385 = vmatprep.subr.bf16.mxu0 0
    %1386 = vmatpush1.bf16.msra.mxu0 0
    %1387 = vmatprep.mubr.bf16.mxu0 0
    %1388 = vmatmul.mubr.bf16.gmra.mrb[0].mxu0 %v1121
    %v1389 = vpop.f32.mrb[0].mxu0
    %v1390 = vadd.f32 0.0, %v1389
    %v1391 = vpop.f32.mrb[0].mxu0
    %v1392 = vadd.f32 0.0, %v1391
    %v1393 = vpop.f32.mrb[0].mxu0
    %v1394 = vpop.f32.mrb[0].mxu0
    %1395 = vdwg.mxu0
    %v1396 = vadd.f32 %v1117, %v1349
    %v1397 = vadd.f32 %v1118, %v1351
    %v1398 = vadd.f32 %v1119, %v1390
    %v1399 = vadd.f32 %v1120, %v1392
    %v1400 = vmul.f32 %v1396, 0.5
    %v1401 = vtanh.pop %v1400
    %v1402 = vmul.f32 %v1401, 0.5
    %v1403 = vadd.f32 %v1402, 0.5
    %v1404 = vmul.f32 %v1397, 0.5
    %v1405 = vtanh.pop %v1404
    %v1406 = vmul.f32 %v1405, 0.5
    %v1407 = vadd.f32 %v1406, 0.5
    %v1408 = vtanh.pop %v1398
    %v1409 = vmul.f32 %v1399, 0.5
    %v1410 = vtanh.pop %v1409
    %v1411 = vmul.f32 %v1410, 0.5
    %v1412 = vadd.f32 %v1411, 0.5
    %v1413 = vmul.f32 %v1407, %v1109
    %v1414 = vmul.f32 %v1403, %v1408
    %v1415 = vadd.f32 %v1413, %v1414
    %v1416 = vtanh.pop %v1415
    %v1417 = vmul.f32 %v1412, %v1416
    %s1418 = scalar_lea.vmem [#allocation11], 16
    %1419 = vst [vmem:[%s1418] sm:$0xff] %v1417
    %s1420 = smul.u32 3, 4
    %s1421 = smul.addr %s1420, 8
    %s1422 = scalar_lea.vmem [#allocation4], %s1421
    %v1423 = vld [vmem:[%s1422] sm:$0xff]
    %v1424 = vld [vmem:[%s1422 + $0x8] sm:$0xff]
    %v1425 = vld [vmem:[%s1422 + $0x10] sm:$0xff]
    %v1426 = vld [vmem:[%s1422 + $0x18] sm:$0xff]
    %v1427 = vpack.c.bf16 %v1417, %v1417
    %v1428 = vld [vmem:[#allocation10] sm:$0xff]
    %v1429 = vld [vmem:[#allocation10 + $0x8] sm:$0xff]
    %v1430 = vld [vmem:[#allocation10 + $0x10] sm:$0xff]
    %v1431 = vld [vmem:[#allocation10 + $0x18] sm:$0xff]
    %v1432 = vld [vmem:[#allocation10 + $0x20] sm:$0xff]
    %v1433 = vld [vmem:[#allocation10 + $0x28] sm:$0xff]
    %v1434 = vld [vmem:[#allocation10 + $0x30] sm:$0xff]
    %v1435 = vld [vmem:[#allocation10 + $0x38] sm:$0xff]
    %v1436 = vld [vmem:[#allocation10 + $0x40] sm:$0xff]
    %v1437 = vld [vmem:[#allocation10 + $0x48] sm:$0xff]
    %v1438 = vld [vmem:[#allocation10 + $0x50] sm:$0xff]
    %v1439 = vld [vmem:[#allocation10 + $0x58] sm:$0xff]
    %v1440 = vld [vmem:[#allocation10 + $0x60] sm:$0xff]
    %v1441 = vld [vmem:[#allocation10 + $0x68] sm:$0xff]
    %v1442 = vld [vmem:[#allocation10 + $0x70] sm:$0xff]
    %v1443 = vld [vmem:[#allocation10 + $0x78] sm:$0xff]
    %v1444 = vld [vmem:[#allocation10 + $0x80] sm:$0xff]
    %v1445 = vld [vmem:[#allocation10 + $0x88] sm:$0xff]
    %v1446 = vld [vmem:[#allocation10 + $0x90] sm:$0xff]
    %v1447 = vld [vmem:[#allocation10 + $0x98] sm:$0xff]
    %v1448 = vld [vmem:[#allocation10 + $0xa0] sm:$0xff]
    %v1449 = vld [vmem:[#allocation10 + $0xa8] sm:$0xff]
    %v1450 = vld [vmem:[#allocation10 + $0xb0] sm:$0xff]
    %v1451 = vld [vmem:[#allocation10 + $0xb8] sm:$0xff]
    %v1452 = vld [vmem:[#allocation10 + $0xc0] sm:$0xff]
    %v1453 = vld [vmem:[#allocation10 + $0xc8] sm:$0xff]
    %v1454 = vld [vmem:[#allocation10 + $0xd0] sm:$0xff]
    %v1455 = vld [vmem:[#allocation10 + $0xd8] sm:$0xff]
    %v1456 = vld [vmem:[#allocation10 + $0xe0] sm:$0xff]
    %v1457 = vld [vmem:[#allocation10 + $0xe8] sm:$0xff]
    %v1458 = vld [vmem:[#allocation10 + $0xf0] sm:$0xff]
    %v1459 = vld [vmem:[#allocation10 + $0xf8] sm:$0xff]
    %v1492 = vunpack.c.l.b16 %v1428
    %v1493 = vunpack.c.h.b16 %v1428
    %v1494 = vunpack.c.l.b16 %v1429
    %v1495 = vunpack.c.h.b16 %v1429
    %v1496 = vunpack.c.l.b16 %v1430
    %v1497 = vunpack.c.h.b16 %v1430
    %v1498 = vunpack.c.l.b16 %v1431
    %v1499 = vunpack.c.h.b16 %v1431
    %v1500 = vunpack.c.l.b16 %v1432
    %v1501 = vunpack.c.h.b16 %v1432
    %v1502 = vunpack.c.l.b16 %v1433
    %v1503 = vunpack.c.h.b16 %v1433
    %v1504 = vunpack.c.l.b16 %v1434
    %v1505 = vunpack.c.h.b16 %v1434
    %v1506 = vunpack.c.l.b16 %v1435
    %v1507 = vunpack.c.h.b16 %v1435
    %v1508 = vunpack.c.l.b16 %v1436
    %v1509 = vunpack.c.h.b16 %v1436
    %v1510 = vunpack.c.l.b16 %v1437
    %v1511 = vunpack.c.h.b16 %v1437
    %v1512 = vunpack.c.l.b16 %v1438
    %v1513 = vunpack.c.h.b16 %v1438
    %v1514 = vunpack.c.l.b16 %v1439
    %v1515 = vunpack.c.h.b16 %v1439
    %v1516 = vunpack.c.l.b16 %v1440
    %v1517 = vunpack.c.h.b16 %v1440
    %v1518 = vunpack.c.l.b16 %v1441
    %v1519 = vunpack.c.h.b16 %v1441
    %v1520 = vunpack.c.l.b16 %v1442
    %v1521 = vunpack.c.h.b16 %v1442
    %v1522 = vunpack.c.l.b16 %v1443
    %v1523 = vunpack.c.h.b16 %v1443
    %v1524 = vunpack.c.l.b16 %v1444
    %v1525 = vunpack.c.h.b16 %v1444
    %v1526 = vunpack.c.l.b16 %v1445
    %v1527 = vunpack.c.h.b16 %v1445
    %v1528 = vunpack.c.l.b16 %v1446
    %v1529 = vunpack.c.h.b16 %v1446
    %v1530 = vunpack.c.l.b16 %v1447
    %v1531 = vunpack.c.h.b16 %v1447
    %v1532 = vunpack.c.l.b16 %v1448
    %v1533 = vunpack.c.h.b16 %v1448
    %v1534 = vunpack.c.l.b16 %v1449
    %v1535 = vunpack.c.h.b16 %v1449
    %v1536 = vunpack.c.l.b16 %v1450
    %v1537 = vunpack.c.h.b16 %v1450
    %v1538 = vunpack.c.l.b16 %v1451
    %v1539 = vunpack.c.h.b16 %v1451
    %v1540 = vunpack.c.l.b16 %v1452
    %v1541 = vunpack.c.h.b16 %v1452
    %v1542 = vunpack.c.l.b16 %v1453
    %v1543 = vunpack.c.h.b16 %v1453
    %v1544 = vunpack.c.l.b16 %v1454
    %v1545 = vunpack.c.h.b16 %v1454
    %v1546 = vunpack.c.l.b16 %v1455
    %v1547 = vunpack.c.h.b16 %v1455
    %v1548 = vunpack.c.l.b16 %v1456
    %v1549 = vunpack.c.h.b16 %v1456
    %v1550 = vunpack.c.l.b16 %v1457
    %v1551 = vunpack.c.h.b16 %v1457
    %v1552 = vunpack.c.l.b16 %v1458
    %v1553 = vunpack.c.h.b16 %v1458
    %v1554 = vunpack.c.l.b16 %v1459
    %v1555 = vunpack.c.h.b16 %v1459
    %v1556 = vpack.c.b16 %v1496, %v1492
    %v1557 = vpack.c.b16 %v1497, %v1493
    %v1558 = vpack.c.b16 %v1498, %v1494
    %v1559 = vpack.c.b16 %v1499, %v1495
    %v1560 = vpack.c.b16 %v1504, %v1500
    %v1561 = vpack.c.b16 %v1505, %v1501
    %v1562 = vpack.c.b16 %v1506, %v1502
    %v1563 = vpack.c.b16 %v1507, %v1503
    %v1564 = vpack.c.b16 %v1512, %v1508
    %v1565 = vpack.c.b16 %v1513, %v1509
    %v1566 = vpack.c.b16 %v1514, %v1510
    %v1567 = vpack.c.b16 %v1515, %v1511
    %v1568 = vpack.c.b16 %v1520, %v1516
    %v1569 = vpack.c.b16 %v1521, %v1517
    %v1570 = vpack.c.b16 %v1522, %v1518
    %v1571 = vpack.c.b16 %v1523, %v1519
    %v1572 = vpack.c.b16 %v1528, %v1524
    %v1573 = vpack.c.b16 %v1529, %v1525
    %v1574 = vpack.c.b16 %v1530, %v1526
    %v1575 = vpack.c.b16 %v1531, %v1527
    %v1576 = vpack.c.b16 %v1536, %v1532
    %v1577 = vpack.c.b16 %v1537, %v1533
    %v1578 = vpack.c.b16 %v1538, %v1534
    %v1579 = vpack.c.b16 %v1539, %v1535
    %v1580 = vpack.c.b16 %v1544, %v1540
    %v1581 = vpack.c.b16 %v1545, %v1541
    %v1582 = vpack.c.b16 %v1546, %v1542
    %v1583 = vpack.c.b16 %v1547, %v1543
    %v1584 = vpack.c.b16 %v1552, %v1548
    %v1585 = vpack.c.b16 %v1553, %v1549
    %v1586 = vpack.c.b16 %v1554, %v1550
    %v1587 = vpack.c.b16 %v1555, %v1551
    %1620 = vmatprep.subr.bf16.mxu0 %v1557
    %1621 = vmatpush1.bf16.msra.mxu0 %v1556
    %1622 = vmatprep.subr.bf16.mxu0 %v1561
    %1623 = vmatpush1.bf16.msra.mxu0 %v1560
    %1624 = vmatprep.subr.bf16.mxu0 %v1565
    %1625 = vmatpush1.bf16.msra.mxu0 %v1564
    %1626 = vmatprep.subr.bf16.mxu0 %v1569
    %1627 = vmatpush1.bf16.msra.mxu0 %v1568
    %1628 = vmatprep.subr.bf16.mxu0 %v1573
    %1629 = vmatpush1.bf16.msra.mxu0 %v1572
    %1630 = vmatprep.subr.bf16.mxu0 %v1577
    %1631 = vmatpush1.bf16.msra.mxu0 %v1576
    %1632 = vmatprep.subr.bf16.mxu0 %v1581
    %1633 = vmatpush1.bf16.msra.mxu0 %v1580
    %1634 = vmatprep.subr.bf16.mxu0 %v1585
    %1635 = vmatpush1.bf16.msra.mxu0 %v1584
    %1636 = vmatprep.subr.bf16.mxu0 0
    %1637 = vmatpush1.bf16.msra.mxu0 0
    %1638 = vmatprep.subr.bf16.mxu0 0
    %1639 = vmatpush1.bf16.msra.mxu0 0
    %1640 = vmatprep.subr.bf16.mxu0 0
    %1641 = vmatpush1.bf16.msra.mxu0 0
    %1642 = vmatprep.subr.bf16.mxu0 0
    %1643 = vmatpush1.bf16.msra.mxu0 0
    %1644 = vmatprep.subr.bf16.mxu0 0
    %1645 = vmatpush1.bf16.msra.mxu0 0
    %1646 = vmatprep.subr.bf16.mxu0 0
    %1647 = vmatpush1.bf16.msra.mxu0 0
    %1648 = vmatprep.subr.bf16.mxu0 0
    %1649 = vmatpush1.bf16.msra.mxu0 0
    %1650 = vmatprep.subr.bf16.mxu0 0
    %1651 = vmatpush1.bf16.msra.mxu0 0
    %1652 = vmatprep.mubr.bf16.mxu0 0
    %1653 = vmatmul.mubr.bf16.gmra.mrb[0].mxu0 %v1427
    %v1654 = vpop.f32.mrb[0].mxu0
    %v1655 = vadd.f32 0.0, %v1654
    %v1656 = vpop.f32.mrb[0].mxu0
    %v1657 = vadd.f32 0.0, %v1656
    %v1658 = vpop.f32.mrb[0].mxu0
    %v1659 = vpop.f32.mrb[0].mxu0
    %1660 = vdwg.mxu0
    %1661 = vmatprep.subr.bf16.mxu0 %v1559
    %1662 = vmatpush1.bf16.msra.mxu0 %v1558
    %1663 = vmatprep.subr.bf16.mxu0 %v1563
    %1664 = vmatpush1.bf16.msra.mxu0 %v1562
    %1665 = vmatprep.subr.bf16.mxu0 %v1567
    %1666 = vmatpush1.bf16.msra.mxu0 %v1566
    %1667 = vmatprep.subr.bf16.mxu0 %v1571
    %1668 = vmatpush1.bf16.msra.mxu0 %v1570
    %1669 = vmatprep.subr.bf16.mxu0 %v1575
    %1670 = vmatpush1.bf16.msra.mxu0 %v1574
    %1671 = vmatprep.subr.bf16.mxu0 %v1579
    %1672 = vmatpush1.bf16.msra.mxu0 %v1578
    %1673 = vmatprep.subr.bf16.mxu0 %v1583
    %1674 = vmatpush1.bf16.msra.mxu0 %v1582
    %1675 = vmatprep.subr.bf16.mxu0 %v1587
    %1676 = vmatpush1.bf16.msra.mxu0 %v1586
    %1677 = vmatprep.subr.bf16.mxu0 0
    %1678 = vmatpush1.bf16.msra.mxu0 0
    %1679 = vmatprep.subr.bf16.mxu0 0
    %1680 = vmatpush1.bf16.msra.mxu0 0
    %1681 = vmatprep.subr.bf16.mxu0 0
    %1682 = vmatpush1.bf16.msra.mxu0 0
    %1683 = vmatprep.subr.bf16.mxu0 0
    %1684 = vmatpush1.bf16.msra.mxu0 0
    %1685 = vmatprep.subr.bf16.mxu0 0
    %1686 = vmatpush1.bf16.msra.mxu0 0
    %1687 = vmatprep.subr.bf16.mxu0 0
    %1688 = vmatpush1.bf16.msra.mxu0 0
    %1689 = vmatprep.subr.bf16.mxu0 0
    %1690 = vmatpush1.bf16.msra.mxu0 0
    %1691 = vmatprep.subr.bf16.mxu0 0
    %1692 = vmatpush1.bf16.msra.mxu0 0
    %1693 = vmatprep.mubr.bf16.mxu0 0
    %1694 = vmatmul.mubr.bf16.gmra.mrb[0].mxu0 %v1427
    %v1695 = vpop.f32.mrb[0].mxu0
    %v1696 = vadd.f32 0.0, %v1695
    %v1697 = vpop.f32.mrb[0].mxu0
    %v1698 = vadd.f32 0.0, %v1697
    %v1699 = vpop.f32.mrb[0].mxu0
    %v1700 = vpop.f32.mrb[0].mxu0
    %1701 = vdwg.mxu0
    %v1702 = vadd.f32 %v1423, %v1655
    %v1703 = vadd.f32 %v1424, %v1657
    %v1704 = vadd.f32 %v1425, %v1696
    %v1705 = vadd.f32 %v1426, %v1698
    %v1706 = vmul.f32 %v1702, 0.5
    %v1707 = vtanh.pop %v1706
    %v1708 = vmul.f32 %v1707, 0.5
    %v1709 = vadd.f32 %v1708, 0.5
    %v1710 = vmul.f32 %v1703, 0.5
    %v1711 = vtanh.pop %v1710
    %v1712 = vmul.f32 %v1711, 0.5
    %v1713 = vadd.f32 %v1712, 0.5
    %v1714 = vtanh.pop %v1704
    %v1715 = vmul.f32 %v1705, 0.5
    %v1716 = vtanh.pop %v1715
    %v1717 = vmul.f32 %v1716, 0.5
    %v1718 = vadd.f32 %v1717, 0.5
    %v1719 = vmul.f32 %v1713, %v1415
    %v1720 = vmul.f32 %v1709, %v1714
    %v1721 = vadd.f32 %v1719, %v1720
    %v1722 = vtanh.pop %v1721
    %v1723 = vmul.f32 %v1718, %v1722
    %s1724 = scalar_lea.vmem [#allocation11], 24
    %1725 = vst [vmem:[%s1724] sm:$0xff] %v1723
    %s1726 = smul.u32 4, 4
    %s1727 = smul.addr %s1726, 8
    %s1728 = scalar_lea.vmem [#allocation4], %s1727
    %v1729 = vld [vmem:[%s1728] sm:$0xff]
    %v1730 = vld [vmem:[%s1728 + $0x8] sm:$0xff]
    %v1731 = vld [vmem:[%s1728 + $0x10] sm:$0xff]
    %v1732 = vld [vmem:[%s1728 + $0x18] sm:$0xff]
    %v1733 = vpack.c.bf16 %v1723, %v1723
    %v1734 = vld [vmem:[#allocation10] sm:$0xff]
    %v1735 = vld [vmem:[#allocation10 + $0x8] sm:$0xff]
    %v1736 = vld [vmem:[#allocation10 + $0x10] sm:$0xff]
    %v1737 = vld [vmem:[#allocation10 + $0x18] sm:$0xff]
    %v1738 = vld [vmem:[#allocation10 + $0x20] sm:$0xff]
    %v1739 = vld [vmem:[#allocation10 + $0x28] sm:$0xff]
    %v1740 = vld [vmem:[#allocation10 + $0x30] sm:$0xff]
    %v1741 = vld [vmem:[#allocation10 + $0x38] sm:$0xff]
    %v1742 = vld [vmem:[#allocation10 + $0x40] sm:$0xff]
    %v1743 = vld [vmem:[#allocation10 + $0x48] sm:$0xff]
    %v1744 = vld [vmem:[#allocation10 + $0x50] sm:$0xff]
    %v1745 = vld [vmem:[#allocation10 + $0x58] sm:$0xff]
    %v1746 = vld [vmem:[#allocation10 + $0x60] sm:$0xff]
    %v1747 = vld [vmem:[#allocation10 + $0x68] sm:$0xff]
    %v1748 = vld [vmem:[#allocation10 + $0x70] sm:$0xff]
    %v1749 = vld [vmem:[#allocation10 + $0x78] sm:$0xff]
    %v1750 = vld [vmem:[#allocation10 + $0x80] sm:$0xff]
    %v1751 = vld [vmem:[#allocation10 + $0x88] sm:$0xff]
    %v1752 = vld [vmem:[#allocation10 + $0x90] sm:$0xff]
    %v1753 = vld [vmem:[#allocation10 + $0x98] sm:$0xff]
    %v1754 = vld [vmem:[#allocation10 + $0xa0] sm:$0xff]
    %v1755 = vld [vmem:[#allocation10 + $0xa8] sm:$0xff]
    %v1756 = vld [vmem:[#allocation10 + $0xb0] sm:$0xff]
    %v1757 = vld [vmem:[#allocation10 + $0xb8] sm:$0xff]
    %v1758 = vld [vmem:[#allocation10 + $0xc0] sm:$0xff]
    %v1759 = vld [vmem:[#allocation10 + $0xc8] sm:$0xff]
    %v1760 = vld [vmem:[#allocation10 + $0xd0] sm:$0xff]
    %v1761 = vld [vmem:[#allocation10 + $0xd8] sm:$0xff]
    %v1762 = vld [vmem:[#allocation10 + $0xe0] sm:$0xff]
    %v1763 = vld [vmem:[#allocation10 + $0xe8] sm:$0xff]
    %v1764 = vld [vmem:[#allocation10 + $0xf0] sm:$0xff]
    %v1765 = vld [vmem:[#allocation10 + $0xf8] sm:$0xff]
    %v1798 = vunpack.c.l.b16 %v1734
    %v1799 = vunpack.c.h.b16 %v1734
    %v1800 = vunpack.c.l.b16 %v1735
    %v1801 = vunpack.c.h.b16 %v1735
    %v1802 = vunpack.c.l.b16 %v1736
    %v1803 = vunpack.c.h.b16 %v1736
    %v1804 = vunpack.c.l.b16 %v1737
    %v1805 = vunpack.c.h.b16 %v1737
    %v1806 = vunpack.c.l.b16 %v1738
    %v1807 = vunpack.c.h.b16 %v1738
    %v1808 = vunpack.c.l.b16 %v1739
    %v1809 = vunpack.c.h.b16 %v1739
    %v1810 = vunpack.c.l.b16 %v1740
    %v1811 = vunpack.c.h.b16 %v1740
    %v1812 = vunpack.c.l.b16 %v1741
    %v1813 = vunpack.c.h.b16 %v1741
    %v1814 = vunpack.c.l.b16 %v1742
    %v1815 = vunpack.c.h.b16 %v1742
    %v1816 = vunpack.c.l.b16 %v1743
    %v1817 = vunpack.c.h.b16 %v1743
    %v1818 = vunpack.c.l.b16 %v1744
    %v1819 = vunpack.c.h.b16 %v1744
    %v1820 = vunpack.c.l.b16 %v1745
    %v1821 = vunpack.c.h.b16 %v1745
    %v1822 = vunpack.c.l.b16 %v1746
    %v1823 = vunpack.c.h.b16 %v1746
    %v1824 = vunpack.c.l.b16 %v1747
    %v1825 = vunpack.c.h.b16 %v1747
    %v1826 = vunpack.c.l.b16 %v1748
    %v1827 = vunpack.c.h.b16 %v1748
    %v1828 = vunpack.c.l.b16 %v1749
    %v1829 = vunpack.c.h.b16 %v1749
    %v1830 = vunpack.c.l.b16 %v1750
    %v1831 = vunpack.c.h.b16 %v1750
    %v1832 = vunpack.c.l.b16 %v1751
    %v1833 = vunpack.c.h.b16 %v1751
    %v1834 = vunpack.c.l.b16 %v1752
    %v1835 = vunpack.c.h.b16 %v1752
    %v1836 = vunpack.c.l.b16 %v1753
    %v1837 = vunpack.c.h.b16 %v1753
    %v1838 = vunpack.c.l.b16 %v1754
    %v1839 = vunpack.c.h.b16 %v1754
    %v1840 = vunpack.c.l.b16 %v1755
    %v1841 = vunpack.c.h.b16 %v1755
    %v1842 = vunpack.c.l.b16 %v1756
    %v1843 = vunpack.c.h.b16 %v1756
    %v1844 = vunpack.c.l.b16 %v1757
    %v1845 = vunpack.c.h.b16 %v1757
    %v1846 = vunpack.c.l.b16 %v1758
    %v1847 = vunpack.c.h.b16 %v1758
    %v1848 = vunpack.c.l.b16 %v1759
    %v1849 = vunpack.c.h.b16 %v1759
    %v1850 = vunpack.c.l.b16 %v1760
    %v1851 = vunpack.c.h.b16 %v1760
    %v1852 = vunpack.c.l.b16 %v1761
    %v1853 = vunpack.c.h.b16 %v1761
    %v1854 = vunpack.c.l.b16 %v1762
    %v1855 = vunpack.c.h.b16 %v1762
    %v1856 = vunpack.c.l.b16 %v1763
    %v1857 = vunpack.c.h.b16 %v1763
    %v1858 = vunpack.c.l.b16 %v1764
    %v1859 = vunpack.c.h.b16 %v1764
    %v1860 = vunpack.c.l.b16 %v1765
    %v1861 = vunpack.c.h.b16 %v1765
    %v1862 = vpack.c.b16 %v1802, %v1798
    %v1863 = vpack.c.b16 %v1803, %v1799
    %v1864 = vpack.c.b16 %v1804, %v1800
    %v1865 = vpack.c.b16 %v1805, %v1801
    %v1866 = vpack.c.b16 %v1810, %v1806
    %v1867 = vpack.c.b16 %v1811, %v1807
    %v1868 = vpack.c.b16 %v1812, %v1808
    %v1869 = vpack.c.b16 %v1813, %v1809
    %v1870 = vpack.c.b16 %v1818, %v1814
    %v1871 = vpack.c.b16 %v1819, %v1815
    %v1872 = vpack.c.b16 %v1820, %v1816
    %v1873 = vpack.c.b16 %v1821, %v1817
    %v1874 = vpack.c.b16 %v1826, %v1822
    %v1875 = vpack.c.b16 %v1827, %v1823
    %v1876 = vpack.c.b16 %v1828, %v1824
    %v1877 = vpack.c.b16 %v1829, %v1825
    %v1878 = vpack.c.b16 %v1834, %v1830
    %v1879 = vpack.c.b16 %v1835, %v1831
    %v1880 = vpack.c.b16 %v1836, %v1832
    %v1881 = vpack.c.b16 %v1837, %v1833
    %v1882 = vpack.c.b16 %v1842, %v1838
    %v1883 = vpack.c.b16 %v1843, %v1839
    %v1884 = vpack.c.b16 %v1844, %v1840
    %v1885 = vpack.c.b16 %v1845, %v1841
    %v1886 = vpack.c.b16 %v1850, %v1846
    %v1887 = vpack.c.b16 %v1851, %v1847
    %v1888 = vpack.c.b16 %v1852, %v1848
    %v1889 = vpack.c.b16 %v1853, %v1849
    %v1890 = vpack.c.b16 %v1858, %v1854
    %v1891 = vpack.c.b16 %v1859, %v1855
    %v1892 = vpack.c.b16 %v1860, %v1856
    %v1893 = vpack.c.b16 %v1861, %v1857
    %1926 = vmatprep.subr.bf16.mxu0 %v1863
    %1927 = vmatpush1.bf16.msra.mxu0 %v1862
    %1928 = vmatprep.subr.bf16.mxu0 %v1867
    %1929 = vmatpush1.bf16.msra.mxu0 %v1866
    %1930 = vmatprep.subr.bf16.mxu0 %v1871
    %1931 = vmatpush1.bf16.msra.mxu0 %v1870
    %1932 = vmatprep.subr.bf16.mxu0 %v1875
    %1933 = vmatpush1.bf16.msra.mxu0 %v1874
    %1934 = vmatprep.subr.bf16.mxu0 %v1879
    %1935 = vmatpush1.bf16.msra.mxu0 %v1878
    %1936 = vmatprep.subr.bf16.mxu0 %v1883
    %1937 = vmatpush1.bf16.msra.mxu0 %v1882
    %1938 = vmatprep.subr.bf16.mxu0 %v1887
    %1939 = vmatpush1.bf16.msra.mxu0 %v1886
    %1940 = vmatprep.subr.bf16.mxu0 %v1891
    %1941 = vmatpush1.bf16.msra.mxu0 %v1890
    %1942 = vmatprep.subr.bf16.mxu0 0
    %1943 = vmatpush1.bf16.msra.mxu0 0
    %1944 = vmatprep.subr.bf16.mxu0 0
    %1945 = vmatpush1.bf16.msra.mxu0 0
    %1946 = vmatprep.subr.bf16.mxu0 0
    %1947 = vmatpush1.bf16.msra.mxu0 0
    %1948 = vmatprep.subr.bf16.mxu0 0
    %1949 = vmatpush1.bf16.msra.mxu0 0
    %1950 = vmatprep.subr.bf16.mxu0 0
    %1951 = vmatpush1.bf16.msra.mxu0 0
    %1952 = vmatprep.subr.bf16.mxu0 0
    %1953 = vmatpush1.bf16.msra.mxu0 0
    %1954 = vmatprep.subr.bf16.mxu0 0
    %1955 = vmatpush1.bf16.msra.mxu0 0
    %1956 = vmatprep.subr.bf16.mxu0 0
    %1957 = vmatpush1.bf16.msra.mxu0 0
    %1958 = vmatprep.mubr.bf16.mxu0 0
    %1959 = vmatmul.mubr.bf16.gmra.mrb[0].mxu0 %v1733
    %v1960 = vpop.f32.mrb[0].mxu0
    %v1961 = vadd.f32 0.0, %v1960
    %v1962 = vpop.f32.mrb[0].mxu0
    %v1963 = vadd.f32 0.0, %v1962
    %v1964 = vpop.f32.mrb[0].mxu0
    %v1965 = vpop.f32.mrb[0].mxu0
    %1966 = vdwg.mxu0
    %1967 = vmatprep.subr.bf16.mxu0 %v1865
    %1968 = vmatpush1.bf16.msra.mxu0 %v1864
    %1969 = vmatprep.subr.bf16.mxu0 %v1869
    %1970 = vmatpush1.bf16.msra.mxu0 %v1868
    %1971 = vmatprep.subr.bf16.mxu0 %v1873
    %1972 = vmatpush1.bf16.msra.mxu0 %v1872
    %1973 = vmatprep.subr.bf16.mxu0 %v1877
    %1974 = vmatpush1.bf16.msra.mxu0 %v1876
    %1975 = vmatprep.subr.bf16.mxu0 %v1881
    %1976 = vmatpush1.bf16.msra.mxu0 %v1880
    %1977 = vmatprep.subr.bf16.mxu0 %v1885
    %1978 = vmatpush1.bf16.msra.mxu0 %v1884
    %1979 = vmatprep.subr.bf16.mxu0 %v1889
    %1980 = vmatpush1.bf16.msra.mxu0 %v1888
    %1981 = vmatprep.subr.bf16.mxu0 %v1893
    %1982 = vmatpush1.bf16.msra.mxu0 %v1892
    %1983 = vmatprep.subr.bf16.mxu0 0
    %1984 = vmatpush1.bf16.msra.mxu0 0
    %1985 = vmatprep.subr.bf16.mxu0 0
    %1986 = vmatpush1.bf16.msra.mxu0 0
    %1987 = vmatprep.subr.bf16.mxu0 0
    %1988 = vmatpush1.bf16.msra.mxu0 0
    %1989 = vmatprep.subr.bf16.mxu0 0
    %1990 = vmatpush1.bf16.msra.mxu0 0
    %1991 = vmatprep.subr.bf16.mxu0 0
    %1992 = vmatpush1.bf16.msra.mxu0 0
    %1993 = vmatprep.subr.bf16.mxu0 0
    %1994 = vmatpush1.bf16.msra.mxu0 0
    %1995 = vmatprep.subr.bf16.mxu0 0
    %1996 = vmatpush1.bf16.msra.mxu0 0
    %1997 = vmatprep.subr.bf16.mxu0 0
    %1998 = vmatpush1.bf16.msra.mxu0 0
    %1999 = vmatprep.mubr.bf16.mxu0 0
    %2000 = vmatmul.mubr.bf16.gmra.mrb[0].mxu0 %v1733
    %v2001 = vpop.f32.mrb[0].mxu0
    %v2002 = vadd.f32 0.0, %v2001
    %v2003 = vpop.f32.mrb[0].mxu0
    %v2004 = vadd.f32 0.0, %v2003
    %v2005 = vpop.f32.mrb[0].mxu0
    %v2006 = vpop.f32.mrb[0].mxu0
    %2007 = vdwg.mxu0
    %v2008 = vadd.f32 %v1729, %v1961
    %v2009 = vadd.f32 %v1730, %v1963
    %v2010 = vadd.f32 %v1731, %v2002
    %v2011 = vadd.f32 %v1732, %v2004
    %v2012 = vmul.f32 %v2008, 0.5
    %v2013 = vtanh.pop %v2012
    %v2014 = vmul.f32 %v2013, 0.5
    %v2015 = vadd.f32 %v2014, 0.5
    %v2016 = vmul.f32 %v2009, 0.5
    %v2017 = vtanh.pop %v2016
    %v2018 = vmul.f32 %v2017, 0.5
    %v2019 = vadd.f32 %v2018, 0.5
    %v2020 = vtanh.pop %v2010
    %v2021 = vmul.f32 %v2011, 0.5
    %v2022 = vtanh.pop %v2021
    %v2023 = vmul.f32 %v2022, 0.5
    %v2024 = vadd.f32 %v2023, 0.5
    %v2025 = vmul.f32 %v2019, %v1721
    %v2026 = vmul.f32 %v2015, %v2020
    %v2027 = vadd.f32 %v2025, %v2026
    %v2028 = vtanh.pop %v2027
    %v2029 = vmul.f32 %v2024, %v2028
    %s2030 = scalar_lea.vmem [#allocation11], 32
    %2031 = vst [vmem:[%s2030] sm:$0xff] %v2029
    %s2032 = smul.u32 5, 4
    %s2033 = smul.addr %s2032, 8
    %s2034 = scalar_lea.vmem [#allocation4], %s2033
    %v2035 = vld [vmem:[%s2034] sm:$0xff]
    %v2036 = vld [vmem:[%s2034 + $0x8] sm:$0xff]
    %v2037 = vld [vmem:[%s2034 + $0x10] sm:$0xff]
    %v2038 = vld [vmem:[%s2034 + $0x18] sm:$0xff]
    %v2039 = vpack.c.bf16 %v2029, %v2029
    %v2040 = vld [vmem:[#allocation10] sm:$0xff]
    %v2041 = vld [vmem:[#allocation10 + $0x8] sm:$0xff]
    %v2042 = vld [vmem:[#allocation10 + $0x10] sm:$0xff]
    %v2043 = vld [vmem:[#allocation10 + $0x18] sm:$0xff]
    %v2044 = vld [vmem:[#allocation10 + $0x20] sm:$0xff]
    %v2045 = vld [vmem:[#allocation10 + $0x28] sm:$0xff]
    %v2046 = vld [vmem:[#allocation10 + $0x30] sm:$0xff]
    %v2047 = vld [vmem:[#allocation10 + $0x38] sm:$0xff]
    %v2048 = vld [vmem:[#allocation10 + $0x40] sm:$0xff]
    %v2049 = vld [vmem:[#allocation10 + $0x48] sm:$0xff]
    %v2050 = vld [vmem:[#allocation10 + $0x50] sm:$0xff]
    %v2051 = vld [vmem:[#allocation10 + $0x58] sm:$0xff]
    %v2052 = vld [vmem:[#allocation10 + $0x60] sm:$0xff]
    %v2053 = vld [vmem:[#allocation10 + $0x68] sm:$0xff]
    %v2054 = vld [vmem:[#allocation10 + $0x70] sm:$0xff]
    %v2055 = vld [vmem:[#allocation10 + $0x78] sm:$0xff]
    %v2056 = vld [vmem:[#allocation10 + $0x80] sm:$0xff]
    %v2057 = vld [vmem:[#allocation10 + $0x88] sm:$0xff]
    %v2058 = vld [vmem:[#allocation10 + $0x90] sm:$0xff]
    %v2059 = vld [vmem:[#allocation10 + $0x98] sm:$0xff]
    %v2060 = vld [vmem:[#allocation10 + $0xa0] sm:$0xff]
    %v2061 = vld [vmem:[#allocation10 + $0xa8] sm:$0xff]
    %v2062 = vld [vmem:[#allocation10 + $0xb0] sm:$0xff]
    %v2063 = vld [vmem:[#allocation10 + $0xb8] sm:$0xff]
    %v2064 = vld [vmem:[#allocation10 + $0xc0] sm:$0xff]
    %v2065 = vld [vmem:[#allocation10 + $0xc8] sm:$0xff]
    %v2066 = vld [vmem:[#allocation10 + $0xd0] sm:$0xff]
    %v2067 = vld [vmem:[#allocation10 + $0xd8] sm:$0xff]
    %v2068 = vld [vmem:[#allocation10 + $0xe0] sm:$0xff]
    %v2069 = vld [vmem:[#allocation10 + $0xe8] sm:$0xff]
    %v2070 = vld [vmem:[#allocation10 + $0xf0] sm:$0xff]
    %v2071 = vld [vmem:[#allocation10 + $0xf8] sm:$0xff]
    %v2104 = vunpack.c.l.b16 %v2040
    %v2105 = vunpack.c.h.b16 %v2040
    %v2106 = vunpack.c.l.b16 %v2041
    %v2107 = vunpack.c.h.b16 %v2041
    %v2108 = vunpack.c.l.b16 %v2042
    %v2109 = vunpack.c.h.b16 %v2042
    %v2110 = vunpack.c.l.b16 %v2043
    %v2111 = vunpack.c.h.b16 %v2043
    %v2112 = vunpack.c.l.b16 %v2044
    %v2113 = vunpack.c.h.b16 %v2044
    %v2114 = vunpack.c.l.b16 %v2045
    %v2115 = vunpack.c.h.b16 %v2045
    %v2116 = vunpack.c.l.b16 %v2046
    %v2117 = vunpack.c.h.b16 %v2046
    %v2118 = vunpack.c.l.b16 %v2047
    %v2119 = vunpack.c.h.b16 %v2047
    %v2120 = vunpack.c.l.b16 %v2048
    %v2121 = vunpack.c.h.b16 %v2048
    %v2122 = vunpack.c.l.b16 %v2049
    %v2123 = vunpack.c.h.b16 %v2049
    %v2124 = vunpack.c.l.b16 %v2050
    %v2125 = vunpack.c.h.b16 %v2050
    %v2126 = vunpack.c.l.b16 %v2051
    %v2127 = vunpack.c.h.b16 %v2051
    %v2128 = vunpack.c.l.b16 %v2052
    %v2129 = vunpack.c.h.b16 %v2052
    %v2130 = vunpack.c.l.b16 %v2053
    %v2131 = vunpack.c.h.b16 %v2053
    %v2132 = vunpack.c.l.b16 %v2054
    %v2133 = vunpack.c.h.b16 %v2054
    %v2134 = vunpack.c.l.b16 %v2055
    %v2135 = vunpack.c.h.b16 %v2055
    %v2136 = vunpack.c.l.b16 %v2056
    %v2137 = vunpack.c.h.b16 %v2056
    %v2138 = vunpack.c.l.b16 %v2057
    %v2139 = vunpack.c.h.b16 %v2057
    %v2140 = vunpack.c.l.b16 %v2058
    %v2141 = vunpack.c.h.b16 %v2058
    %v2142 = vunpack.c.l.b16 %v2059
    %v2143 = vunpack.c.h.b16 %v2059
    %v2144 = vunpack.c.l.b16 %v2060
    %v2145 = vunpack.c.h.b16 %v2060
    %v2146 = vunpack.c.l.b16 %v2061
    %v2147 = vunpack.c.h.b16 %v2061
    %v2148 = vunpack.c.l.b16 %v2062
    %v2149 = vunpack.c.h.b16 %v2062
    %v2150 = vunpack.c.l.b16 %v2063
    %v2151 = vunpack.c.h.b16 %v2063
    %v2152 = vunpack.c.l.b16 %v2064
    %v2153 = vunpack.c.h.b16 %v2064
    %v2154 = vunpack.c.l.b16 %v2065
    %v2155 = vunpack.c.h.b16 %v2065
    %v2156 = vunpack.c.l.b16 %v2066
    %v2157 = vunpack.c.h.b16 %v2066
    %v2158 = vunpack.c.l.b16 %v2067
    %v2159 = vunpack.c.h.b16 %v2067
    %v2160 = vunpack.c.l.b16 %v2068
    %v2161 = vunpack.c.h.b16 %v2068
    %v2162 = vunpack.c.l.b16 %v2069
    %v2163 = vunpack.c.h.b16 %v2069
    %v2164 = vunpack.c.l.b16 %v2070
    %v2165 = vunpack.c.h.b16 %v2070
    %v2166 = vunpack.c.l.b16 %v2071
    %v2167 = vunpack.c.h.b16 %v2071
    %v2168 = vpack.c.b16 %v2108, %v2104
    %v2169 = vpack.c.b16 %v2109, %v2105
    %v2170 = vpack.c.b16 %v2110, %v2106
    %v2171 = vpack.c.b16 %v2111, %v2107
    %v2172 = vpack.c.b16 %v2116, %v2112
    %v2173 = vpack.c.b16 %v2117, %v2113
    %v2174 = vpack.c.b16 %v2118, %v2114
    %v2175 = vpack.c.b16 %v2119, %v2115
    %v2176 = vpack.c.b16 %v2124, %v2120
    %v2177 = vpack.c.b16 %v2125, %v2121
    %v2178 = vpack.c.b16 %v2126, %v2122
    %v2179 = vpack.c.b16 %v2127, %v2123
    %v2180 = vpack.c.b16 %v2132, %v2128
    %v2181 = vpack.c.b16 %v2133, %v2129
    %v2182 = vpack.c.b16 %v2134, %v2130
    %v2183 = vpack.c.b16 %v2135, %v2131
    %v2184 = vpack.c.b16 %v2140, %v2136
    %v2185 = vpack.c.b16 %v2141, %v2137
    %v2186 = vpack.c.b16 %v2142, %v2138
    %v2187 = vpack.c.b16 %v2143, %v2139
    %v2188 = vpack.c.b16 %v2148, %v2144
    %v2189 = vpack.c.b16 %v2149, %v2145
    %v2190 = vpack.c.b16 %v2150, %v2146
    %v2191 = vpack.c.b16 %v2151, %v2147
    %v2192 = vpack.c.b16 %v2156, %v2152
    %v2193 = vpack.c.b16 %v2157, %v2153
    %v2194 = vpack.c.b16 %v2158, %v2154
    %v2195 = vpack.c.b16 %v2159, %v2155
    %v2196 = vpack.c.b16 %v2164, %v2160
    %v2197 = vpack.c.b16 %v2165, %v2161
    %v2198 = vpack.c.b16 %v2166, %v2162
    %v2199 = vpack.c.b16 %v2167, %v2163
    %2232 = vmatprep.subr.bf16.mxu0 %v2169
    %2233 = vmatpush1.bf16.msra.mxu0 %v2168
    %2234 = vmatprep.subr.bf16.mxu0 %v2173
    %2235 = vmatpush1.bf16.msra.mxu0 %v2172
    %2236 = vmatprep.subr.bf16.mxu0 %v2177
    %2237 = vmatpush1.bf16.msra.mxu0 %v2176
    %2238 = vmatprep.subr.bf16.mxu0 %v2181
    %2239 = vmatpush1.bf16.msra.mxu0 %v2180
    %2240 = vmatprep.subr.bf16.mxu0 %v2185
    %2241 = vmatpush1.bf16.msra.mxu0 %v2184
    %2242 = vmatprep.subr.bf16.mxu0 %v2189
    %2243 = vmatpush1.bf16.msra.mxu0 %v2188
    %2244 = vmatprep.subr.bf16.mxu0 %v2193
    %2245 = vmatpush1.bf16.msra.mxu0 %v2192
    %2246 = vmatprep.subr.bf16.mxu0 %v2197
    %2247 = vmatpush1.bf16.msra.mxu0 %v2196
    %2248 = vmatprep.subr.bf16.mxu0 0
    %2249 = vmatpush1.bf16.msra.mxu0 0
    %2250 = vmatprep.subr.bf16.mxu0 0
    %2251 = vmatpush1.bf16.msra.mxu0 0
    %2252 = vmatprep.subr.bf16.mxu0 0
    %2253 = vmatpush1.bf16.msra.mxu0 0
    %2254 = vmatprep.subr.bf16.mxu0 0
    %2255 = vmatpush1.bf16.msra.mxu0 0
    %2256 = vmatprep.subr.bf16.mxu0 0
    %2257 = vmatpush1.bf16.msra.mxu0 0
    %2258 = vmatprep.subr.bf16.mxu0 0
    %2259 = vmatpush1.bf16.msra.mxu0 0
    %2260 = vmatprep.subr.bf16.mxu0 0
    %2261 = vmatpush1.bf16.msra.mxu0 0
    %2262 = vmatprep.subr.bf16.mxu0 0
    %2263 = vmatpush1.bf16.msra.mxu0 0
    %2264 = vmatprep.mubr.bf16.mxu0 0
    %2265 = vmatmul.mubr.bf16.gmra.mrb[0].mxu0 %v2039
    %v2266 = vpop.f32.mrb[0].mxu0
    %v2267 = vadd.f32 0.0, %v2266
    %v2268 = vpop.f32.mrb[0].mxu0
    %v2269 = vadd.f32 0.0, %v2268
    %v2270 = vpop.f32.mrb[0].mxu0
    %v2271 = vpop.f32.mrb[0].mxu0
    %2272 = vdwg.mxu0
    %2273 = vmatprep.subr.bf16.mxu0 %v2171
    %2274 = vmatpush1.bf16.msra.mxu0 %v2170
    %2275 = vmatprep.subr.bf16.mxu0 %v2175
    %2276 = vmatpush1.bf16.msra.mxu0 %v2174
    %2277 = vmatprep.subr.bf16.mxu0 %v2179
    %2278 = vmatpush1.bf16.msra.mxu0 %v2178
    %2279 = vmatprep.subr.bf16.mxu0 %v2183
    %2280 = vmatpush1.bf16.msra.mxu0 %v2182
    %2281 = vmatprep.subr.bf16.mxu0 %v2187
    %2282 = vmatpush1.bf16.msra.mxu0 %v2186
    %2283 = vmatprep.subr.bf16.mxu0 %v2191
    %2284 = vmatpush1.bf16.msra.mxu0 %v2190
    %2285 = vmatprep.subr.bf16.mxu0 %v2195
    %2286 = vmatpush1.bf16.msra.mxu0 %v2194
    %2287 = vmatprep.subr.bf16.mxu0 %v2199
    %2288 = vmatpush1.bf16.msra.mxu0 %v2198
    %2289 = vmatprep.subr.bf16.mxu0 0
    %2290 = vmatpush1.bf16.msra.mxu0 0
    %2291 = vmatprep.subr.bf16.mxu0 0
    %2292 = vmatpush1.bf16.msra.mxu0 0
    %2293 = vmatprep.subr.bf16.mxu0 0
    %2294 = vmatpush1.bf16.msra.mxu0 0
    %2295 = vmatprep.subr.bf16.mxu0 0
    %2296 = vmatpush1.bf16.msra.mxu0 0
    %2297 = vmatprep.subr.bf16.mxu0 0
    %2298 = vmatpush1.bf16.msra.mxu0 0
    %2299 = vmatprep.subr.bf16.mxu0 0
    %2300 = vmatpush1.bf16.msra.mxu0 0
    %2301 = vmatprep.subr.bf16.mxu0 0
    %2302 = vmatpush1.bf16.msra.mxu0 0
    %2303 = vmatprep.subr.bf16.mxu0 0
    %2304 = vmatpush1.bf16.msra.mxu0 0
    %2305 = vmatprep.mubr.bf16.mxu0 0
    %2306 = vmatmul.mubr.bf16.gmra.mrb[0].mxu0 %v2039
    %v2307 = vpop.f32.mrb[0].mxu0
    %v2308 = vadd.f32 0.0, %v2307
    %v2309 = vpop.f32.mrb[0].mxu0
    %v2310 = vadd.f32 0.0, %v2309
    %v2311 = vpop.f32.mrb[0].mxu0
    %v2312 = vpop.f32.mrb[0].mxu0
    %2313 = vdwg.mxu0
    %v2314 = vadd.f32 %v2035, %v2267
    %v2315 = vadd.f32 %v2036, %v2269
    %v2316 = vadd.f32 %v2037, %v2308
    %v2317 = vadd.f32 %v2038, %v2310
    %v2318 = vmul.f32 %v2314, 0.5
    %v2319 = vtanh.pop %v2318
    %v2320 = vmul.f32 %v2319, 0.5
    %v2321 = vadd.f32 %v2320, 0.5
    %v2322 = vmul.f32 %v2315, 0.5
    %v2323 = vtanh.pop %v2322
    %v2324 = vmul.f32 %v2323, 0.5
    %v2325 = vadd.f32 %v2324, 0.5
    %v2326 = vtanh.pop %v2316
    %v2327 = vmul.f32 %v2317, 0.5
    %v2328 = vtanh.pop %v2327
    %v2329 = vmul.f32 %v2328, 0.5
    %v2330 = vadd.f32 %v2329, 0.5
    %v2331 = vmul.f32 %v2325, %v2027
    %v2332 = vmul.f32 %v2321, %v2326
    %v2333 = vadd.f32 %v2331, %v2332
    %v2334 = vtanh.pop %v2333
    %v2335 = vmul.f32 %v2330, %v2334
    %s2336 = scalar_lea.vmem [#allocation11], 40
    %2337 = vst [vmem:[%s2336] sm:$0xff] %v2335
    %s2338 = smul.u32 6, 4
    %s2339 = smul.addr %s2338, 8
    %s2340 = scalar_lea.vmem [#allocation4], %s2339
    %v2341 = vld [vmem:[%s2340] sm:$0xff]
    %v2342 = vld [vmem:[%s2340 + $0x8] sm:$0xff]
    %v2343 = vld [vmem:[%s2340 + $0x10] sm:$0xff]
    %v2344 = vld [vmem:[%s2340 + $0x18] sm:$0xff]
    %v2345 = vpack.c.bf16 %v2335, %v2335
    %v2346 = vld [vmem:[#allocation10] sm:$0xff]
    %v2347 = vld [vmem:[#allocation10 + $0x8] sm:$0xff]
    %v2348 = vld [vmem:[#allocation10 + $0x10] sm:$0xff]
    %v2349 = vld [vmem:[#allocation10 + $0x18] sm:$0xff]
    %v2350 = vld [vmem:[#allocation10 + $0x20] sm:$0xff]
    %v2351 = vld [vmem:[#allocation10 + $0x28] sm:$0xff]
    %v2352 = vld [vmem:[#allocation10 + $0x30] sm:$0xff]
    %v2353 = vld [vmem:[#allocation10 + $0x38] sm:$0xff]
    %v2354 = vld [vmem:[#allocation10 + $0x40] sm:$0xff]
    %v2355 = vld [vmem:[#allocation10 + $0x48] sm:$0xff]
    %v2356 = vld [vmem:[#allocation10 + $0x50] sm:$0xff]
    %v2357 = vld [vmem:[#allocation10 + $0x58] sm:$0xff]
    %v2358 = vld [vmem:[#allocation10 + $0x60] sm:$0xff]
    %v2359 = vld [vmem:[#allocation10 + $0x68] sm:$0xff]
    %v2360 = vld [vmem:[#allocation10 + $0x70] sm:$0xff]
    %v2361 = vld [vmem:[#allocation10 + $0x78] sm:$0xff]
    %v2362 = vld [vmem:[#allocation10 + $0x80] sm:$0xff]
    %v2363 = vld [vmem:[#allocation10 + $0x88] sm:$0xff]
    %v2364 = vld [vmem:[#allocation10 + $0x90] sm:$0xff]
    %v2365 = vld [vmem:[#allocation10 + $0x98] sm:$0xff]
    %v2366 = vld [vmem:[#allocation10 + $0xa0] sm:$0xff]
    %v2367 = vld [vmem:[#allocation10 + $0xa8] sm:$0xff]
    %v2368 = vld [vmem:[#allocation10 + $0xb0] sm:$0xff]
    %v2369 = vld [vmem:[#allocation10 + $0xb8] sm:$0xff]
    %v2370 = vld [vmem:[#allocation10 + $0xc0] sm:$0xff]
    %v2371 = vld [vmem:[#allocation10 + $0xc8] sm:$0xff]
    %v2372 = vld [vmem:[#allocation10 + $0xd0] sm:$0xff]
    %v2373 = vld [vmem:[#allocation10 + $0xd8] sm:$0xff]
    %v2374 = vld [vmem:[#allocation10 + $0xe0] sm:$0xff]
    %v2375 = vld [vmem:[#allocation10 + $0xe8] sm:$0xff]
    %v2376 = vld [vmem:[#allocation10 + $0xf0] sm:$0xff]
    %v2377 = vld [vmem:[#allocation10 + $0xf8] sm:$0xff]
    %v2410 = vunpack.c.l.b16 %v2346
    %v2411 = vunpack.c.h.b16 %v2346
    %v2412 = vunpack.c.l.b16 %v2347
    %v2413 = vunpack.c.h.b16 %v2347
    %v2414 = vunpack.c.l.b16 %v2348
    %v2415 = vunpack.c.h.b16 %v2348
    %v2416 = vunpack.c.l.b16 %v2349
    %v2417 = vunpack.c.h.b16 %v2349
    %v2418 = vunpack.c.l.b16 %v2350
    %v2419 = vunpack.c.h.b16 %v2350
    %v2420 = vunpack.c.l.b16 %v2351
    %v2421 = vunpack.c.h.b16 %v2351
    %v2422 = vunpack.c.l.b16 %v2352
    %v2423 = vunpack.c.h.b16 %v2352
    %v2424 = vunpack.c.l.b16 %v2353
    %v2425 = vunpack.c.h.b16 %v2353
    %v2426 = vunpack.c.l.b16 %v2354
    %v2427 = vunpack.c.h.b16 %v2354
    %v2428 = vunpack.c.l.b16 %v2355
    %v2429 = vunpack.c.h.b16 %v2355
    %v2430 = vunpack.c.l.b16 %v2356
    %v2431 = vunpack.c.h.b16 %v2356
    %v2432 = vunpack.c.l.b16 %v2357
    %v2433 = vunpack.c.h.b16 %v2357
    %v2434 = vunpack.c.l.b16 %v2358
    %v2435 = vunpack.c.h.b16 %v2358
    %v2436 = vunpack.c.l.b16 %v2359
    %v2437 = vunpack.c.h.b16 %v2359
    %v2438 = vunpack.c.l.b16 %v2360
    %v2439 = vunpack.c.h.b16 %v2360
    %v2440 = vunpack.c.l.b16 %v2361
    %v2441 = vunpack.c.h.b16 %v2361
    %v2442 = vunpack.c.l.b16 %v2362
    %v2443 = vunpack.c.h.b16 %v2362
    %v2444 = vunpack.c.l.b16 %v2363
    %v2445 = vunpack.c.h.b16 %v2363
    %v2446 = vunpack.c.l.b16 %v2364
    %v2447 = vunpack.c.h.b16 %v2364
    %v2448 = vunpack.c.l.b16 %v2365
    %v2449 = vunpack.c.h.b16 %v2365
    %v2450 = vunpack.c.l.b16 %v2366
    %v2451 = vunpack.c.h.b16 %v2366
    %v2452 = vunpack.c.l.b16 %v2367
    %v2453 = vunpack.c.h.b16 %v2367
    %v2454 = vunpack.c.l.b16 %v2368
    %v2455 = vunpack.c.h.b16 %v2368
    %v2456 = vunpack.c.l.b16 %v2369
    %v2457 = vunpack.c.h.b16 %v2369
    %v2458 = vunpack.c.l.b16 %v2370
    %v2459 = vunpack.c.h.b16 %v2370
    %v2460 = vunpack.c.l.b16 %v2371
    %v2461 = vunpack.c.h.b16 %v2371
    %v2462 = vunpack.c.l.b16 %v2372
    %v2463 = vunpack.c.h.b16 %v2372
    %v2464 = vunpack.c.l.b16 %v2373
    %v2465 = vunpack.c.h.b16 %v2373
    %v2466 = vunpack.c.l.b16 %v2374
    %v2467 = vunpack.c.h.b16 %v2374
    %v2468 = vunpack.c.l.b16 %v2375
    %v2469 = vunpack.c.h.b16 %v2375
    %v2470 = vunpack.c.l.b16 %v2376
    %v2471 = vunpack.c.h.b16 %v2376
    %v2472 = vunpack.c.l.b16 %v2377
    %v2473 = vunpack.c.h.b16 %v2377
    %v2474 = vpack.c.b16 %v2414, %v2410
    %v2475 = vpack.c.b16 %v2415, %v2411
    %v2476 = vpack.c.b16 %v2416, %v2412
    %v2477 = vpack.c.b16 %v2417, %v2413
    %v2478 = vpack.c.b16 %v2422, %v2418
    %v2479 = vpack.c.b16 %v2423, %v2419
    %v2480 = vpack.c.b16 %v2424, %v2420
    %v2481 = vpack.c.b16 %v2425, %v2421
    %v2482 = vpack.c.b16 %v2430, %v2426
    %v2483 = vpack.c.b16 %v2431, %v2427
    %v2484 = vpack.c.b16 %v2432, %v2428
    %v2485 = vpack.c.b16 %v2433, %v2429
    %v2486 = vpack.c.b16 %v2438, %v2434
    %v2487 = vpack.c.b16 %v2439, %v2435
    %v2488 = vpack.c.b16 %v2440, %v2436
    %v2489 = vpack.c.b16 %v2441, %v2437
    %v2490 = vpack.c.b16 %v2446, %v2442
    %v2491 = vpack.c.b16 %v2447, %v2443
    %v2492 = vpack.c.b16 %v2448, %v2444
    %v2493 = vpack.c.b16 %v2449, %v2445
    %v2494 = vpack.c.b16 %v2454, %v2450
    %v2495 = vpack.c.b16 %v2455, %v2451
    %v2496 = vpack.c.b16 %v2456, %v2452
    %v2497 = vpack.c.b16 %v2457, %v2453
    %v2498 = vpack.c.b16 %v2462, %v2458
    %v2499 = vpack.c.b16 %v2463, %v2459
    %v2500 = vpack.c.b16 %v2464, %v2460
    %v2501 = vpack.c.b16 %v2465, %v2461
    %v2502 = vpack.c.b16 %v2470, %v2466
    %v2503 = vpack.c.b16 %v2471, %v2467
    %v2504 = vpack.c.b16 %v2472, %v2468
    %v2505 = vpack.c.b16 %v2473, %v2469
    %2538 = vmatprep.subr.bf16.mxu0 %v2475
    %2539 = vmatpush1.bf16.msra.mxu0 %v2474
    %2540 = vmatprep.subr.bf16.mxu0 %v2479
    %2541 = vmatpush1.bf16.msra.mxu0 %v2478
    %2542 = vmatprep.subr.bf16.mxu0 %v2483
    %2543 = vmatpush1.bf16.msra.mxu0 %v2482
    %2544 = vmatprep.subr.bf16.mxu0 %v2487
    %2545 = vmatpush1.bf16.msra.mxu0 %v2486
    %2546 = vmatprep.subr.bf16.mxu0 %v2491
    %2547 = vmatpush1.bf16.msra.mxu0 %v2490
    %2548 = vmatprep.subr.bf16.mxu0 %v2495
    %2549 = vmatpush1.bf16.msra.mxu0 %v2494
    %2550 = vmatprep.subr.bf16.mxu0 %v2499
    %2551 = vmatpush1.bf16.msra.mxu0 %v2498
    %2552 = vmatprep.subr.bf16.mxu0 %v2503
    %2553 = vmatpush1.bf16.msra.mxu0 %v2502
    %2554 = vmatprep.subr.bf16.mxu0 0
    %2555 = vmatpush1.bf16.msra.mxu0 0
    %2556 = vmatprep.subr.bf16.mxu0 0
    %2557 = vmatpush1.bf16.msra.mxu0 0
    %2558 = vmatprep.subr.bf16.mxu0 0
    %2559 = vmatpush1.bf16.msra.mxu0 0
    %2560 = vmatprep.subr.bf16.mxu0 0
    %2561 = vmatpush1.bf16.msra.mxu0 0
    %2562 = vmatprep.subr.bf16.mxu0 0
    %2563 = vmatpush1.bf16.msra.mxu0 0
    %2564 = vmatprep.subr.bf16.mxu0 0
    %2565 = vmatpush1.bf16.msra.mxu0 0
    %2566 = vmatprep.subr.bf16.mxu0 0
    %2567 = vmatpush1.bf16.msra.mxu0 0
    %2568 = vmatprep.subr.bf16.mxu0 0
    %2569 = vmatpush1.bf16.msra.mxu0 0
    %2570 = vmatprep.mubr.bf16.mxu0 0
    %2571 = vmatmul.mubr.bf16.gmra.mrb[0].mxu0 %v2345
    %v2572 = vpop.f32.mrb[0].mxu0
    %v2573 = vadd.f32 0.0, %v2572
    %v2574 = vpop.f32.mrb[0].mxu0
    %v2575 = vadd.f32 0.0, %v2574
    %v2576 = vpop.f32.mrb[0].mxu0
    %v2577 = vpop.f32.mrb[0].mxu0
    %2578 = vdwg.mxu0
    %2579 = vmatprep.subr.bf16.mxu0 %v2477
    %2580 = vmatpush1.bf16.msra.mxu0 %v2476
    %2581 = vmatprep.subr.bf16.mxu0 %v2481
    %2582 = vmatpush1.bf16.msra.mxu0 %v2480
    %2583 = vmatprep.subr.bf16.mxu0 %v2485
    %2584 = vmatpush1.bf16.msra.mxu0 %v2484
    %2585 = vmatprep.subr.bf16.mxu0 %v2489
    %2586 = vmatpush1.bf16.msra.mxu0 %v2488
    %2587 = vmatprep.subr.bf16.mxu0 %v2493
    %2588 = vmatpush1.bf16.msra.mxu0 %v2492
    %2589 = vmatprep.subr.bf16.mxu0 %v2497
    %2590 = vmatpush1.bf16.msra.mxu0 %v2496
    %2591 = vmatprep.subr.bf16.mxu0 %v2501
    %2592 = vmatpush1.bf16.msra.mxu0 %v2500
    %2593 = vmatprep.subr.bf16.mxu0 %v2505
    %2594 = vmatpush1.bf16.msra.mxu0 %v2504
    %2595 = vmatprep.subr.bf16.mxu0 0
    %2596 = vmatpush1.bf16.msra.mxu0 0
    %2597 = vmatprep.subr.bf16.mxu0 0
    %2598 = vmatpush1.bf16.msra.mxu0 0
    %2599 = vmatprep.subr.bf16.mxu0 0
    %2600 = vmatpush1.bf16.msra.mxu0 0
    %2601 = vmatprep.subr.bf16.mxu0 0
    %2602 = vmatpush1.bf16.msra.mxu0 0
    %2603 = vmatprep.subr.bf16.mxu0 0
    %2604 = vmatpush1.bf16.msra.mxu0 0
    %2605 = vmatprep.subr.bf16.mxu0 0
    %2606 = vmatpush1.bf16.msra.mxu0 0
    %2607 = vmatprep.subr.bf16.mxu0 0
    %2608 = vmatpush1.bf16.msra.mxu0 0
    %2609 = vmatprep.subr.bf16.mxu0 0
    %2610 = vmatpush1.bf16.msra.mxu0 0
    %2611 = vmatprep.mubr.bf16.mxu0 0
    %2612 = vmatmul.mubr.bf16.gmra.mrb[0].mxu0 %v2345
    %v2613 = vpop.f32.mrb[0].mxu0
    %v2614 = vadd.f32 0.0, %v2613
    %v2615 = vpop.f32.mrb[0].mxu0
    %v2616 = vadd.f32 0.0, %v2615
    %v2617 = vpop.f32.mrb[0].mxu0
    %v2618 = vpop.f32.mrb[0].mxu0
    %2619 = vdwg.mxu0
    %v2620 = vadd.f32 %v2341, %v2573
    %v2621 = vadd.f32 %v2342, %v2575
    %v2622 = vadd.f32 %v2343, %v2614
    %v2623 = vadd.f32 %v2344, %v2616
    %v2624 = vmul.f32 %v2620, 0.5
    %v2625 = vtanh.pop %v2624
    %v2626 = vmul.f32 %v2625, 0.5
    %v2627 = vadd.f32 %v2626, 0.5
    %v2628 = vmul.f32 %v2621, 0.5
    %v2629 = vtanh.pop %v2628
    %v2630 = vmul.f32 %v2629, 0.5
    %v2631 = vadd.f32 %v2630, 0.5
    %v2632 = vtanh.pop %v2622
    %v2633 = vmul.f32 %v2623, 0.5
    %v2634 = vtanh.pop %v2633
    %v2635 = vmul.f32 %v2634, 0.5
    %v2636 = vadd.f32 %v2635, 0.5
    %v2637 = vmul.f32 %v2631, %v2333
    %v2638 = vmul.f32 %v2627, %v2632
    %v2639 = vadd.f32 %v2637, %v2638
    %v2640 = vtanh.pop %v2639
    %v2641 = vmul.f32 %v2636, %v2640
    %s2642 = scalar_lea.vmem [#allocation11], 48
    %2643 = vst [vmem:[%s2642] sm:$0xff] %v2641
    %s2644 = smul.u32 7, 4
    %s2645 = smul.addr %s2644, 8
    %s2646 = scalar_lea.vmem [#allocation4], %s2645
    %v2647 = vld [vmem:[%s2646] sm:$0xff]
    %v2648 = vld [vmem:[%s2646 + $0x8] sm:$0xff]
    %v2649 = vld [vmem:[%s2646 + $0x10] sm:$0xff]
    %v2650 = vld [vmem:[%s2646 + $0x18] sm:$0xff]
    %v2651 = vpack.c.bf16 %v2641, %v2641
    %v2652 = vld [vmem:[#allocation10] sm:$0xff]
    %v2653 = vld [vmem:[#allocation10 + $0x8] sm:$0xff]
    %v2654 = vld [vmem:[#allocation10 + $0x10] sm:$0xff]
    %v2655 = vld [vmem:[#allocation10 + $0x18] sm:$0xff]
    %v2656 = vld [vmem:[#allocation10 + $0x20] sm:$0xff]
    %v2657 = vld [vmem:[#allocation10 + $0x28] sm:$0xff]
    %v2658 = vld [vmem:[#allocation10 + $0x30] sm:$0xff]
    %v2659 = vld [vmem:[#allocation10 + $0x38] sm:$0xff]
    %v2660 = vld [vmem:[#allocation10 + $0x40] sm:$0xff]
    %v2661 = vld [vmem:[#allocation10 + $0x48] sm:$0xff]
    %v2662 = vld [vmem:[#allocation10 + $0x50] sm:$0xff]
    %v2663 = vld [vmem:[#allocation10 + $0x58] sm:$0xff]
    %v2664 = vld [vmem:[#allocation10 + $0x60] sm:$0xff]
    %v2665 = vld [vmem:[#allocation10 + $0x68] sm:$0xff]
    %v2666 = vld [vmem:[#allocation10 + $0x70] sm:$0xff]
    %v2667 = vld [vmem:[#allocation10 + $0x78] sm:$0xff]
    %v2668 = vld [vmem:[#allocation10 + $0x80] sm:$0xff]
    %v2669 = vld [vmem:[#allocation10 + $0x88] sm:$0xff]
    %v2670 = vld [vmem:[#allocation10 + $0x90] sm:$0xff]
    %v2671 = vld [vmem:[#allocation10 + $0x98] sm:$0xff]
    %v2672 = vld [vmem:[#allocation10 + $0xa0] sm:$0xff]
    %v2673 = vld [vmem:[#allocation10 + $0xa8] sm:$0xff]
    %v2674 = vld [vmem:[#allocation10 + $0xb0] sm:$0xff]
    %v2675 = vld [vmem:[#allocation10 + $0xb8] sm:$0xff]
    %v2676 = vld [vmem:[#allocation10 + $0xc0] sm:$0xff]
    %v2677 = vld [vmem:[#allocation10 + $0xc8] sm:$0xff]
    %v2678 = vld [vmem:[#allocation10 + $0xd0] sm:$0xff]
    %v2679 = vld [vmem:[#allocation10 + $0xd8] sm:$0xff]
    %v2680 = vld [vmem:[#allocation10 + $0xe0] sm:$0xff]
    %v2681 = vld [vmem:[#allocation10 + $0xe8] sm:$0xff]
    %v2682 = vld [vmem:[#allocation10 + $0xf0] sm:$0xff]
    %v2683 = vld [vmem:[#allocation10 + $0xf8] sm:$0xff]
    %v2716 = vunpack.c.l.b16 %v2652
    %v2717 = vunpack.c.h.b16 %v2652
    %v2718 = vunpack.c.l.b16 %v2653
    %v2719 = vunpack.c.h.b16 %v2653
    %v2720 = vunpack.c.l.b16 %v2654
    %v2721 = vunpack.c.h.b16 %v2654
    %v2722 = vunpack.c.l.b16 %v2655
    %v2723 = vunpack.c.h.b16 %v2655
    %v2724 = vunpack.c.l.b16 %v2656
    %v2725 = vunpack.c.h.b16 %v2656
    %v2726 = vunpack.c.l.b16 %v2657
    %v2727 = vunpack.c.h.b16 %v2657
    %v2728 = vunpack.c.l.b16 %v2658
    %v2729 = vunpack.c.h.b16 %v2658
    %v2730 = vunpack.c.l.b16 %v2659
    %v2731 = vunpack.c.h.b16 %v2659
    %v2732 = vunpack.c.l.b16 %v2660
    %v2733 = vunpack.c.h.b16 %v2660
    %v2734 = vunpack.c.l.b16 %v2661
    %v2735 = vunpack.c.h.b16 %v2661
    %v2736 = vunpack.c.l.b16 %v2662
    %v2737 = vunpack.c.h.b16 %v2662
    %v2738 = vunpack.c.l.b16 %v2663
    %v2739 = vunpack.c.h.b16 %v2663
    %v2740 = vunpack.c.l.b16 %v2664
    %v2741 = vunpack.c.h.b16 %v2664
    %v2742 = vunpack.c.l.b16 %v2665
    %v2743 = vunpack.c.h.b16 %v2665
    %v2744 = vunpack.c.l.b16 %v2666
    %v2745 = vunpack.c.h.b16 %v2666
    %v2746 = vunpack.c.l.b16 %v2667
    %v2747 = vunpack.c.h.b16 %v2667
    %v2748 = vunpack.c.l.b16 %v2668
    %v2749 = vunpack.c.h.b16 %v2668
    %v2750 = vunpack.c.l.b16 %v2669
    %v2751 = vunpack.c.h.b16 %v2669
    %v2752 = vunpack.c.l.b16 %v2670
    %v2753 = vunpack.c.h.b16 %v2670
    %v2754 = vunpack.c.l.b16 %v2671
    %v2755 = vunpack.c.h.b16 %v2671
    %v2756 = vunpack.c.l.b16 %v2672
    %v2757 = vunpack.c.h.b16 %v2672
    %v2758 = vunpack.c.l.b16 %v2673
    %v2759 = vunpack.c.h.b16 %v2673
    %v2760 = vunpack.c.l.b16 %v2674
    %v2761 = vunpack.c.h.b16 %v2674
    %v2762 = vunpack.c.l.b16 %v2675
    %v2763 = vunpack.c.h.b16 %v2675
    %v2764 = vunpack.c.l.b16 %v2676
    %v2765 = vunpack.c.h.b16 %v2676
    %v2766 = vunpack.c.l.b16 %v2677
    %v2767 = vunpack.c.h.b16 %v2677
    %v2768 = vunpack.c.l.b16 %v2678
    %v2769 = vunpack.c.h.b16 %v2678
    %v2770 = vunpack.c.l.b16 %v2679
    %v2771 = vunpack.c.h.b16 %v2679
    %v2772 = vunpack.c.l.b16 %v2680
    %v2773 = vunpack.c.h.b16 %v2680
    %v2774 = vunpack.c.l.b16 %v2681
    %v2775 = vunpack.c.h.b16 %v2681
    %v2776 = vunpack.c.l.b16 %v2682
    %v2777 = vunpack.c.h.b16 %v2682
    %v2778 = vunpack.c.l.b16 %v2683
    %v2779 = vunpack.c.h.b16 %v2683
    %v2780 = vpack.c.b16 %v2720, %v2716
    %v2781 = vpack.c.b16 %v2721, %v2717
    %v2782 = vpack.c.b16 %v2722, %v2718
    %v2783 = vpack.c.b16 %v2723, %v2719
    %v2784 = vpack.c.b16 %v2728, %v2724
    %v2785 = vpack.c.b16 %v2729, %v2725
    %v2786 = vpack.c.b16 %v2730, %v2726
    %v2787 = vpack.c.b16 %v2731, %v2727
    %v2788 = vpack.c.b16 %v2736, %v2732
    %v2789 = vpack.c.b16 %v2737, %v2733
    %v2790 = vpack.c.b16 %v2738, %v2734
    %v2791 = vpack.c.b16 %v2739, %v2735
    %v2792 = vpack.c.b16 %v2744, %v2740
    %v2793 = vpack.c.b16 %v2745, %v2741
    %v2794 = vpack.c.b16 %v2746, %v2742
    %v2795 = vpack.c.b16 %v2747, %v2743
    %v2796 = vpack.c.b16 %v2752, %v2748
    %v2797 = vpack.c.b16 %v2753, %v2749
    %v2798 = vpack.c.b16 %v2754, %v2750
    %v2799 = vpack.c.b16 %v2755, %v2751
    %v2800 = vpack.c.b16 %v2760, %v2756
    %v2801 = vpack.c.b16 %v2761, %v2757
    %v2802 = vpack.c.b16 %v2762, %v2758
    %v2803 = vpack.c.b16 %v2763, %v2759
    %v2804 = vpack.c.b16 %v2768, %v2764
    %v2805 = vpack.c.b16 %v2769, %v2765
    %v2806 = vpack.c.b16 %v2770, %v2766
    %v2807 = vpack.c.b16 %v2771, %v2767
    %v2808 = vpack.c.b16 %v2776, %v2772
    %v2809 = vpack.c.b16 %v2777, %v2773
    %v2810 = vpack.c.b16 %v2778, %v2774
    %v2811 = vpack.c.b16 %v2779, %v2775
    %2844 = vmatprep.subr.bf16.mxu0 %v2781
    %2845 = vmatpush1.bf16.msra.mxu0 %v2780
    %2846 = vmatprep.subr.bf16.mxu0 %v2785
    %2847 = vmatpush1.bf16.msra.mxu0 %v2784
    %2848 = vmatprep.subr.bf16.mxu0 %v2789
    %2849 = vmatpush1.bf16.msra.mxu0 %v2788
    %2850 = vmatprep.subr.bf16.mxu0 %v2793
    %2851 = vmatpush1.bf16.msra.mxu0 %v2792
    %2852 = vmatprep.subr.bf16.mxu0 %v2797
    %2853 = vmatpush1.bf16.msra.mxu0 %v2796
    %2854 = vmatprep.subr.bf16.mxu0 %v2801
    %2855 = vmatpush1.bf16.msra.mxu0 %v2800
    %2856 = vmatprep.subr.bf16.mxu0 %v2805
    %2857 = vmatpush1.bf16.msra.mxu0 %v2804
    %2858 = vmatprep.subr.bf16.mxu0 %v2809
    %2859 = vmatpush1.bf16.msra.mxu0 %v2808
    %2860 = vmatprep.subr.bf16.mxu0 0
    %2861 = vmatpush1.bf16.msra.mxu0 0
    %2862 = vmatprep.subr.bf16.mxu0 0
    %2863 = vmatpush1.bf16.msra.mxu0 0
    %2864 = vmatprep.subr.bf16.mxu0 0
    %2865 = vmatpush1.bf16.msra.mxu0 0
    %2866 = vmatprep.subr.bf16.mxu0 0
    %2867 = vmatpush1.bf16.msra.mxu0 0
    %2868 = vmatprep.subr.bf16.mxu0 0
    %2869 = vmatpush1.bf16.msra.mxu0 0
    %2870 = vmatprep.subr.bf16.mxu0 0
    %2871 = vmatpush1.bf16.msra.mxu0 0
    %2872 = vmatprep.subr.bf16.mxu0 0
    %2873 = vmatpush1.bf16.msra.mxu0 0
    %2874 = vmatprep.subr.bf16.mxu0 0
    %2875 = vmatpush1.bf16.msra.mxu0 0
    %2876 = vmatprep.mubr.bf16.mxu0 0
    %2877 = vmatmul.mubr.bf16.gmra.mrb[0].mxu0 %v2651
    %v2878 = vpop.f32.mrb[0].mxu0
    %v2879 = vadd.f32 0.0, %v2878
    %v2880 = vpop.f32.mrb[0].mxu0
    %v2881 = vadd.f32 0.0, %v2880
    %v2882 = vpop.f32.mrb[0].mxu0
    %v2883 = vpop.f32.mrb[0].mxu0
    %2884 = vdwg.mxu0
    %2885 = vmatprep.subr.bf16.mxu0 %v2783
    %2886 = vmatpush1.bf16.msra.mxu0 %v2782
    %2887 = vmatprep.subr.bf16.mxu0 %v2787
    %2888 = vmatpush1.bf16.msra.mxu0 %v2786
    %2889 = vmatprep.subr.bf16.mxu0 %v2791
    %2890 = vmatpush1.bf16.msra.mxu0 %v2790
    %2891 = vmatprep.subr.bf16.mxu0 %v2795
    %2892 = vmatpush1.bf16.msra.mxu0 %v2794
    %2893 = vmatprep.subr.bf16.mxu0 %v2799
    %2894 = vmatpush1.bf16.msra.mxu0 %v2798
    %2895 = vmatprep.subr.bf16.mxu0 %v2803
    %2896 = vmatpush1.bf16.msra.mxu0 %v2802
    %2897 = vmatprep.subr.bf16.mxu0 %v2807
    %2898 = vmatpush1.bf16.msra.mxu0 %v2806
    %2899 = vmatprep.subr.bf16.mxu0 %v2811
    %2900 = vmatpush1.bf16.msra.mxu0 %v2810
    %2901 = vmatprep.subr.bf16.mxu0 0
    %2902 = vmatpush1.bf16.msra.mxu0 0
    %2903 = vmatprep.subr.bf16.mxu0 0
    %2904 = vmatpush1.bf16.msra.mxu0 0
    %2905 = vmatprep.subr.bf16.mxu0 0
    %2906 = vmatpush1.bf16.msra.mxu0 0
    %2907 = vmatprep.subr.bf16.mxu0 0
    %2908 = vmatpush1.bf16.msra.mxu0 0
    %2909 = vmatprep.subr.bf16.mxu0 0
    %2910 = vmatpush1.bf16.msra.mxu0 0
    %2911 = vmatprep.subr.bf16.mxu0 0
    %2912 = vmatpush1.bf16.msra.mxu0 0
    %2913 = vmatprep.subr.bf16.mxu0 0
    %2914 = vmatpush1.bf16.msra.mxu0 0
    %2915 = vmatprep.subr.bf16.mxu0 0
    %2916 = vmatpush1.bf16.msra.mxu0 0
    %2917 = vmatprep.mubr.bf16.mxu0 0
    %2918 = vmatmul.mubr.bf16.gmra.mrb[0].mxu0 %v2651
    %v2919 = vpop.f32.mrb[0].mxu0
    %v2920 = vadd.f32 0.0, %v2919
    %v2921 = vpop.f32.mrb[0].mxu0
    %v2922 = vadd.f32 0.0, %v2921
    %v2923 = vpop.f32.mrb[0].mxu0
    %v2924 = vpop.f32.mrb[0].mxu0
    %2925 = vdwg.mxu0
    %v2926 = vadd.f32 %v2647, %v2879
    %v2927 = vadd.f32 %v2648, %v2881
    %v2928 = vadd.f32 %v2649, %v2920
    %v2929 = vadd.f32 %v2650, %v2922
    %v2930 = vmul.f32 %v2926, 0.5
    %v2931 = vtanh.pop %v2930
    %v2932 = vmul.f32 %v2931, 0.5
    %v2933 = vadd.f32 %v2932, 0.5
    %v2934 = vmul.f32 %v2927, 0.5
    %v2935 = vtanh.pop %v2934
    %v2936 = vmul.f32 %v2935, 0.5
    %v2937 = vadd.f32 %v2936, 0.5
    %v2938 = vtanh.pop %v2928
    %v2939 = vmul.f32 %v2929, 0.5
    %v2940 = vtanh.pop %v2939
    %v2941 = vmul.f32 %v2940, 0.5
    %v2942 = vadd.f32 %v2941, 0.5
    %v2943 = vmul.f32 %v2937, %v2639
    %v2944 = vmul.f32 %v2933, %v2938
    %v2945 = vadd.f32 %v2943, %v2944
    %v2946 = vtanh.pop %v2945
    %v2947 = vmul.f32 %v2942, %v2946
    %s2948 = scalar_lea.vmem [#allocation11], 56
    %2949 = vst [vmem:[%s2948] sm:$0xff] %v2947
    %2950 = vst [vmem:[#allocation2] sm:$0xff] %v2947
    %2951 = vst [vmem:[#allocation3] sm:$0xff] %v2945
    %2952 = vst [vmem:[#allocation12] sm:$0xff] %v2945
    // Predicated region
    $region34: #{tpu_custom_call.1} parent=1 // pred_check
      _
    $region35: #{tpu_custom_call.1} parent=1 // pred_check_branch
      %2954 = sbr.rel (0) target = $region37
    $region36: #{tpu_custom_call.1} parent=1 // pred_region
      %s2955 = sadd.s32 0, 0
      %s2956 = smul.u32 8, %s2955
      %s2958 = ssub.s32 1024, 1024
      %2959 = vsyncadd [#allocation7], %s2958
      %s2960 = smul.addr %s2956, 128
      %s2961 = scalar_lea.hbm %s4, %s2960
      %s2962 = sshll.u32 [#allocation11], 4
      %s2963 = int_to_ptr.vmem [resolvable:$true] %s2962
      %2968 = dma.vmem_to_hbm [thread:$0]  %s2963, 1024, %s2961, [#allocation7], 128, 128, 8
    $region37: #{tpu_custom_call.1} parent=1 // pred_fallthru
      _
    // Predicated region
    $region38: #{tpu_custom_call.1} parent=1 // pred_check
      _
    $region39: #{tpu_custom_call.1} parent=1 // pred_check_branch
      %2970 = sbr.rel (0) target = $region41
    $region40: #{tpu_custom_call.1} parent=1 // pred_region
      %s2972 = ssub.s32 128, 128
      %2973 = vsyncadd [#allocation13], %s2972
      %s2975 = sshll.u32 [#allocation12], 4
      %s2976 = int_to_ptr.vmem [resolvable:$true] %s2975
      %2978 = dma.vmem_to_hbm [thread:$0]  %s2976, 128, %s5, [#allocation13]
    $region41: #{tpu_custom_call.1} parent=1 // pred_fallthru
      _
    // Predicated region
    $region42: #{tpu_custom_call.1} parent=1 // pred_check
      _
    $region43: #{tpu_custom_call.1} parent=1 // pred_check_branch
      %2980 = sbr.rel (0) target = $region45
    $region44: #{tpu_custom_call.1} parent=1 // pred_region
      %2981 = dma.done [#allocation7], 1024
    $region45: #{tpu_custom_call.1} parent=1 // pred_fallthru
      _
    // Predicated region
    $region46: #{tpu_custom_call.1} parent=1 // pred_check
      _
    $region47: #{tpu_custom_call.1} parent=1 // pred_check_branch
      %2983 = sbr.rel (0) target = $region49
    $region48: #{tpu_custom_call.1} parent=1 // pred_region
      %2984 = dma.done [#allocation13], 128
    $region49: #{tpu_custom_call.1} parent=1 // pred_fallthru
      _
    %2985 = vsyncpa [#allocation6], 1
    %2986 = vsyncpa [#allocation9], 1
    %2987 = vsyncpa [#allocation7], 1
    %2988 = vsyncpa [#allocation13], 1

</llo_original>
